<compile_context>
chip_gen: v7x
topology: tpu7x:2x2x1
jax: 0.10.0
libtpu: 0.0.40
codegen_flags: <defaults>
</compile_context>

<pallas_src>
import math
import functools

import jax
import jax.numpy as jnp
from jax.experimental import pallas as pl
from jax.experimental.pallas import tpu as pltpu


# ---------------------------------------------------------------------------
# K/V projections into persistent VMEM scratch (run once per batch element).
# ---------------------------------------------------------------------------
def _project_kv(xkv_b, wk_ref, bk_ref, wv_ref, bv_ref, k_scr, v_scr, num_heads):
    f32, bf16 = jnp.float32, jnp.bfloat16
    for h in range(num_heads):                       # static unroll (1-8 heads)
        kh = jnp.dot(xkv_b, wk_ref[h], preferred_element_type=f32) + bk_ref[h]
        vh = jnp.dot(xkv_b, wv_ref[h], preferred_element_type=f32) + bv_ref[h]
        k_scr[h] = kh.astype(bf16)
        v_scr[h] = vh.astype(bf16)


# ---------------------------------------------------------------------------
# Per-query-tile attention body (K/V already resident in VMEM scratch).
# ---------------------------------------------------------------------------
def _attention_core(xq, wq_ref, bq_ref, k_scr, v_scr, o_ref, o_scr,
                    num_heads, head_dim):
    f32, bf16 = jnp.float32, jnp.bfloat16
    xq_b = xq.astype(bf16)
    scale = 1.0 / math.sqrt(head_dim)
    nt_dims = (((1,), (1,)), ((), ()))               # q @ k^T (contract last)

    for h in range(num_heads):                       # static unroll
        qh = jnp.dot(xq_b, wq_ref[h], preferred_element_type=f32) + bq_ref[h]
        s = jax.lax.dot_general(qh.astype(bf16), k_scr[h], nt_dims,
                                preferred_element_type=f32) * scale
        m = jnp.max(s, axis=-1, keepdims=True)
        p = jnp.exp(s - m)
        p = p * pl.reciprocal(jnp.sum(p, axis=-1, keepdims=True), approx=True)
        ctx = jnp.dot(p.astype(bf16), v_scr[h], preferred_element_type=f32)
        o_scr[:, h * head_dim:(h + 1) * head_dim] = ctx     # VMEM scratch only
    o_ref[0] = o_scr[...].astype(o_ref.dtype)               # one lane-dense store


# ---------------------------------------------------------------------------
# Kernel (sr_ratio > 1): SR conv-as-matmul + LayerNorm + K/V (once per batch)
# + fused attention over query tiles.
# ---------------------------------------------------------------------------
def _attn_sr_kernel(xq_ref, patches_ref, wsr_ref, bsr_ref, lng_ref, lnb_ref,
                    wq_ref, bq_ref, wk_ref, bk_ref, wv_ref, bv_ref,
                    o_ref, k_scr, v_scr, o_scr, *, num_heads, head_dim, eps):
    @pl.when(pl.program_id(1) == 0)
    def _():
        y = jnp.dot(patches_ref[0], wsr_ref[...],
                    preferred_element_type=jnp.float32) + bsr_ref[...]
        mu = jnp.mean(y, axis=-1, keepdims=True)
        var = jnp.mean(jnp.square(y - mu), axis=-1, keepdims=True)
        xkv = (y - mu) * jax.lax.rsqrt(var + eps) * lng_ref[...] + lnb_ref[...]
        _project_kv(xkv.astype(jnp.bfloat16), wk_ref, bk_ref, wv_ref, bv_ref,
                    k_scr, v_scr, num_heads)

    _attention_core(xq_ref[0], wq_ref, bq_ref, k_scr, v_scr, o_ref, o_scr,
                    num_heads, head_dim)


# ---------------------------------------------------------------------------
# Kernel (sr_ratio == 1): K/V from the full-(N, C) block (once per batch);
# queries are sliced out of that same resident block (no duplicate q stream).
# ---------------------------------------------------------------------------
def _attn_kernel(x_ref, wq_ref, bq_ref, wk_ref, bk_ref, wv_ref, bv_ref,
                 o_ref, k_scr, v_scr, o_scr, *, num_heads, head_dim, tq):
    @pl.when(pl.program_id(1) == 0)
    def _():
        _project_kv(x_ref[0].astype(jnp.bfloat16), wk_ref, bk_ref,
                    wv_ref, bv_ref, k_scr, v_scr, num_heads)

    start = pl.multiple_of(pl.program_id(1) * tq, tq)
    xq = x_ref[0, pl.ds(start, tq), :]
    _attention_core(xq, wq_ref, bq_ref, k_scr, v_scr, o_ref, o_scr,
                    num_heads, head_dim)


# ---------------------------------------------------------------------------
# Wrapper-side helpers
# ---------------------------------------------------------------------------
def _split_heads_weight(w, num_heads, d):
    # (C_in, C_out) -> (H, C_in, d), bf16 (no padding of the head dim).
    c_in = w.shape[0]
    return jnp.transpose(w.reshape(c_in, num_heads, d), (1, 0, 2)).astype(jnp.bfloat16)


def _split_heads_bias(b, num_heads, d):
    # (1, C_out) -> (H, 1, d), f32.
    return b.reshape(num_heads, 1, d).astype(jnp.float32)


def _pick_q_tile(n, cap):
    # Full-array tile if it fits; otherwise the largest multiple-of-8 divisor.
    if n <= cap:
        return n
    for t in range(min(cap, n), 7, -1):
        if n % t == 0 and t % 8 == 0:
            return t
    return n


def _default_vmem_limit():
    try:
        cap = int(pltpu.get_tpu_info().vmem_capacity_bytes)
        return min((cap * 3) // 4, 96 * 1024 * 1024)   # 96 MiB on v5e/v6e, 48 MiB on v7x
    except Exception:
        return 32 * 1024 * 1024


# ---------------------------------------------------------------------------
# Public wrapper
# ---------------------------------------------------------------------------
def segformer_efficient_self_attention(hidden_states, params, height, width,
                                       num_heads, sr_ratio, *, tq=512,
                                       out_dtype=jnp.float32,
                                       vmem_limit_bytes=None):
    B, N, C = hidden_states.shape
    assert N == height * width
    head_dim = C // num_heads

    tq_eff = _pick_q_tile(N, tq)
    n_q = N // tq_eff
    if vmem_limit_bytes is None:
        vmem_limit_bytes = _default_vmem_limit()

    # Dominant HBM streams in bf16 (they are consumed as bf16 MXU operands).
    x_bf16 = hidden_states.astype(jnp.bfloat16)

    wq_h = _split_heads_weight(params["wq"], num_heads, head_dim)
    bq_h = _split_heads_bias(params["bq"], num_heads, head_dim)
    wk_h = _split_heads_weight(params["wk"], num_heads, head_dim)
    bk_h = _split_heads_bias(params["bk"], num_heads, head_dim)
    wv_h = _split_heads_weight(params["wv"], num_heads, head_dim)
    bv_h = _split_heads_bias(params["bv"], num_heads, head_dim)

    w_spec = pl.BlockSpec((num_heads, C, head_dim), lambda b, t: (0, 0, 0))
    b_spec = pl.BlockSpec((num_heads, 1, head_dim), lambda b, t: (0, 0, 0))
    out_spec = pl.BlockSpec((1, tq_eff, C), lambda b, t: (b, t, 0))

    compiler_params = pltpu.CompilerParams(
        dimension_semantics=("parallel", "arbitrary"),
        vmem_limit_bytes=vmem_limit_bytes,
    )

    if sr_ratio > 1:
        R = sr_ratio
        Hr, Wr = height // R, width // R
        n_kv = Hr * Wr
        k_in = C * R * R
        # Non-overlapping patch extraction (channel-last) so the SR Conv2d
        # (kernel_size == stride == R) becomes one matmul in-kernel.
        patches = x_bf16.reshape(B, Hr, R, Wr, R, C)
        patches = jnp.transpose(patches, (0, 1, 3, 2, 4, 5)).reshape(B, n_kv, k_in)
        # Conv2d weight (C_out, C_in, R, R) -> ((dr*R + dc)*C_in + c_in, C_out)
        w_sr = jnp.transpose(params["sr_w"], (2, 3, 1, 0)).reshape(k_in, C)
        w_sr = w_sr.astype(jnp.bfloat16)

        kernel = functools.partial(_attn_sr_kernel, num_heads=num_heads,
                                   head_dim=head_dim, eps=1e-5)
        in_specs = [
            pl.BlockSpec((1, tq_eff, C), lambda b, t: (b, t, 0)),   # queries
            pl.BlockSpec((1, n_kv, k_in), lambda b, t: (b, 0, 0)),  # per-b, once
            pl.BlockSpec((k_in, C), lambda b, t: (0, 0)),
            pl.BlockSpec((1, C), lambda b, t: (0, 0)),
            pl.BlockSpec((1, C), lambda b, t: (0, 0)),
            pl.BlockSpec((1, C), lambda b, t: (0, 0)),
            w_spec, b_spec, w_spec, b_spec, w_spec, b_spec,
        ]
        args = (x_bf16, patches, w_sr,
                params["sr_b"].astype(jnp.float32),
                params["ln_g"].astype(jnp.float32),
                params["ln_b"].astype(jnp.float32),
                wq_h, bq_h, wk_h, bk_h, wv_h, bv_h)
        kv_len = n_kv
    else:
        kernel = functools.partial(_attn_kernel, num_heads=num_heads,
                                   head_dim=head_dim, tq=tq_eff)
        in_specs = [
            pl.BlockSpec((1, N, C), lambda b, t: (b, 0, 0)),        # q + kv source
            w_spec, b_spec, w_spec, b_spec, w_spec, b_spec,
        ]
        args = (x_bf16, wq_h, bq_h, wk_h, bk_h, wv_h, bv_h)
        kv_len = N

    scratch_shapes = [
        pltpu.VMEM((num_heads, kv_len, head_dim), jnp.bfloat16),   # K (per batch)
        pltpu.VMEM((num_heads, kv_len, head_dim), jnp.bfloat16),   # V (per batch)
        pltpu.VMEM((tq_eff, C), jnp.float32),                      # ctx assembly
    ]

    return pl.pallas_call(
        kernel,
        out_shape=jax.ShapeDtypeStruct((B, N, C), out_dtype),
        grid=(B, n_q),
        in_specs=in_specs,
        out_specs=out_spec,
        scratch_shapes=scratch_shapes,
        compiler_params=compiler_params,
    )(*args)


# ---------------------------------------------------------------------------
# Pure-JAX reference (same math as the PyTorch module, independent formulation)
# ---------------------------------------------------------------------------
def reference(hidden_states, params, height, width, num_heads, sr_ratio):
    B, N, C = hidden_states.shape
    dh = C // num_heads
    q = hidden_states @ params["wq"] + params["bq"]
    x = hidden_states
    if sr_ratio > 1:
        x_img = jnp.transpose(x, (0, 2, 1)).reshape(B, C, height, width)
        y = jax.lax.conv_general_dilated(
            x_img, params["sr_w"], window_strides=(sr_ratio, sr_ratio),
            padding="VALID", dimension_numbers=("NCHW", "OIHW", "NCHW"))
        y = y.reshape(B, C, -1).transpose(0, 2, 1) + params["sr_b"]
        mean = y.mean(-1, keepdims=True)
        var = ((y - mean) ** 2).mean(-1, keepdims=True)
        x = (y - mean) / jnp.sqrt(var + 1e-5) * params["ln_g"] + params["ln_b"]
    k = x @ params["wk"] + params["bk"]
    v = x @ params["wv"] + params["bv"]

    def split(t):
        return t.reshape(B, -1, num_heads, dh).transpose(0, 2, 1, 3)

    qh, kh, vh = split(q), split(k), split(v)
    scores = jnp.einsum("bhqd,bhkd->bhqk", qh, kh) / math.sqrt(dh)
    probs = jax.nn.softmax(scores, axis=-1)
    ctx = jnp.einsum("bhqk,bhkd->bhqd", probs, vh)
    return ctx.transpose(0, 2, 1, 3).reshape(B, N, C)


# ---------------------------------------------------------------------------
if __name__ == "__main__":
    def make_params(key, C, R, with_sr):
        keys = jax.random.split(key, 8)
        s = 0.05
        p = {
            "wq": s * jax.random.normal(keys[0], (C, C), jnp.float32),
            "bq": s * jax.random.normal(keys[1], (1, C), jnp.float32),
            "wk": s * jax.random.normal(keys[2], (C, C), jnp.float32),
            "bk": s * jax.random.normal(keys[3], (1, C), jnp.float32),
            "wv": s * jax.random.normal(keys[4], (C, C), jnp.float32),
            "bv": s * jax.random.normal(keys[5], (1, C), jnp.float32),
        }
        if with_sr:
            # Conv2d(C, C, kernel_size=R, stride=R) weight/bias + LayerNorm(C)
            p["sr_w"] = s * jax.random.normal(keys[6], (C, C, R, R), jnp.float32)
            p["sr_b"] = s * jax.random.normal(keys[7], (1, C), jnp.float32)
            p["ln_g"] = jnp.ones((1, C), jnp.float32)
            p["ln_b"] = jnp.zeros((1, C), jnp.float32)
        return p

    key = jax.random.PRNGKey(0)
    k1, k2, k3, k4 = jax.random.split(key, 4)

    # Case 1: with sequence reduction (Segformer stage-2-like, small shapes).
    B, C, heads, H, W, R = 2, 64, 2, 16, 16, 4
    N = H * W
    params = make_params(k1, C, R, True)
    x = jax.random.normal(k2, (B, N, C), jnp.float32)
    out = segformer_efficient_self_attention(x, params, H, W, heads, R, tq=128)
    out = jax.block_until_ready(out)
    ref = reference(x, params, H, W, heads, R)
    assert out.shape == (B, N, C)
    err = jnp.max(jnp.abs(out - ref))
    assert jnp.allclose(out, ref, atol=2e-2, rtol=2e-2), f"max abs err {err}"

    # Case 2: sr_ratio == 1 path (no conv / LayerNorm).
    B2, C2, heads2, H2, W2 = 1, 32, 1, 8, 8
    N2 = H2 * W2
    params2 = make_params(k3, 32, 1, False)
    x2 = jax.random.normal(k4, (B2, N2, C2), jnp.float32)
    out2 = segformer_efficient_self_attention(x2, params2, H2, W2, heads2, 1)
    out2 = jax.block_until_ready(out2)
    ref2 = reference(x2, params2, H2, W2, heads2, 1)
    err2 = jnp.max(jnp.abs(out2 - ref2))
    assert jnp.allclose(out2, ref2, atol=2e-2, rtol=2e-2), f"max abs err {err2}"

    print("KERNEL_OK")
</pallas_src>

<mosaic_0001>
module attributes {stable_mosaic.version = 11 : i64} {
  func.func @_attn_sr_kernel(%arg0: i32, %arg1: i32, %arg2: memref<1x128x64xbf16, #tpu.memory_space<vmem>>, %arg3: memref<1x16x1024xbf16, #tpu.memory_space<vmem>>, %arg4: memref<1024x64xbf16, #tpu.memory_space<vmem>>, %arg5: memref<1x64xf32, #tpu.memory_space<vmem>>, %arg6: memref<1x64xf32, #tpu.memory_space<vmem>>, %arg7: memref<1x64xf32, #tpu.memory_space<vmem>>, %arg8: memref<2x64x32xbf16, #tpu.memory_space<vmem>>, %arg9: memref<2x1x32xf32, #tpu.memory_space<vmem>>, %arg10: memref<2x64x32xbf16, #tpu.memory_space<vmem>>, %arg11: memref<2x1x32xf32, #tpu.memory_space<vmem>>, %arg12: memref<2x64x32xbf16, #tpu.memory_space<vmem>>, %arg13: memref<2x1x32xf32, #tpu.memory_space<vmem>>, %arg14: memref<1x128x64xf32, #tpu.memory_space<vmem>>, %arg15: memref<2x16x32xbf16, #tpu.memory_space<vmem>>, %arg16: memref<2x16x32xbf16, #tpu.memory_space<vmem>>, %arg17: memref<128x64xf32, #tpu.memory_space<vmem>>) attributes {dimension_semantics = [#tpu.dimension_semantics<parallel>, #tpu.dimension_semantics<arbitrary>], iteration_bounds = array<i64: 2, 2>, scalar_prefetch = 0 : i64, scratch_operands = 3 : i64, tpu.core_type = #tpu.core_type<tc>, window_params = [{transform_indices = @transform_0, window_bounds = array<i64: 1, 128, 64>}, {transform_indices = @transform_1, window_bounds = array<i64: 1, 16, 1024>}, {pipeline_mode = #tpu.pipeline_mode<synchronous>, transform_indices = @transform_2, window_bounds = array<i64: 1024, 64>}, {pipeline_mode = #tpu.pipeline_mode<synchronous>, transform_indices = @transform_3, window_bounds = array<i64: 1, 64>}, {pipeline_mode = #tpu.pipeline_mode<synchronous>, transform_indices = @transform_4, window_bounds = array<i64: 1, 64>}, {pipeline_mode = #tpu.pipeline_mode<synchronous>, transform_indices = @transform_5, window_bounds = array<i64: 1, 64>}, {pipeline_mode = #tpu.pipeline_mode<synchronous>, transform_indices = @transform_6, window_bounds = array<i64: 2, 64, 32>}, {pipeline_mode = #tpu.pipeline_mode<synchronous>, transform_indices = @transform_7, window_bounds = array<i64: 2, 1, 32>}, {pipeline_mode = #tpu.pipeline_mode<synchronous>, transform_indices = @transform_8, window_bounds = array<i64: 2, 64, 32>}, {pipeline_mode = #tpu.pipeline_mode<synchronous>, transform_indices = @transform_9, window_bounds = array<i64: 2, 1, 32>}, {pipeline_mode = #tpu.pipeline_mode<synchronous>, transform_indices = @transform_10, window_bounds = array<i64: 2, 64, 32>}, {pipeline_mode = #tpu.pipeline_mode<synchronous>, transform_indices = @transform_11, window_bounds = array<i64: 2, 1, 32>}, {transform_indices = @transform_12, window_bounds = array<i64: 1, 128, 64>}]} {
    %c0_i32 = arith.constant 0 : i32
    %0 = arith.cmpi eq, %arg1, %c0_i32 : i32
    %1 = arith.extui %0 : i1 to i32
    %c0_i32_0 = arith.constant 0 : i32
    %2 = arith.cmpi ne, %1, %c0_i32_0 : i32
    scf.if %2 {
      %c0_45 = arith.constant 0 : index
      %c0_46 = arith.constant 0 : index
      %c0_47 = arith.constant 0 : index
      %65 = vector.load %arg3[%c0_45, %c0_46, %c0_47] : memref<1x16x1024xbf16, #tpu.memory_space<vmem>>, vector<1x16x1024xbf16>
      %66 = vector.shape_cast %65 : vector<1x16x1024xbf16> to vector<16x1024xbf16>
      %c0_48 = arith.constant 0 : index
      %c0_49 = arith.constant 0 : index
      %67 = vector.load %arg4[%c0_48, %c0_49] : memref<1024x64xbf16, #tpu.memory_space<vmem>>, vector<1024x64xbf16>
      %cst_50 = arith.constant dense<0.000000e+00> : vector<16x64xf32>
      %68 = tpu.matmul %66, %67, %cst_50 {dimension_numbers = #tpu.dot_dimension_numbers<[1], [0], [0], [1], [0, 0, 1, 1], [], []>} : vector<16x1024xbf16>, vector<1024x64xbf16>, vector<16x64xf32> -> vector<16x64xf32>
      %c0_51 = arith.constant 0 : index
      %c0_52 = arith.constant 0 : index
      %69 = vector.load %arg5[%c0_51, %c0_52] : memref<1x64xf32, #tpu.memory_space<vmem>>, vector<1x64xf32>
      %70 = vector.broadcast %69 : vector<1x64xf32> to vector<16x64xf32>
      %71 = arith.addf %68, %70 : vector<16x64xf32>
      %cst_53 = arith.constant dense<0.000000e+00> : vector<16xf32>
      %72 = vector.multi_reduction <add>, %71, %cst_53 [1] : vector<16x64xf32> to vector<16xf32>
      %73 = vector.shape_cast %72 : vector<16xf32> to vector<16x1xf32>
      %cst_54 = arith.constant 6.400000e+01 : f32
      %74 = vector.broadcast %cst_54 : f32 to vector<16x1xf32>
      %75 = arith.divf %73, %74 : vector<16x1xf32>
      %76 = vector.broadcast %75 : vector<16x1xf32> to vector<16x64xf32>
      %77 = arith.subf %71, %76 : vector<16x64xf32>
      %78 = arith.mulf %77, %77 : vector<16x64xf32>
      %cst_55 = arith.constant dense<0.000000e+00> : vector<16xf32>
      %79 = vector.multi_reduction <add>, %78, %cst_55 [1] : vector<16x64xf32> to vector<16xf32>
      %80 = vector.shape_cast %79 : vector<16xf32> to vector<16x1xf32>
      %cst_56 = arith.constant 6.400000e+01 : f32
      %81 = vector.broadcast %cst_56 : f32 to vector<16x1xf32>
      %82 = arith.divf %80, %81 : vector<16x1xf32>
      %83 = vector.broadcast %75 : vector<16x1xf32> to vector<16x64xf32>
      %84 = arith.subf %71, %83 : vector<16x64xf32>
      %cst_57 = arith.constant 9.99999974E-6 : f32
      %85 = vector.broadcast %cst_57 : f32 to vector<16x1xf32>
      %86 = arith.addf %82, %85 : vector<16x1xf32>
      %87 = math.rsqrt %86 : vector<16x1xf32>
      %88 = vector.broadcast %87 : vector<16x1xf32> to vector<16x64xf32>
      %89 = arith.mulf %84, %88 : vector<16x64xf32>
      %c0_58 = arith.constant 0 : index
      %c0_59 = arith.constant 0 : index
      %90 = vector.load %arg6[%c0_58, %c0_59] : memref<1x64xf32, #tpu.memory_space<vmem>>, vector<1x64xf32>
      %91 = vector.broadcast %90 : vector<1x64xf32> to vector<16x64xf32>
      %92 = arith.mulf %89, %91 : vector<16x64xf32>
      %c0_60 = arith.constant 0 : index
      %c0_61 = arith.constant 0 : index
      %93 = vector.load %arg7[%c0_60, %c0_61] : memref<1x64xf32, #tpu.memory_space<vmem>>, vector<1x64xf32>
      %94 = vector.broadcast %93 : vector<1x64xf32> to vector<16x64xf32>
      %95 = arith.addf %92, %94 : vector<16x64xf32>
      %96 = arith.truncf %95 : vector<16x64xf32> to vector<16x64xbf16>
      %c0_62 = arith.constant 0 : index
      %c0_63 = arith.constant 0 : index
      %c0_64 = arith.constant 0 : index
      %97 = vector.load %arg10[%c0_62, %c0_63, %c0_64] : memref<2x64x32xbf16, #tpu.memory_space<vmem>>, vector<1x64x32xbf16>
      %98 = vector.shape_cast %97 : vector<1x64x32xbf16> to vector<64x32xbf16>
      %cst_65 = arith.constant dense<0.000000e+00> : vector<16x32xf32>
      %99 = tpu.matmul %96, %98, %cst_65 {dimension_numbers = #tpu.dot_dimension_numbers<[1], [0], [0], [1], [0, 0, 1, 1], [], []>} : vector<16x64xbf16>, vector<64x32xbf16>, vector<16x32xf32> -> vector<16x32xf32>
      %c0_66 = arith.constant 0 : index
      %c0_67 = arith.constant 0 : index
      %c0_68 = arith.constant 0 : index
      %100 = vector.load %arg11[%c0_66, %c0_67, %c0_68] : memref<2x1x32xf32, #tpu.memory_space<vmem>>, vector<1x1x32xf32>
      %101 = vector.shape_cast %100 : vector<1x1x32xf32> to vector<1x32xf32>
      %102 = vector.broadcast %101 : vector<1x32xf32> to vector<16x32xf32>
      %103 = arith.addf %99, %102 : vector<16x32xf32>
      %c0_69 = arith.constant 0 : index
      %c0_70 = arith.constant 0 : index
      %c0_71 = arith.constant 0 : index
      %104 = vector.load %arg12[%c0_69, %c0_70, %c0_71] : memref<2x64x32xbf16, #tpu.memory_space<vmem>>, vector<1x64x32xbf16>
      %105 = vector.shape_cast %104 : vector<1x64x32xbf16> to vector<64x32xbf16>
      %cst_72 = arith.constant dense<0.000000e+00> : vector<16x32xf32>
      %106 = tpu.matmul %96, %105, %cst_72 {dimension_numbers = #tpu.dot_dimension_numbers<[1], [0], [0], [1], [0, 0, 1, 1], [], []>} : vector<16x64xbf16>, vector<64x32xbf16>, vector<16x32xf32> -> vector<16x32xf32>
      %c0_73 = arith.constant 0 : index
      %c0_74 = arith.constant 0 : index
      %c0_75 = arith.constant 0 : index
      %107 = vector.load %arg13[%c0_73, %c0_74, %c0_75] : memref<2x1x32xf32, #tpu.memory_space<vmem>>, vector<1x1x32xf32>
      %108 = vector.shape_cast %107 : vector<1x1x32xf32> to vector<1x32xf32>
      %109 = vector.broadcast %108 : vector<1x32xf32> to vector<16x32xf32>
      %110 = arith.addf %106, %109 : vector<16x32xf32>
      %111 = arith.truncf %103 : vector<16x32xf32> to vector<16x32xbf16>
      %c0_76 = arith.constant 0 : index
      %c0_77 = arith.constant 0 : index
      %c0_78 = arith.constant 0 : index
      %112 = vector.load %arg15[%c0_76, %c0_77, %c0_78] : memref<2x16x32xbf16, #tpu.memory_space<vmem>>, vector<1x16x32xbf16>
      %113 = vector.shape_cast %112 : vector<1x16x32xbf16> to vector<16x32xbf16>
      %114 = vector.shape_cast %111 : vector<16x32xbf16> to vector<1x16x32xbf16>
      tpu.vector_store %arg15[%c0_76, %c0_77, %c0_78], %114 {strides = array<i32>} : memref<2x16x32xbf16, #tpu.memory_space<vmem>>, vector<1x16x32xbf16>,
      %115 = arith.truncf %110 : vector<16x32xf32> to vector<16x32xbf16>
      %c0_79 = arith.constant 0 : index
      %c0_80 = arith.constant 0 : index
      %c0_81 = arith.constant 0 : index
      %116 = vector.load %arg16[%c0_79, %c0_80, %c0_81] : memref<2x16x32xbf16, #tpu.memory_space<vmem>>, vector<1x16x32xbf16>
      %117 = vector.shape_cast %116 : vector<1x16x32xbf16> to vector<16x32xbf16>
      %118 = vector.shape_cast %115 : vector<16x32xbf16> to vector<1x16x32xbf16>
      tpu.vector_store %arg16[%c0_79, %c0_80, %c0_81], %118 {strides = array<i32>} : memref<2x16x32xbf16, #tpu.memory_space<vmem>>, vector<1x16x32xbf16>,
      %c1_82 = arith.constant 1 : index
      %c0_83 = arith.constant 0 : index
      %c0_84 = arith.constant 0 : index
      %119 = vector.load %arg10[%c1_82, %c0_83, %c0_84] : memref<2x64x32xbf16, #tpu.memory_space<vmem>>, vector<1x64x32xbf16>
      %120 = vector.shape_cast %119 : vector<1x64x32xbf16> to vector<64x32xbf16>
      %cst_85 = arith.constant dense<0.000000e+00> : vector<16x32xf32>
      %121 = tpu.matmul %96, %120, %cst_85 {dimension_numbers = #tpu.dot_dimension_numbers<[1], [0], [0], [1], [0, 0, 1, 1], [], []>} : vector<16x64xbf16>, vector<64x32xbf16>, vector<16x32xf32> -> vector<16x32xf32>
      %c1_86 = arith.constant 1 : index
      %c0_87 = arith.constant 0 : index
      %c0_88 = arith.constant 0 : index
      %122 = vector.load %arg11[%c1_86, %c0_87, %c0_88] : memref<2x1x32xf32, #tpu.memory_space<vmem>>, vector<1x1x32xf32>
      %123 = vector.shape_cast %122 : vector<1x1x32xf32> to vector<1x32xf32>
      %124 = vector.broadcast %123 : vector<1x32xf32> to vector<16x32xf32>
      %125 = arith.addf %121, %124 : vector<16x32xf32>
      %c1_89 = arith.constant 1 : index
      %c0_90 = arith.constant 0 : index
      %c0_91 = arith.constant 0 : index
      %126 = vector.load %arg12[%c1_89, %c0_90, %c0_91] : memref<2x64x32xbf16, #tpu.memory_space<vmem>>, vector<1x64x32xbf16>
      %127 = vector.shape_cast %126 : vector<1x64x32xbf16> to vector<64x32xbf16>
      %cst_92 = arith.constant dense<0.000000e+00> : vector<16x32xf32>
      %128 = tpu.matmul %96, %127, %cst_92 {dimension_numbers = #tpu.dot_dimension_numbers<[1], [0], [0], [1], [0, 0, 1, 1], [], []>} : vector<16x64xbf16>, vector<64x32xbf16>, vector<16x32xf32> -> vector<16x32xf32>
      %c1_93 = arith.constant 1 : index
      %c0_94 = arith.constant 0 : index
      %c0_95 = arith.constant 0 : index
      %129 = vector.load %arg13[%c1_93, %c0_94, %c0_95] : memref<2x1x32xf32, #tpu.memory_space<vmem>>, vector<1x1x32xf32>
      %130 = vector.shape_cast %129 : vector<1x1x32xf32> to vector<1x32xf32>
      %131 = vector.broadcast %130 : vector<1x32xf32> to vector<16x32xf32>
      %132 = arith.addf %128, %131 : vector<16x32xf32>
      %133 = arith.truncf %125 : vector<16x32xf32> to vector<16x32xbf16>
      %c1_96 = arith.constant 1 : index
      %c0_97 = arith.constant 0 : index
      %c0_98 = arith.constant 0 : index
      %134 = vector.load %arg15[%c1_96, %c0_97, %c0_98] : memref<2x16x32xbf16, #tpu.memory_space<vmem>>, vector<1x16x32xbf16>
      %135 = vector.shape_cast %134 : vector<1x16x32xbf16> to vector<16x32xbf16>
      %136 = vector.shape_cast %133 : vector<16x32xbf16> to vector<1x16x32xbf16>
      tpu.vector_store %arg15[%c1_96, %c0_97, %c0_98], %136 {strides = array<i32>} : memref<2x16x32xbf16, #tpu.memory_space<vmem>>, vector<1x16x32xbf16>,
      %137 = arith.truncf %132 : vector<16x32xf32> to vector<16x32xbf16>
      %c1_99 = arith.constant 1 : index
      %c0_100 = arith.constant 0 : index
      %c0_101 = arith.constant 0 : index
      %138 = vector.load %arg16[%c1_99, %c0_100, %c0_101] : memref<2x16x32xbf16, #tpu.memory_space<vmem>>, vector<1x16x32xbf16>
      %139 = vector.shape_cast %138 : vector<1x16x32xbf16> to vector<16x32xbf16>
      %140 = vector.shape_cast %137 : vector<16x32xbf16> to vector<1x16x32xbf16>
      tpu.vector_store %arg16[%c1_99, %c0_100, %c0_101], %140 {strides = array<i32>} : memref<2x16x32xbf16, #tpu.memory_space<vmem>>, vector<1x16x32xbf16>,
    } else {
    }
    %c0 = arith.constant 0 : index
    %c0_1 = arith.constant 0 : index
    %c0_2 = arith.constant 0 : index
    %3 = vector.load %arg2[%c0, %c0_1, %c0_2] : memref<1x128x64xbf16, #tpu.memory_space<vmem>>, vector<1x128x64xbf16>
    %4 = vector.shape_cast %3 : vector<1x128x64xbf16> to vector<128x64xbf16>
    %c0_3 = arith.constant 0 : index
    %c0_4 = arith.constant 0 : index
    %c0_5 = arith.constant 0 : index
    %5 = vector.load %arg8[%c0_3, %c0_4, %c0_5] : memref<2x64x32xbf16, #tpu.memory_space<vmem>>, vector<1x64x32xbf16>
    %6 = vector.shape_cast %5 : vector<1x64x32xbf16> to vector<64x32xbf16>
    %cst = arith.constant dense<0.000000e+00> : vector<128x32xf32>
    %7 = tpu.matmul %4, %6, %cst {dimension_numbers = #tpu.dot_dimension_numbers<[1], [0], [0], [1], [0, 0, 1, 1], [], []>} : vector<128x64xbf16>, vector<64x32xbf16>, vector<128x32xf32> -> vector<128x32xf32>
    %c0_6 = arith.constant 0 : index
    %c0_7 = arith.constant 0 : index
    %c0_8 = arith.constant 0 : index
    %8 = vector.load %arg9[%c0_6, %c0_7, %c0_8] : memref<2x1x32xf32, #tpu.memory_space<vmem>>, vector<1x1x32xf32>
    %9 = vector.shape_cast %8 : vector<1x1x32xf32> to vector<1x32xf32>
    %10 = vector.broadcast %9 : vector<1x32xf32> to vector<128x32xf32>
    %11 = arith.addf %7, %10 : vector<128x32xf32>
    %12 = arith.truncf %11 : vector<128x32xf32> to vector<128x32xbf16>
    %c0_9 = arith.constant 0 : index
    %c0_10 = arith.constant 0 : index
    %c0_11 = arith.constant 0 : index
    %13 = vector.load %arg15[%c0_9, %c0_10, %c0_11] : memref<2x16x32xbf16, #tpu.memory_space<vmem>>, vector<1x16x32xbf16>
    %14 = vector.shape_cast %13 : vector<1x16x32xbf16> to vector<16x32xbf16>
    %cst_12 = arith.constant dense<0.000000e+00> : vector<128x16xf32>
    %15 = tpu.matmul %12, %14, %cst_12 {dimension_numbers = #tpu.dot_dimension_numbers<[1], [1], [0], [0], [0, 0, 1, 0], [], []>} : vector<128x32xbf16>, vector<16x32xbf16>, vector<128x16xf32> -> vector<128x16xf32>
    %cst_13 = arith.constant 0.176776692 : f32
    %16 = vector.broadcast %cst_13 : f32 to vector<128x16xf32>
    %17 = arith.mulf %15, %16 : vector<128x16xf32>
    %cst_14 = arith.constant dense<0xFF800000> : vector<128xf32>
    %18 = vector.multi_reduction <maximumf>, %17, %cst_14 [1] : vector<128x16xf32> to vector<128xf32>
    %19 = vector.shape_cast %18 : vector<128xf32> to vector<128x1xf32>
    %20 = vector.broadcast %19 : vector<128x1xf32> to vector<128x16xf32>
    %21 = arith.subf %17, %20 : vector<128x16xf32>
    %22 = math.exp %21 : vector<128x16xf32>
    %cst_15 = arith.constant dense<0.000000e+00> : vector<128xf32>
    %23 = vector.multi_reduction <add>, %22, %cst_15 [1] : vector<128x16xf32> to vector<128xf32>
    %24 = vector.shape_cast %23 : vector<128xf32> to vector<128x1xf32>
    %25 = tpu.reciprocal %24 {approx = true} : vector<128x1xf32> -> vector<128x1xf32>
    %26 = vector.broadcast %25 : vector<128x1xf32> to vector<128x16xf32>
    %27 = arith.mulf %22, %26 : vector<128x16xf32>
    %28 = arith.truncf %27 : vector<128x16xf32> to vector<128x16xbf16>
    %c0_16 = arith.constant 0 : index
    %c0_17 = arith.constant 0 : index
    %c0_18 = arith.constant 0 : index
    %29 = vector.load %arg16[%c0_16, %c0_17, %c0_18] : memref<2x16x32xbf16, #tpu.memory_space<vmem>>, vector<1x16x32xbf16>
    %30 = vector.shape_cast %29 : vector<1x16x32xbf16> to vector<16x32xbf16>
    %cst_19 = arith.constant dense<0.000000e+00> : vector<128x32xf32>
    %31 = tpu.matmul %28, %30, %cst_19 {dimension_numbers = #tpu.dot_dimension_numbers<[1], [0], [0], [1], [0, 0, 1, 1], [], []>} : vector<128x16xbf16>, vector<16x32xbf16>, vector<128x32xf32> -> vector<128x32xf32>
    %c0_20 = arith.constant 0 : index
    %c0_21 = arith.constant 0 : index
    %32 = vector.load %arg17[%c0_20, %c0_21] : memref<128x64xf32, #tpu.memory_space<vmem>>, vector<128x32xf32>
    tpu.vector_store %arg17[%c0_20, %c0_21], %31 {strides = array<i32>} : memref<128x64xf32, #tpu.memory_space<vmem>>, vector<128x32xf32>,
    %c1 = arith.constant 1 : index
    %c0_22 = arith.constant 0 : index
    %c0_23 = arith.constant 0 : index
    %33 = vector.load %arg8[%c1, %c0_22, %c0_23] : memref<2x64x32xbf16, #tpu.memory_space<vmem>>, vector<1x64x32xbf16>
    %34 = vector.shape_cast %33 : vector<1x64x32xbf16> to vector<64x32xbf16>
    %cst_24 = arith.constant dense<0.000000e+00> : vector<128x32xf32>
    %35 = tpu.matmul %4, %34, %cst_24 {dimension_numbers = #tpu.dot_dimension_numbers<[1], [0], [0], [1], [0, 0, 1, 1], [], []>} : vector<128x64xbf16>, vector<64x32xbf16>, vector<128x32xf32> -> vector<128x32xf32>
    %c1_25 = arith.constant 1 : index
    %c0_26 = arith.constant 0 : index
    %c0_27 = arith.constant 0 : index
    %36 = vector.load %arg9[%c1_25, %c0_26, %c0_27] : memref<2x1x32xf32, #tpu.memory_space<vmem>>, vector<1x1x32xf32>
    %37 = vector.shape_cast %36 : vector<1x1x32xf32> to vector<1x32xf32>
    %38 = vector.broadcast %37 : vector<1x32xf32> to vector<128x32xf32>
    %39 = arith.addf %35, %38 : vector<128x32xf32>
    %40 = arith.truncf %39 : vector<128x32xf32> to vector<128x32xbf16>
    %c1_28 = arith.constant 1 : index
    %c0_29 = arith.constant 0 : index
    %c0_30 = arith.constant 0 : index
    %41 = vector.load %arg15[%c1_28, %c0_29, %c0_30] : memref<2x16x32xbf16, #tpu.memory_space<vmem>>, vector<1x16x32xbf16>
    %42 = vector.shape_cast %41 : vector<1x16x32xbf16> to vector<16x32xbf16>
    %cst_31 = arith.constant dense<0.000000e+00> : vector<128x16xf32>
    %43 = tpu.matmul %40, %42, %cst_31 {dimension_numbers = #tpu.dot_dimension_numbers<[1], [1], [0], [0], [0, 0, 1, 0], [], []>} : vector<128x32xbf16>, vector<16x32xbf16>, vector<128x16xf32> -> vector<128x16xf32>
    %cst_32 = arith.constant 0.176776692 : f32
    %44 = vector.broadcast %cst_32 : f32 to vector<128x16xf32>
    %45 = arith.mulf %43, %44 : vector<128x16xf32>
    %cst_33 = arith.constant dense<0xFF800000> : vector<128xf32>
    %46 = vector.multi_reduction <maximumf>, %45, %cst_33 [1] : vector<128x16xf32> to vector<128xf32>
    %47 = vector.shape_cast %46 : vector<128xf32> to vector<128x1xf32>
    %48 = vector.broadcast %47 : vector<128x1xf32> to vector<128x16xf32>
    %49 = arith.subf %45, %48 : vector<128x16xf32>
    %50 = math.exp %49 : vector<128x16xf32>
    %cst_34 = arith.constant dense<0.000000e+00> : vector<128xf32>
    %51 = vector.multi_reduction <add>, %50, %cst_34 [1] : vector<128x16xf32> to vector<128xf32>
    %52 = vector.shape_cast %51 : vector<128xf32> to vector<128x1xf32>
    %53 = tpu.reciprocal %52 {approx = true} : vector<128x1xf32> -> vector<128x1xf32>
    %54 = vector.broadcast %53 : vector<128x1xf32> to vector<128x16xf32>
    %55 = arith.mulf %50, %54 : vector<128x16xf32>
    %56 = arith.truncf %55 : vector<128x16xf32> to vector<128x16xbf16>
    %c1_35 = arith.constant 1 : index
    %c0_36 = arith.constant 0 : index
    %c0_37 = arith.constant 0 : index
    %57 = vector.load %arg16[%c1_35, %c0_36, %c0_37] : memref<2x16x32xbf16, #tpu.memory_space<vmem>>, vector<1x16x32xbf16>
    %58 = vector.shape_cast %57 : vector<1x16x32xbf16> to vector<16x32xbf16>
    %cst_38 = arith.constant dense<0.000000e+00> : vector<128x32xf32>
    %59 = tpu.matmul %56, %58, %cst_38 {dimension_numbers = #tpu.dot_dimension_numbers<[1], [0], [0], [1], [0, 0, 1, 1], [], []>} : vector<128x16xbf16>, vector<16x32xbf16>, vector<128x32xf32> -> vector<128x32xf32>
    %c0_39 = arith.constant 0 : index
    %c32 = arith.constant 32 : index
    %60 = vector.load %arg17[%c0_39, %c32] : memref<128x64xf32, #tpu.memory_space<vmem>>, vector<128x32xf32>
    tpu.vector_store %arg17[%c0_39, %c32], %59 {strides = array<i32>} : memref<128x64xf32, #tpu.memory_space<vmem>>, vector<128x32xf32>,
    %c0_40 = arith.constant 0 : index
    %c0_41 = arith.constant 0 : index
    %61 = vector.load %arg17[%c0_40, %c0_41] : memref<128x64xf32, #tpu.memory_space<vmem>>, vector<128x64xf32>
    %c0_42 = arith.constant 0 : index
    %c0_43 = arith.constant 0 : index
    %c0_44 = arith.constant 0 : index
    %62 = vector.load %arg14[%c0_42, %c0_43, %c0_44] : memref<1x128x64xf32, #tpu.memory_space<vmem>>, vector<1x128x64xf32>
    %63 = vector.shape_cast %62 : vector<1x128x64xf32> to vector<128x64xf32>
    %64 = vector.shape_cast %61 : vector<128x64xf32> to vector<1x128x64xf32>
    tpu.vector_store %arg14[%c0_42, %c0_43, %c0_44], %64 {strides = array<i32>} : memref<1x128x64xf32, #tpu.memory_space<vmem>>, vector<1x128x64xf32>,
    return
  }
  func.func @transform_0(%arg0: i32, %arg1: i32) -> (i32, i32, i32) {
    %c0_i32 = arith.constant 0 : i32
    %c0_i32_0 = arith.constant 0 : i32
    return %arg0, %arg1, %c0_i32 : i32, i32, i32
  }
  func.func @transform_1(%arg0: i32, %arg1: i32) -> (i32, i32, i32) {
    %c0_i32 = arith.constant 0 : i32
    %c0_i32_0 = arith.constant 0 : i32
    %c0_i32_1 = arith.constant 0 : i32
    return %arg0, %c0_i32, %c0_i32_0 : i32, i32, i32
  }
  func.func @transform_2(%arg0: i32, %arg1: i32) -> (i32, i32) {
    %c0_i32 = arith.constant 0 : i32
    %c0_i32_0 = arith.constant 0 : i32
    %c0_i32_1 = arith.constant 0 : i32
    return %c0_i32, %c0_i32_0 : i32, i32
  }
  func.func @transform_3(%arg0: i32, %arg1: i32) -> (i32, i32) {
    %c0_i32 = arith.constant 0 : i32
    %c0_i32_0 = arith.constant 0 : i32
    %c0_i32_1 = arith.constant 0 : i32
    return %c0_i32, %c0_i32_0 : i32, i32
  }
  func.func @transform_4(%arg0: i32, %arg1: i32) -> (i32, i32) {
    %c0_i32 = arith.constant 0 : i32
    %c0_i32_0 = arith.constant 0 : i32
    %c0_i32_1 = arith.constant 0 : i32
    return %c0_i32, %c0_i32_0 : i32, i32
  }
  func.func @transform_5(%arg0: i32, %arg1: i32) -> (i32, i32) {
    %c0_i32 = arith.constant 0 : i32
    %c0_i32_0 = arith.constant 0 : i32
    %c0_i32_1 = arith.constant 0 : i32
    return %c0_i32, %c0_i32_0 : i32, i32
  }
  func.func @transform_6(%arg0: i32, %arg1: i32) -> (i32, i32, i32) {
    %c0_i32 = arith.constant 0 : i32
    %c0_i32_0 = arith.constant 0 : i32
    %c0_i32_1 = arith.constant 0 : i32
    %c0_i32_2 = arith.constant 0 : i32
    return %c0_i32, %c0_i32_0, %c0_i32_1 : i32, i32, i32
  }
  func.func @transform_7(%arg0: i32, %arg1: i32) -> (i32, i32, i32) {
    %c0_i32 = arith.constant 0 : i32
    %c0_i32_0 = arith.constant 0 : i32
    %c0_i32_1 = arith.constant 0 : i32
    %c0_i32_2 = arith.constant 0 : i32
    return %c0_i32, %c0_i32_0, %c0_i32_1 : i32, i32, i32
  }
  func.func @transform_8(%arg0: i32, %arg1: i32) -> (i32, i32, i32) {
    %c0_i32 = arith.constant 0 : i32
    %c0_i32_0 = arith.constant 0 : i32
    %c0_i32_1 = arith.constant 0 : i32
    %c0_i32_2 = arith.constant 0 : i32
    return %c0_i32, %c0_i32_0, %c0_i32_1 : i32, i32, i32
  }
  func.func @transform_9(%arg0: i32, %arg1: i32) -> (i32, i32, i32) {
    %c0_i32 = arith.constant 0 : i32
    %c0_i32_0 = arith.constant 0 : i32
    %c0_i32_1 = arith.constant 0 : i32
    %c0_i32_2 = arith.constant 0 : i32
    return %c0_i32, %c0_i32_0, %c0_i32_1 : i32, i32, i32
  }
  func.func @transform_10(%arg0: i32, %arg1: i32) -> (i32, i32, i32) {
    %c0_i32 = arith.constant 0 : i32
    %c0_i32_0 = arith.constant 0 : i32
    %c0_i32_1 = arith.constant 0 : i32
    %c0_i32_2 = arith.constant 0 : i32
    return %c0_i32, %c0_i32_0, %c0_i32_1 : i32, i32, i32
  }
  func.func @transform_11(%arg0: i32, %arg1: i32) -> (i32, i32, i32) {
    %c0_i32 = arith.constant 0 : i32
    %c0_i32_0 = arith.constant 0 : i32
    %c0_i32_1 = arith.constant 0 : i32
    %c0_i32_2 = arith.constant 0 : i32
    return %c0_i32, %c0_i32_0, %c0_i32_1 : i32, i32, i32
  }
  func.func @transform_12(%arg0: i32, %arg1: i32) -> (i32, i32, i32) {
    %c0_i32 = arith.constant 0 : i32
    %c0_i32_0 = arith.constant 0 : i32
    return %arg0, %arg1, %c0_i32 : i32, i32, i32
  }
}

</mosaic_0001>

<llo_original>
// kernel: tpu_custom_call.1
$region0: #{tpu_custom_call.1}
  #allocation0 [shape = 'u32[]', space=smem, size = 0x4, offset = 0x4, fixed_abs, tag = 'smem constant byte address 0x4 - core index']
  #allocation1 [shape = 'u32[144,128]{1,0:T(1,128)}', space=vmem, size = 0x12000, scoped, tag = 'internal scratch']
  #allocation2 [shape = 'bf16[2,16,32]{2,1,0:T(16,128)(2,1)}', space=vmem, size = 0x2000, scoped, tag = 'scratch operand']
  #allocation3 [shape = 'bf16[2,16,32]{2,1,0:T(16,128)(2,1)}', space=vmem, size = 0x2000, scoped, tag = 'scratch operand']
  #allocation4 [shape = 'f32[128,64]{1,0:T(8,128)}', space=vmem, size = 0x10000, scoped, tag = 'scratch operand']
  %s0 = inlined_call_operand.vmem [shape: bf16[2,256,64], index: 0, kind: input, shape index: {}]
  %s1 = inlined_call_operand.vmem [shape: bf16[2,16,1024], index: 1, kind: input, shape index: {}]
  %s2 = inlined_call_operand.vmem [shape: bf16[1024,64], index: 2, kind: input, shape index: {}]
  %s3 = inlined_call_operand.vmem [shape: f32[1,64], index: 3, kind: input, shape index: {}]
  %s4 = inlined_call_operand.vmem [shape: f32[1,64], index: 4, kind: input, shape index: {}]
  %s5 = inlined_call_operand.vmem [shape: f32[1,64], index: 5, kind: input, shape index: {}]
  %s6 = inlined_call_operand.vmem [shape: bf16[2,64,32], index: 6, kind: input, shape index: {}]
  %s7 = inlined_call_operand.vmem [shape: f32[2,1,32], index: 7, kind: input, shape index: {}]
  %s8 = inlined_call_operand.vmem [shape: bf16[2,64,32], index: 8, kind: input, shape index: {}]
  %s9 = inlined_call_operand.vmem [shape: f32[2,1,32], index: 9, kind: input, shape index: {}]
  %s10 = inlined_call_operand.vmem [shape: bf16[2,64,32], index: 10, kind: input, shape index: {}]
  %s11 = inlined_call_operand.vmem [shape: f32[2,1,32], index: 11, kind: input, shape index: {}]
  %s12 = inlined_call_operand.vmem [shape: f32[2,256,64], index: 12, kind: output, shape index: {}]
  %s13 = sld [smem:[#allocation0]]
  $region85: #{tpu_custom_call.1} parent=0
    _
  %s15 = ssub.s32 1, %s13
  %s16 = scalar_select 0, %s15, %s13
  loop: start=0, step=1, limit=6
  $region2: #{tpu_custom_call.1} parent=0 // loop_pre_header
    _
  $region3: #{tpu_custom_call.1} parent=0 // loop_header
    %s18 = sphi 0, %s22
    %p19 = scmp.ge.s32.totalorder %s18, 6
    %s25 = sphi 0, %s37
    %s26 = sphi 0, %s33
    %s27 = sphi 0, %s25
    %s28 = sphi 0, %s26
    %s29 = sphi 0, %s27
    %s30 = sphi 0, %s28
    %s42 = sphi 0, %s44
    %s45 = sphi 0, %s42
    %s46 = sphi 0, %s45
    %s62 = sphi 0, %s46
    %s68 = sphi 0, %s70
    %s71 = sphi 0, %s68
    %s72 = sphi 0, %s71
    %s88 = sphi 0, %s72
    %s92 = sphi 0, %s92
    %s94 = sphi 0, %s92
    %s95 = sphi 0, %s94
    %s109 = sphi 0, %s95
    %s113 = sphi 0, %s113
    %s115 = sphi 0, %s113
    %s116 = sphi 0, %s115
    %s130 = sphi 0, %s116
    %s134 = sphi 0, %s134
    %s136 = sphi 0, %s134
    %s137 = sphi 0, %s136
    %s151 = sphi 0, %s137
    %s155 = sphi 0, %s155
    %s157 = sphi 0, %s155
    %s158 = sphi 0, %s157
    %s172 = sphi 0, %s158
    %s176 = sphi 0, %s176
    %s178 = sphi 0, %s176
    %s179 = sphi 0, %s178
    %s193 = sphi 0, %s179
    %s197 = sphi 0, %s197
    %s199 = sphi 0, %s197
    %s200 = sphi 0, %s199
    %s214 = sphi 0, %s200
    %s218 = sphi 0, %s218
    %s220 = sphi 0, %s218
    %s221 = sphi 0, %s220
    %s235 = sphi 0, %s221
    %s239 = sphi 0, %s239
    %s241 = sphi 0, %s239
    %s242 = sphi 0, %s241
    %s256 = sphi 0, %s242
    %s260 = sphi 0, %s260
    %s262 = sphi 0, %s260
    %s263 = sphi 0, %s262
    %s277 = sphi 0, %s263
    %s281 = sphi 0, %s281
    %s283 = sphi 0, %s281
    %s284 = sphi 0, %s283
    %s298 = sphi 0, %s284
    %s306 = sphi 0, %s308
    %s309 = sphi 0, %s306
    %s310 = sphi 0, %s309
    %s326 = sphi 0, %s310
  $region4: #{tpu_custom_call.1} parent=0 // loop_header_branch
    %21 = sbr.rel (%p19) target = $region8
  $region5: #{tpu_custom_call.1} parent=0 // loop_body
    %s23 = ssub.s32 %s18, 1
    %s24 = ssub.s32 %s18, 2
    %s31 = sadd.s32 1, %s26
    %p32 = scmp.ge.s32.totalorder %s31, 2
    %s33 = scalar_select %p32, 0, %s31
    %s34 = sadd.s32 1, %s25
    %s35 = scalar_select %p32, %s34, %s25
    %p36 = scmp.ge.s32.totalorder %s35, 2
    %s37 = scalar_select %p36, 0, %s35
    %s38 = ssub.s32 %s25, %s37
    %s39 = ssub.s32 %s26, %s33
    %s40 = sor.u32 %s38, %s39
    %p41 = scmp.eq.s32.totalorder %s40, 0
    %s43 = sadd.s32 %s42, 1
    %s44 = scalar_select %p41, %s42, %s43
    %p47 = pneg %p41
    %p48 = scmp.eq.s32.totalorder %s18, 3
    %p49 = por %p47, %p48
    %p50 = scmp.ne.s32.totalorder %s42, %s45
    %p51 = scmp.eq.s32.totalorder %s18, 0
    %p52 = por %p50, %p51
    %p53 = scmp.ne.s32.totalorder %s42, %s45
    %p54 = scmp.eq.s32.totalorder %s23, 3
    %p55 = por %p53, %p54
    %p56 = scmp.ne.s32.totalorder %s45, %s46
    %p57 = scmp.eq.s32.totalorder %s23, 0
    %p58 = por %p56, %p57
    %p59 = scmp.ne.s32.totalorder %s45, %s46
    %p60 = scmp.eq.s32.totalorder %s24, 3
    %p61 = por %p59, %p60
    %p63 = scmp.ne.s32.totalorder %s46, %s62
    %p64 = scmp.eq.s32.totalorder %s24, 0
    %p65 = por %p63, %p64
    %s66 = ssub.s32 %s25, %s37
    %p67 = scmp.eq.s32.totalorder %s66, 0
    %s69 = sadd.s32 %s68, 1
    %s70 = scalar_select %p67, %s68, %s69
    %p73 = pneg %p67
    %p74 = scmp.eq.s32.totalorder %s18, 3
    %p75 = por %p73, %p74
    %p76 = scmp.ne.s32.totalorder %s68, %s71
    %p77 = scmp.eq.s32.totalorder %s18, 0
    %p78 = por %p76, %p77
    %p79 = scmp.ne.s32.totalorder %s68, %s71
    %p80 = scmp.eq.s32.totalorder %s23, 3
    %p81 = por %p79, %p80
    %p82 = scmp.ne.s32.totalorder %s71, %s72
    %p83 = scmp.eq.s32.totalorder %s23, 0
    %p84 = por %p82, %p83
    %p85 = scmp.ne.s32.totalorder %s71, %s72
    %p86 = scmp.eq.s32.totalorder %s24, 3
    %p87 = por %p85, %p86
    %p89 = scmp.ne.s32.totalorder %s72, %s88
    %p90 = scmp.eq.s32.totalorder %s24, 0
    %p91 = por %p89, %p90
    %s93 = sadd.s32 %s92, 1
    %p96 = scmp.eq.s32.totalorder %s18, 3
    %p97 = scmp.ne.s32.totalorder %s92, %s94
    %p98 = scmp.eq.s32.totalorder %s18, 0
    %p99 = por %p97, %p98
    %p100 = scmp.ne.s32.totalorder %s92, %s94
    %p101 = scmp.eq.s32.totalorder %s23, 3
    %p102 = por %p100, %p101
    %p103 = scmp.ne.s32.totalorder %s94, %s95
    %p104 = scmp.eq.s32.totalorder %s23, 0
    %p105 = por %p103, %p104
    %p106 = scmp.ne.s32.totalorder %s94, %s95
    %p107 = scmp.eq.s32.totalorder %s24, 3
    %p108 = por %p106, %p107
    %p110 = scmp.ne.s32.totalorder %s95, %s109
    %p111 = scmp.eq.s32.totalorder %s24, 0
    %p112 = por %p110, %p111
    %s114 = sadd.s32 %s113, 1
    %p117 = scmp.eq.s32.totalorder %s18, 3
    %p118 = scmp.ne.s32.totalorder %s113, %s115
    %p119 = scmp.eq.s32.totalorder %s18, 0
    %p120 = por %p118, %p119
    %p121 = scmp.ne.s32.totalorder %s113, %s115
    %p122 = scmp.eq.s32.totalorder %s23, 3
    %p123 = por %p121, %p122
    %p124 = scmp.ne.s32.totalorder %s115, %s116
    %p125 = scmp.eq.s32.totalorder %s23, 0
    %p126 = por %p124, %p125
    %p127 = scmp.ne.s32.totalorder %s115, %s116
    %p128 = scmp.eq.s32.totalorder %s24, 3
    %p129 = por %p127, %p128
    %p131 = scmp.ne.s32.totalorder %s116, %s130
    %p132 = scmp.eq.s32.totalorder %s24, 0
    %p133 = por %p131, %p132
    %s135 = sadd.s32 %s134, 1
    %p138 = scmp.eq.s32.totalorder %s18, 3
    %p139 = scmp.ne.s32.totalorder %s134, %s136
    %p140 = scmp.eq.s32.totalorder %s18, 0
    %p141 = por %p139, %p140
    %p142 = scmp.ne.s32.totalorder %s134, %s136
    %p143 = scmp.eq.s32.totalorder %s23, 3
    %p144 = por %p142, %p143
    %p145 = scmp.ne.s32.totalorder %s136, %s137
    %p146 = scmp.eq.s32.totalorder %s23, 0
    %p147 = por %p145, %p146
    %p148 = scmp.ne.s32.totalorder %s136, %s137
    %p149 = scmp.eq.s32.totalorder %s24, 3
    %p150 = por %p148, %p149
    %p152 = scmp.ne.s32.totalorder %s137, %s151
    %p153 = scmp.eq.s32.totalorder %s24, 0
    %p154 = por %p152, %p153
    %s156 = sadd.s32 %s155, 1
    %p159 = scmp.eq.s32.totalorder %s18, 3
    %p160 = scmp.ne.s32.totalorder %s155, %s157
    %p161 = scmp.eq.s32.totalorder %s18, 0
    %p162 = por %p160, %p161
    %p163 = scmp.ne.s32.totalorder %s155, %s157
    %p164 = scmp.eq.s32.totalorder %s23, 3
    %p165 = por %p163, %p164
    %p166 = scmp.ne.s32.totalorder %s157, %s158
    %p167 = scmp.eq.s32.totalorder %s23, 0
    %p168 = por %p166, %p167
    %p169 = scmp.ne.s32.totalorder %s157, %s158
    %p170 = scmp.eq.s32.totalorder %s24, 3
    %p171 = por %p169, %p170
    %p173 = scmp.ne.s32.totalorder %s158, %s172
    %p174 = scmp.eq.s32.totalorder %s24, 0
    %p175 = por %p173, %p174
    %s177 = sadd.s32 %s176, 1
    %p180 = scmp.eq.s32.totalorder %s18, 3
    %p181 = scmp.ne.s32.totalorder %s176, %s178
    %p182 = scmp.eq.s32.totalorder %s18, 0
    %p183 = por %p181, %p182
    %p184 = scmp.ne.s32.totalorder %s176, %s178
    %p185 = scmp.eq.s32.totalorder %s23, 3
    %p186 = por %p184, %p185
    %p187 = scmp.ne.s32.totalorder %s178, %s179
    %p188 = scmp.eq.s32.totalorder %s23, 0
    %p189 = por %p187, %p188
    %p190 = scmp.ne.s32.totalorder %s178, %s179
    %p191 = scmp.eq.s32.totalorder %s24, 3
    %p192 = por %p190, %p191
    %p194 = scmp.ne.s32.totalorder %s179, %s193
    %p195 = scmp.eq.s32.totalorder %s24, 0
    %p196 = por %p194, %p195
    %s198 = sadd.s32 %s197, 1
    %p201 = scmp.eq.s32.totalorder %s18, 3
    %p202 = scmp.ne.s32.totalorder %s197, %s199
    %p203 = scmp.eq.s32.totalorder %s18, 0
    %p204 = por %p202, %p203
    %p205 = scmp.ne.s32.totalorder %s197, %s199
    %p206 = scmp.eq.s32.totalorder %s23, 3
    %p207 = por %p205, %p206
    %p208 = scmp.ne.s32.totalorder %s199, %s200
    %p209 = scmp.eq.s32.totalorder %s23, 0
    %p210 = por %p208, %p209
    %p211 = scmp.ne.s32.totalorder %s199, %s200
    %p212 = scmp.eq.s32.totalorder %s24, 3
    %p213 = por %p211, %p212
    %p215 = scmp.ne.s32.totalorder %s200, %s214
    %p216 = scmp.eq.s32.totalorder %s24, 0
    %p217 = por %p215, %p216
    %s219 = sadd.s32 %s218, 1
    %p222 = scmp.eq.s32.totalorder %s18, 3
    %p223 = scmp.ne.s32.totalorder %s218, %s220
    %p224 = scmp.eq.s32.totalorder %s18, 0
    %p225 = por %p223, %p224
    %p226 = scmp.ne.s32.totalorder %s218, %s220
    %p227 = scmp.eq.s32.totalorder %s23, 3
    %p228 = por %p226, %p227
    %p229 = scmp.ne.s32.totalorder %s220, %s221
    %p230 = scmp.eq.s32.totalorder %s23, 0
    %p231 = por %p229, %p230
    %p232 = scmp.ne.s32.totalorder %s220, %s221
    %p233 = scmp.eq.s32.totalorder %s24, 3
    %p234 = por %p232, %p233
    %p236 = scmp.ne.s32.totalorder %s221, %s235
    %p237 = scmp.eq.s32.totalorder %s24, 0
    %p238 = por %p236, %p237
    %s240 = sadd.s32 %s239, 1
    %p243 = scmp.eq.s32.totalorder %s18, 3
    %p244 = scmp.ne.s32.totalorder %s239, %s241
    %p245 = scmp.eq.s32.totalorder %s18, 0
    %p246 = por %p244, %p245
    %p247 = scmp.ne.s32.totalorder %s239, %s241
    %p248 = scmp.eq.s32.totalorder %s23, 3
    %p249 = por %p247, %p248
    %p250 = scmp.ne.s32.totalorder %s241, %s242
    %p251 = scmp.eq.s32.totalorder %s23, 0
    %p252 = por %p250, %p251
    %p253 = scmp.ne.s32.totalorder %s241, %s242
    %p254 = scmp.eq.s32.totalorder %s24, 3
    %p255 = por %p253, %p254
    %p257 = scmp.ne.s32.totalorder %s242, %s256
    %p258 = scmp.eq.s32.totalorder %s24, 0
    %p259 = por %p257, %p258
    %s261 = sadd.s32 %s260, 1
    %p264 = scmp.eq.s32.totalorder %s18, 3
    %p265 = scmp.ne.s32.totalorder %s260, %s262
    %p266 = scmp.eq.s32.totalorder %s18, 0
    %p267 = por %p265, %p266
    %p268 = scmp.ne.s32.totalorder %s260, %s262
    %p269 = scmp.eq.s32.totalorder %s23, 3
    %p270 = por %p268, %p269
    %p271 = scmp.ne.s32.totalorder %s262, %s263
    %p272 = scmp.eq.s32.totalorder %s23, 0
    %p273 = por %p271, %p272
    %p274 = scmp.ne.s32.totalorder %s262, %s263
    %p275 = scmp.eq.s32.totalorder %s24, 3
    %p276 = por %p274, %p275
    %p278 = scmp.ne.s32.totalorder %s263, %s277
    %p279 = scmp.eq.s32.totalorder %s24, 0
    %p280 = por %p278, %p279
    %s282 = sadd.s32 %s281, 1
    %p285 = scmp.eq.s32.totalorder %s18, 3
    %p286 = scmp.ne.s32.totalorder %s281, %s283
    %p287 = scmp.eq.s32.totalorder %s18, 0
    %p288 = por %p286, %p287
    %p289 = scmp.ne.s32.totalorder %s281, %s283
    %p290 = scmp.eq.s32.totalorder %s23, 3
    %p291 = por %p289, %p290
    %p292 = scmp.ne.s32.totalorder %s283, %s284
    %p293 = scmp.eq.s32.totalorder %s23, 0
    %p294 = por %p292, %p293
    %p295 = scmp.ne.s32.totalorder %s283, %s284
    %p296 = scmp.eq.s32.totalorder %s24, 3
    %p297 = por %p295, %p296
    %p299 = scmp.ne.s32.totalorder %s284, %s298
    %p300 = scmp.eq.s32.totalorder %s24, 0
    %p301 = por %p299, %p300
    %s302 = ssub.s32 %s25, %s37
    %s303 = ssub.s32 %s26, %s33
    %s304 = sor.u32 %s302, %s303
    %p305 = scmp.eq.s32.totalorder %s304, 0
    %s307 = sadd.s32 %s306, 1
    %s308 = scalar_select %p305, %s306, %s307
    %p311 = pneg %p305
    %p312 = scmp.eq.s32.totalorder %s18, 3
    %p313 = por %p311, %p312
    %p314 = scmp.ne.s32.totalorder %s306, %s309
    %p315 = scmp.eq.s32.totalorder %s18, 0
    %p316 = por %p314, %p315
    %p317 = scmp.ne.s32.totalorder %s306, %s309
    %p318 = scmp.eq.s32.totalorder %s23, 3
    %p319 = por %p317, %p318
    %p320 = scmp.ne.s32.totalorder %s309, %s310
    %p321 = scmp.eq.s32.totalorder %s23, 0
    %p322 = por %p320, %p321
    %p323 = scmp.ne.s32.totalorder %s309, %s310
    %p324 = scmp.eq.s32.totalorder %s24, 3
    %p325 = por %p323, %p324
    %p327 = scmp.ne.s32.totalorder %s310, %s326
    %p328 = scmp.eq.s32.totalorder %s24, 0
    %p329 = por %p327, %p328
    %p330 = scmp.le.s32.totalorder 1, %s18
    %p331 = scmp.lt.s32.totalorder %s18, 5
    %p332 = pnand %p330, %p331
    %p333 = pneg %p332
    // Predicated region
    $region9: #{tpu_custom_call.1} parent=5 // pred_check
      _
    $region10: #{tpu_custom_call.1} parent=5 // pred_check_branch
      %335 = sbr.rel (%p332) target = $region12
    $region11: #{tpu_custom_call.1} parent=5 // pred_region
      %s336 = ssub.s32 %s18, 1
      // Predicated region
      $region13: #{tpu_custom_call.1} parent=11 // pred_check
        %p337 = pneg %p105
      $region14: #{tpu_custom_call.1} parent=11 // pred_check_branch
        %339 = sbr.rel (%p337) target = $region16
      $region15: #{tpu_custom_call.1} parent=11 // pred_region
        _
      $region16: #{tpu_custom_call.1} parent=11 // pred_fallthru
        _
      // Predicated region
      $region17: #{tpu_custom_call.1} parent=11 // pred_check
        %p340 = pneg %p126
      $region18: #{tpu_custom_call.1} parent=11 // pred_check_branch
        %342 = sbr.rel (%p340) target = $region20
      $region19: #{tpu_custom_call.1} parent=11 // pred_region
        _
      $region20: #{tpu_custom_call.1} parent=11 // pred_fallthru
        _
      // Predicated region
      $region21: #{tpu_custom_call.1} parent=11 // pred_check
        %p343 = pneg %p147
      $region22: #{tpu_custom_call.1} parent=11 // pred_check_branch
        %345 = sbr.rel (%p343) target = $region24
      $region23: #{tpu_custom_call.1} parent=11 // pred_region
        _
      $region24: #{tpu_custom_call.1} parent=11 // pred_fallthru
        _
      // Predicated region
      $region25: #{tpu_custom_call.1} parent=11 // pred_check
        %p346 = pneg %p168
      $region26: #{tpu_custom_call.1} parent=11 // pred_check_branch
        %348 = sbr.rel (%p346) target = $region28
      $region27: #{tpu_custom_call.1} parent=11 // pred_region
        _
      $region28: #{tpu_custom_call.1} parent=11 // pred_fallthru
        _
      // Predicated region
      $region29: #{tpu_custom_call.1} parent=11 // pred_check
        %p349 = pneg %p189
      $region30: #{tpu_custom_call.1} parent=11 // pred_check_branch
        %351 = sbr.rel (%p349) target = $region32
      $region31: #{tpu_custom_call.1} parent=11 // pred_region
        _
      $region32: #{tpu_custom_call.1} parent=11 // pred_fallthru
        _
      // Predicated region
      $region33: #{tpu_custom_call.1} parent=11 // pred_check
        %p352 = pneg %p210
      $region34: #{tpu_custom_call.1} parent=11 // pred_check_branch
        %354 = sbr.rel (%p352) target = $region36
      $region35: #{tpu_custom_call.1} parent=11 // pred_region
        _
      $region36: #{tpu_custom_call.1} parent=11 // pred_fallthru
        _
      // Predicated region
      $region37: #{tpu_custom_call.1} parent=11 // pred_check
        %p355 = pneg %p231
      $region38: #{tpu_custom_call.1} parent=11 // pred_check_branch
        %357 = sbr.rel (%p355) target = $region40
      $region39: #{tpu_custom_call.1} parent=11 // pred_region
        _
      $region40: #{tpu_custom_call.1} parent=11 // pred_fallthru
        _
      // Predicated region
      $region41: #{tpu_custom_call.1} parent=11 // pred_check
        %p358 = pneg %p252
      $region42: #{tpu_custom_call.1} parent=11 // pred_check_branch
        %360 = sbr.rel (%p358) target = $region44
      $region43: #{tpu_custom_call.1} parent=11 // pred_region
        _
      $region44: #{tpu_custom_call.1} parent=11 // pred_fallthru
        _
      // Predicated region
      $region45: #{tpu_custom_call.1} parent=11 // pred_check
        %p361 = pneg %p273
      $region46: #{tpu_custom_call.1} parent=11 // pred_check_branch
        %363 = sbr.rel (%p361) target = $region48
      $region47: #{tpu_custom_call.1} parent=11 // pred_region
        _
      $region48: #{tpu_custom_call.1} parent=11 // pred_fallthru
        _
      // Predicated region
      $region49: #{tpu_custom_call.1} parent=11 // pred_check
        %p364 = pneg %p294
      $region50: #{tpu_custom_call.1} parent=11 // pred_check_branch
        %366 = sbr.rel (%p364) target = $region52
      $region51: #{tpu_custom_call.1} parent=11 // pred_region
        _
      $region52: #{tpu_custom_call.1} parent=11 // pred_fallthru
        _
    $region12: #{tpu_custom_call.1} parent=5 // pred_fallthru
      _
    %p367 = scmp.lt.s32.totalorder %s18, 4
    // Predicated region
    $region53: #{tpu_custom_call.1} parent=5 // pred_check
      %p368 = pneg %p367
    $region54: #{tpu_custom_call.1} parent=5 // pred_check_branch
      %370 = sbr.rel (%p368) target = $region56
    $region55: #{tpu_custom_call.1} parent=5 // pred_region
      // Predicated region
      $region57: #{tpu_custom_call.1} parent=55 // pred_check
        %p371 = pneg %p52
      $region58: #{tpu_custom_call.1} parent=55 // pred_check_branch
        %373 = sbr.rel (%p371) target = $region60
      $region59: #{tpu_custom_call.1} parent=55 // pred_region
        %s374 = smul.u32 16, %s26
        %p375 = scmp.lt.s32.totalorder %s25, 1
        %s376 = scalar_select %p375, %s25, 1
        %p377 = scmp.lt.s32.totalorder %s374, 31
        %s378 = scalar_select %p377, %s374, 31
        %s379 = smul.addr %s376, 32
        %s380 = sadd.s32 %s378, %s379
        %s381 = smul.addr %s380, 4
        %s382 = scalar_lea.vmem %s0, %s381
        %s383 = smul.u32 16, %s26
      $region60: #{tpu_custom_call.1} parent=55 // pred_fallthru
        _
      // Predicated region
      $region61: #{tpu_custom_call.1} parent=55 // pred_check
        %p384 = pneg %p78
      $region62: #{tpu_custom_call.1} parent=55 // pred_check_branch
        %386 = sbr.rel (%p384) target = $region64
      $region63: #{tpu_custom_call.1} parent=55 // pred_region
        %p387 = scmp.lt.s32.totalorder %s25, 1
        %s388 = scalar_select %p387, %s25, 1
        %s389 = smul.addr %s388, 16
        %s390 = smul.addr %s389, 4
        %s391 = scalar_lea.vmem %s1, %s390
      $region64: #{tpu_custom_call.1} parent=55 // pred_fallthru
        _
    $region56: #{tpu_custom_call.1} parent=5 // pred_fallthru
      _
    %p392 = scmp.le.s32.totalorder 1, %s18
    %p393 = scmp.lt.s32.totalorder %s18, 5
    %p394 = pnand %p392, %p393
    %p395 = pneg %p394
    // Predicated region
    $region65: #{tpu_custom_call.1} parent=5 // pred_check
      _
    $region66: #{tpu_custom_call.1} parent=5 // pred_check_branch
      %397 = sbr.rel (%p394) target = $region68
    $region67: #{tpu_custom_call.1} parent=5 // pred_region
      %s398 = ssub.s32 %s18, 1
      %s399 = smul.u32 16, %s28
      %p400 = scmp.lt.s32.totalorder %s27, 1
      %s401 = scalar_select %p400, %s27, 1
      %p402 = scmp.lt.s32.totalorder %s399, 31
      %s403 = scalar_select %p402, %s399, 31
      %s404 = smul.addr %s401, 32
      %s405 = sadd.s32 %s403, %s404
      %s406 = smul.addr %s405, 4
      %s407 = scalar_lea.vmem %s0, %s406
      %p408 = pneg %p58
      %p409 = pneg %p55
      %p410 = scmp.lt.s32.totalorder %s27, 1
      %s411 = scalar_select %p410, %s27, 1
      %s412 = smul.addr %s411, 16
      %s413 = smul.addr %s412, 4
      %s414 = scalar_lea.vmem %s1, %s413
      %p415 = pneg %p84
      %p416 = pneg %p81
      %p417 = pneg %p105
      %p418 = pneg %p102
      %p419 = pneg %p126
      %p420 = pneg %p123
      %p421 = pneg %p147
      %p422 = pneg %p144
      %p423 = pneg %p168
      %p424 = pneg %p165
      %p425 = pneg %p189
      %p426 = pneg %p186
      %p427 = pneg %p210
      %p428 = pneg %p207
      %p429 = pneg %p231
      %p430 = pneg %p228
      %p431 = pneg %p252
      %p432 = pneg %p249
      %p433 = pneg %p273
      %p434 = pneg %p270
      %p435 = pneg %p294
      %p436 = pneg %p291
      %p437 = pneg %p322
      %p438 = pneg %p319
      %s439 = smul.u32 16, %s28
      %p440 = scmp.lt.s32.totalorder %s27, 1
      %s441 = scalar_select %p440, %s27, 1
      %p442 = scmp.lt.s32.totalorder %s439, 31
      %s443 = scalar_select %p442, %s439, 31
      %s444 = smul.addr %s441, 32
      %s445 = sadd.s32 %s443, %s444
      %s446 = smul.addr %s445, 8
      %s447 = scalar_lea.vmem %s12, %s446
      %s448 = smul.u32 16, %s28
      %p449 = scmp.lt.s32.totalorder %s27, 1
      %s450 = scalar_select %p449, %s27, 1
      %p451 = scmp.lt.s32.totalorder %s448, 31
      %s452 = scalar_select %p451, %s448, 31
      %s453 = smul.addr %s450, 32
      %s454 = sadd.s32 %s452, %s453
      %s455 = smul.addr %s454, 4
      %s456 = scalar_lea.vmem %s0, %s455
      %s457 = smul.u32 16, %s28
      %p458 = scmp.lt.s32.totalorder %s27, 1
      %s459 = scalar_select %p458, %s27, 1
      %s460 = smul.addr %s459, 16
      %s461 = smul.addr %s460, 4
      %s462 = scalar_lea.vmem %s1, %s461
      %s463 = smul.u32 16, %s28
      %p464 = scmp.lt.s32.totalorder %s27, 1
      %s465 = scalar_select %p464, %s27, 1
      %p466 = scmp.lt.s32.totalorder %s463, 31
      %s467 = scalar_select %p466, %s463, 31
      %s468 = smul.addr %s465, 32
      %s469 = sadd.s32 %s467, %s468
      %s470 = smul.addr %s469, 8
      %s471 = scalar_lea.vmem %s12, %s470
      %s472 = smul.u32 16, %s28
      %p474 = scmp.eq.s32.totalorder %s28, 0
      // Predicated region
      $region69: #{tpu_custom_call.1} parent=67 // pred_check
        %p475 = pneg %p474
      $region70: #{tpu_custom_call.1} parent=67 // pred_check_branch
        %477 = sbr.rel (%p475) target = $region72
      $region71: #{tpu_custom_call.1} parent=67 // pred_region
        %v478 = vld [vmem:[%s462] sm:$0xff]
        %v479 = vld [vmem:[%s462 + $0x8] sm:$0xff]
        %v480 = vld [vmem:[%s462 + $0x10] sm:$0xff]
        %v481 = vld [vmem:[%s462 + $0x18] sm:$0xff]
        %v482 = vld [vmem:[%s462 + $0x20] sm:$0xff]
        %v483 = vld [vmem:[%s462 + $0x28] sm:$0xff]
        %v484 = vld [vmem:[%s462 + $0x30] sm:$0xff]
        %v485 = vld [vmem:[%s462 + $0x38] sm:$0xff]
        %v486 = vld [vmem:[%s2] sm:$0xf]
        %v487 = vld [vmem:[%s2 + $0x4] sm:$0xf]
        %v488 = vld [vmem:[%s2 + $0x8] sm:$0xf]
        %v489 = vld [vmem:[%s2 + $0xc] sm:$0xf]
        %v490 = vld [vmem:[%s2 + $0x10] sm:$0xf]
        %v491 = vld [vmem:[%s2 + $0x14] sm:$0xf]
        %v492 = vld [vmem:[%s2 + $0x18] sm:$0xf]
        %v493 = vld [vmem:[%s2 + $0x1c] sm:$0xf]
        %v494 = vld [vmem:[%s2 + $0x20] sm:$0xf]
        %v495 = vld [vmem:[%s2 + $0x24] sm:$0xf]
        %v496 = vld [vmem:[%s2 + $0x28] sm:$0xf]
        %v497 = vld [vmem:[%s2 + $0x2c] sm:$0xf]
        %v498 = vld [vmem:[%s2 + $0x30] sm:$0xf]
        %v499 = vld [vmem:[%s2 + $0x34] sm:$0xf]
        %v500 = vld [vmem:[%s2 + $0x38] sm:$0xf]
        %v501 = vld [vmem:[%s2 + $0x3c] sm:$0xf]
        %v502 = vld [vmem:[%s2 + $0x40] sm:$0xf]
        %v503 = vld [vmem:[%s2 + $0x44] sm:$0xf]
        %v504 = vld [vmem:[%s2 + $0x48] sm:$0xf]
        %v505 = vld [vmem:[%s2 + $0x4c] sm:$0xf]
        %v506 = vld [vmem:[%s2 + $0x50] sm:$0xf]
        %v507 = vld [vmem:[%s2 + $0x54] sm:$0xf]
        %v508 = vld [vmem:[%s2 + $0x58] sm:$0xf]
        %v509 = vld [vmem:[%s2 + $0x5c] sm:$0xf]
        %v510 = vld [vmem:[%s2 + $0x60] sm:$0xf]
        %v511 = vld [vmem:[%s2 + $0x64] sm:$0xf]
        %v512 = vld [vmem:[%s2 + $0x68] sm:$0xf]
        %v513 = vld [vmem:[%s2 + $0x6c] sm:$0xf]
        %v514 = vld [vmem:[%s2 + $0x70] sm:$0xf]
        %v515 = vld [vmem:[%s2 + $0x74] sm:$0xf]
        %v516 = vld [vmem:[%s2 + $0x78] sm:$0xf]
        %v517 = vld [vmem:[%s2 + $0x7c] sm:$0xf]
        %v518 = vld [vmem:[%s2 + $0x80] sm:$0xf]
        %v519 = vld [vmem:[%s2 + $0x84] sm:$0xf]
        %v520 = vld [vmem:[%s2 + $0x88] sm:$0xf]
        %v521 = vld [vmem:[%s2 + $0x8c] sm:$0xf]
        %v522 = vld [vmem:[%s2 + $0x90] sm:$0xf]
        %v523 = vld [vmem:[%s2 + $0x94] sm:$0xf]
        %v524 = vld [vmem:[%s2 + $0x98] sm:$0xf]
        %v525 = vld [vmem:[%s2 + $0x9c] sm:$0xf]
        %v526 = vld [vmem:[%s2 + $0xa0] sm:$0xf]
        %v527 = vld [vmem:[%s2 + $0xa4] sm:$0xf]
        %v528 = vld [vmem:[%s2 + $0xa8] sm:$0xf]
        %v529 = vld [vmem:[%s2 + $0xac] sm:$0xf]
        %v530 = vld [vmem:[%s2 + $0xb0] sm:$0xf]
        %v531 = vld [vmem:[%s2 + $0xb4] sm:$0xf]
        %v532 = vld [vmem:[%s2 + $0xb8] sm:$0xf]
        %v533 = vld [vmem:[%s2 + $0xbc] sm:$0xf]
        %v534 = vld [vmem:[%s2 + $0xc0] sm:$0xf]
        %v535 = vld [vmem:[%s2 + $0xc4] sm:$0xf]
        %v536 = vld [vmem:[%s2 + $0xc8] sm:$0xf]
        %v537 = vld [vmem:[%s2 + $0xcc] sm:$0xf]
        %v538 = vld [vmem:[%s2 + $0xd0] sm:$0xf]
        %v539 = vld [vmem:[%s2 + $0xd4] sm:$0xf]
        %v540 = vld [vmem:[%s2 + $0xd8] sm:$0xf]
        %v541 = vld [vmem:[%s2 + $0xdc] sm:$0xf]
        %v542 = vld [vmem:[%s2 + $0xe0] sm:$0xf]
        %v543 = vld [vmem:[%s2 + $0xe4] sm:$0xf]
        %v544 = vld [vmem:[%s2 + $0xe8] sm:$0xf]
        %v545 = vld [vmem:[%s2 + $0xec] sm:$0xf]
        %v546 = vld [vmem:[%s2 + $0xf0] sm:$0xf]
        %v547 = vld [vmem:[%s2 + $0xf4] sm:$0xf]
        %v548 = vld [vmem:[%s2 + $0xf8] sm:$0xf]
        %v549 = vld [vmem:[%s2 + $0xfc] sm:$0xf]
        %v550 = vld [vmem:[%s2 + $0x100] sm:$0xf]
        %v551 = vld [vmem:[%s2 + $0x104] sm:$0xf]
        %v552 = vld [vmem:[%s2 + $0x108] sm:$0xf]
        %v553 = vld [vmem:[%s2 + $0x10c] sm:$0xf]
        %v554 = vld [vmem:[%s2 + $0x110] sm:$0xf]
        %v555 = vld [vmem:[%s2 + $0x114] sm:$0xf]
        %v556 = vld [vmem:[%s2 + $0x118] sm:$0xf]
        %v557 = vld [vmem:[%s2 + $0x11c] sm:$0xf]
        %v558 = vld [vmem:[%s2 + $0x120] sm:$0xf]
        %v559 = vld [vmem:[%s2 + $0x124] sm:$0xf]
        %v560 = vld [vmem:[%s2 + $0x128] sm:$0xf]
        %v561 = vld [vmem:[%s2 + $0x12c] sm:$0xf]
        %v562 = vld [vmem:[%s2 + $0x130] sm:$0xf]
        %v563 = vld [vmem:[%s2 + $0x134] sm:$0xf]
        %v564 = vld [vmem:[%s2 + $0x138] sm:$0xf]
        %v565 = vld [vmem:[%s2 + $0x13c] sm:$0xf]
        %v566 = vld [vmem:[%s2 + $0x140] sm:$0xf]
        %v567 = vld [vmem:[%s2 + $0x144] sm:$0xf]
        %v568 = vld [vmem:[%s2 + $0x148] sm:$0xf]
        %v569 = vld [vmem:[%s2 + $0x14c] sm:$0xf]
        %v570 = vld [vmem:[%s2 + $0x150] sm:$0xf]
        %v571 = vld [vmem:[%s2 + $0x154] sm:$0xf]
        %v572 = vld [vmem:[%s2 + $0x158] sm:$0xf]
        %v573 = vld [vmem:[%s2 + $0x15c] sm:$0xf]
        %v574 = vld [vmem:[%s2 + $0x160] sm:$0xf]
        %v575 = vld [vmem:[%s2 + $0x164] sm:$0xf]
        %v576 = vld [vmem:[%s2 + $0x168] sm:$0xf]
        %v577 = vld [vmem:[%s2 + $0x16c] sm:$0xf]
        %v578 = vld [vmem:[%s2 + $0x170] sm:$0xf]
        %v579 = vld [vmem:[%s2 + $0x174] sm:$0xf]
        %v580 = vld [vmem:[%s2 + $0x178] sm:$0xf]
        %v581 = vld [vmem:[%s2 + $0x17c] sm:$0xf]
        %v582 = vld [vmem:[%s2 + $0x180] sm:$0xf]
        %v583 = vld [vmem:[%s2 + $0x184] sm:$0xf]
        %v584 = vld [vmem:[%s2 + $0x188] sm:$0xf]
        %v585 = vld [vmem:[%s2 + $0x18c] sm:$0xf]
        %v586 = vld [vmem:[%s2 + $0x190] sm:$0xf]
        %v587 = vld [vmem:[%s2 + $0x194] sm:$0xf]
        %v588 = vld [vmem:[%s2 + $0x198] sm:$0xf]
        %v589 = vld [vmem:[%s2 + $0x19c] sm:$0xf]
        %v590 = vld [vmem:[%s2 + $0x1a0] sm:$0xf]
        %v591 = vld [vmem:[%s2 + $0x1a4] sm:$0xf]
        %v592 = vld [vmem:[%s2 + $0x1a8] sm:$0xf]
        %v593 = vld [vmem:[%s2 + $0x1ac] sm:$0xf]
        %v594 = vld [vmem:[%s2 + $0x1b0] sm:$0xf]
        %v595 = vld [vmem:[%s2 + $0x1b4] sm:$0xf]
        %v596 = vld [vmem:[%s2 + $0x1b8] sm:$0xf]
        %v597 = vld [vmem:[%s2 + $0x1bc] sm:$0xf]
        %v598 = vld [vmem:[%s2 + $0x1c0] sm:$0xf]
        %v599 = vld [vmem:[%s2 + $0x1c4] sm:$0xf]
        %v600 = vld [vmem:[%s2 + $0x1c8] sm:$0xf]
        %v601 = vld [vmem:[%s2 + $0x1cc] sm:$0xf]
        %v602 = vld [vmem:[%s2 + $0x1d0] sm:$0xf]
        %v603 = vld [vmem:[%s2 + $0x1d4] sm:$0xf]
        %v604 = vld [vmem:[%s2 + $0x1d8] sm:$0xf]
        %v605 = vld [vmem:[%s2 + $0x1dc] sm:$0xf]
        %v606 = vld [vmem:[%s2 + $0x1e0] sm:$0xf]
        %v607 = vld [vmem:[%s2 + $0x1e4] sm:$0xf]
        %v608 = vld [vmem:[%s2 + $0x1e8] sm:$0xf]
        %v609 = vld [vmem:[%s2 + $0x1ec] sm:$0xf]
        %v610 = vld [vmem:[%s2 + $0x1f0] sm:$0xf]
        %v611 = vld [vmem:[%s2 + $0x1f4] sm:$0xf]
        %v612 = vld [vmem:[%s2 + $0x1f8] sm:$0xf]
        %v613 = vld [vmem:[%s2 + $0x1fc] sm:$0xf]
        %v614 = vld [vmem:[%s3] sm:$0x1]
        %v616 = vlaneseq
        %v617 = vshrl.u32 %v616, 7
        %v618 = vsub.s32 0, %v617
        %v619 = vrot.slane %v614, %v618
        %v629 = vunpack.c.l.b16 %v478
        %v630 = vunpack.c.h.b16 %v478
        %v631 = vunpack.c.l.b16 %v479
        %v632 = vunpack.c.h.b16 %v479
        %v633 = vunpack.c.l.b16 %v480
        %v634 = vunpack.c.h.b16 %v480
        %v635 = vunpack.c.l.b16 %v481
        %v636 = vunpack.c.h.b16 %v481
        %v637 = vunpack.c.l.b16 %v482
        %v638 = vunpack.c.h.b16 %v482
        %v639 = vunpack.c.l.b16 %v483
        %v640 = vunpack.c.h.b16 %v483
        %v641 = vunpack.c.l.b16 %v484
        %v642 = vunpack.c.h.b16 %v484
        %v643 = vunpack.c.l.b16 %v485
        %v644 = vunpack.c.h.b16 %v485
        %v645 = vpack.c.b16 %v637, %v629
        %v646 = vpack.c.b16 %v638, %v630
        %v647 = vpack.c.b16 %v639, %v631
        %v648 = vpack.c.b16 %v640, %v632
        %v649 = vpack.c.b16 %v641, %v633
        %v650 = vpack.c.b16 %v642, %v634
        %v651 = vpack.c.b16 %v643, %v635
        %v652 = vpack.c.b16 %v644, %v636
        %v789 = vunpack.c.l.b16 %v486
        %v790 = vunpack.c.l.b16 %v487
        %v791 = vunpack.c.l.b16 %v488
        %v792 = vunpack.c.l.b16 %v489
        %v793 = vunpack.c.l.b16 %v490
        %v794 = vunpack.c.l.b16 %v491
        %v795 = vunpack.c.l.b16 %v492
        %v796 = vunpack.c.l.b16 %v493
        %v797 = vunpack.c.l.b16 %v494
        %v798 = vunpack.c.l.b16 %v495
        %v799 = vunpack.c.l.b16 %v496
        %v800 = vunpack.c.l.b16 %v497
        %v801 = vunpack.c.l.b16 %v498
        %v802 = vunpack.c.l.b16 %v499
        %v803 = vunpack.c.l.b16 %v500
        %v804 = vunpack.c.l.b16 %v501
        %v805 = vunpack.c.l.b16 %v502
        %v806 = vunpack.c.l.b16 %v503
        %v807 = vunpack.c.l.b16 %v504
        %v808 = vunpack.c.l.b16 %v505
        %v809 = vunpack.c.l.b16 %v506
        %v810 = vunpack.c.l.b16 %v507
        %v811 = vunpack.c.l.b16 %v508
        %v812 = vunpack.c.l.b16 %v509
        %v813 = vunpack.c.l.b16 %v510
        %v814 = vunpack.c.l.b16 %v511
        %v815 = vunpack.c.l.b16 %v512
        %v816 = vunpack.c.l.b16 %v513
        %v817 = vunpack.c.l.b16 %v514
        %v818 = vunpack.c.l.b16 %v515
        %v819 = vunpack.c.l.b16 %v516
        %v820 = vunpack.c.l.b16 %v517
        %v821 = vunpack.c.l.b16 %v518
        %v822 = vunpack.c.l.b16 %v519
        %v823 = vunpack.c.l.b16 %v520
        %v824 = vunpack.c.l.b16 %v521
        %v825 = vunpack.c.l.b16 %v522
        %v826 = vunpack.c.l.b16 %v523
        %v827 = vunpack.c.l.b16 %v524
        %v828 = vunpack.c.l.b16 %v525
        %v829 = vunpack.c.l.b16 %v526
        %v830 = vunpack.c.l.b16 %v527
        %v831 = vunpack.c.l.b16 %v528
        %v832 = vunpack.c.l.b16 %v529
        %v833 = vunpack.c.l.b16 %v530
        %v834 = vunpack.c.l.b16 %v531
        %v835 = vunpack.c.l.b16 %v532
        %v836 = vunpack.c.l.b16 %v533
        %v837 = vunpack.c.l.b16 %v534
        %v838 = vunpack.c.l.b16 %v535
        %v839 = vunpack.c.l.b16 %v536
        %v840 = vunpack.c.l.b16 %v537
        %v841 = vunpack.c.l.b16 %v538
        %v842 = vunpack.c.l.b16 %v539
        %v843 = vunpack.c.l.b16 %v540
        %v844 = vunpack.c.l.b16 %v541
        %v845 = vunpack.c.l.b16 %v542
        %v846 = vunpack.c.l.b16 %v543
        %v847 = vunpack.c.l.b16 %v544
        %v848 = vunpack.c.l.b16 %v545
        %v849 = vunpack.c.l.b16 %v546
        %v850 = vunpack.c.l.b16 %v547
        %v851 = vunpack.c.l.b16 %v548
        %v852 = vunpack.c.l.b16 %v549
        %v853 = vunpack.c.l.b16 %v550
        %v854 = vunpack.c.l.b16 %v551
        %v855 = vunpack.c.l.b16 %v552
        %v856 = vunpack.c.l.b16 %v553
        %v857 = vunpack.c.l.b16 %v554
        %v858 = vunpack.c.l.b16 %v555
        %v859 = vunpack.c.l.b16 %v556
        %v860 = vunpack.c.l.b16 %v557
        %v861 = vunpack.c.l.b16 %v558
        %v862 = vunpack.c.l.b16 %v559
        %v863 = vunpack.c.l.b16 %v560
        %v864 = vunpack.c.l.b16 %v561
        %v865 = vunpack.c.l.b16 %v562
        %v866 = vunpack.c.l.b16 %v563
        %v867 = vunpack.c.l.b16 %v564
        %v868 = vunpack.c.l.b16 %v565
        %v869 = vunpack.c.l.b16 %v566
        %v870 = vunpack.c.l.b16 %v567
        %v871 = vunpack.c.l.b16 %v568
        %v872 = vunpack.c.l.b16 %v569
        %v873 = vunpack.c.l.b16 %v570
        %v874 = vunpack.c.l.b16 %v571
        %v875 = vunpack.c.l.b16 %v572
        %v876 = vunpack.c.l.b16 %v573
        %v877 = vunpack.c.l.b16 %v574
        %v878 = vunpack.c.l.b16 %v575
        %v879 = vunpack.c.l.b16 %v576
        %v880 = vunpack.c.l.b16 %v577
        %v881 = vunpack.c.l.b16 %v578
        %v882 = vunpack.c.l.b16 %v579
        %v883 = vunpack.c.l.b16 %v580
        %v884 = vunpack.c.l.b16 %v581
        %v885 = vunpack.c.l.b16 %v582
        %v886 = vunpack.c.l.b16 %v583
        %v887 = vunpack.c.l.b16 %v584
        %v888 = vunpack.c.l.b16 %v585
        %v889 = vunpack.c.l.b16 %v586
        %v890 = vunpack.c.l.b16 %v587
        %v891 = vunpack.c.l.b16 %v588
        %v892 = vunpack.c.l.b16 %v589
        %v893 = vunpack.c.l.b16 %v590
        %v894 = vunpack.c.l.b16 %v591
        %v895 = vunpack.c.l.b16 %v592
        %v896 = vunpack.c.l.b16 %v593
        %v897 = vunpack.c.l.b16 %v594
        %v898 = vunpack.c.l.b16 %v595
        %v899 = vunpack.c.l.b16 %v596
        %v900 = vunpack.c.l.b16 %v597
        %v901 = vunpack.c.l.b16 %v598
        %v902 = vunpack.c.l.b16 %v599
        %v903 = vunpack.c.l.b16 %v600
        %v904 = vunpack.c.l.b16 %v601
        %v905 = vunpack.c.l.b16 %v602
        %v906 = vunpack.c.l.b16 %v603
        %v907 = vunpack.c.l.b16 %v604
        %v908 = vunpack.c.l.b16 %v605
        %v909 = vunpack.c.l.b16 %v606
        %v910 = vunpack.c.l.b16 %v607
        %v911 = vunpack.c.l.b16 %v608
        %v912 = vunpack.c.l.b16 %v609
        %v913 = vunpack.c.l.b16 %v610
        %v914 = vunpack.c.l.b16 %v611
        %v915 = vunpack.c.l.b16 %v612
        %v916 = vunpack.c.l.b16 %v613
        %v917 = vpack.c.b16 %v790, %v789
        %v918 = vpack.c.b16 %v792, %v791
        %v919 = vpack.c.b16 %v794, %v793
        %v920 = vpack.c.b16 %v796, %v795
        %v921 = vpack.c.b16 %v798, %v797
        %v922 = vpack.c.b16 %v800, %v799
        %v923 = vpack.c.b16 %v802, %v801
        %v924 = vpack.c.b16 %v804, %v803
        %v925 = vpack.c.b16 %v806, %v805
        %v926 = vpack.c.b16 %v808, %v807
        %v927 = vpack.c.b16 %v810, %v809
        %v928 = vpack.c.b16 %v812, %v811
        %v929 = vpack.c.b16 %v814, %v813
        %v930 = vpack.c.b16 %v816, %v815
        %v931 = vpack.c.b16 %v818, %v817
        %v932 = vpack.c.b16 %v820, %v819
        %v933 = vpack.c.b16 %v822, %v821
        %v934 = vpack.c.b16 %v824, %v823
        %v935 = vpack.c.b16 %v826, %v825
        %v936 = vpack.c.b16 %v828, %v827
        %v937 = vpack.c.b16 %v830, %v829
        %v938 = vpack.c.b16 %v832, %v831
        %v939 = vpack.c.b16 %v834, %v833
        %v940 = vpack.c.b16 %v836, %v835
        %v941 = vpack.c.b16 %v838, %v837
        %v942 = vpack.c.b16 %v840, %v839
        %v943 = vpack.c.b16 %v842, %v841
        %v944 = vpack.c.b16 %v844, %v843
        %v945 = vpack.c.b16 %v846, %v845
        %v946 = vpack.c.b16 %v848, %v847
        %v947 = vpack.c.b16 %v850, %v849
        %v948 = vpack.c.b16 %v852, %v851
        %v949 = vpack.c.b16 %v854, %v853
        %v950 = vpack.c.b16 %v856, %v855
        %v951 = vpack.c.b16 %v858, %v857
        %v952 = vpack.c.b16 %v860, %v859
        %v953 = vpack.c.b16 %v862, %v861
        %v954 = vpack.c.b16 %v864, %v863
        %v955 = vpack.c.b16 %v866, %v865
        %v956 = vpack.c.b16 %v868, %v867
        %v957 = vpack.c.b16 %v870, %v869
        %v958 = vpack.c.b16 %v872, %v871
        %v959 = vpack.c.b16 %v874, %v873
        %v960 = vpack.c.b16 %v876, %v875
        %v961 = vpack.c.b16 %v878, %v877
        %v962 = vpack.c.b16 %v880, %v879
        %v963 = vpack.c.b16 %v882, %v881
        %v964 = vpack.c.b16 %v884, %v883
        %v965 = vpack.c.b16 %v886, %v885
        %v966 = vpack.c.b16 %v888, %v887
        %v967 = vpack.c.b16 %v890, %v889
        %v968 = vpack.c.b16 %v892, %v891
        %v969 = vpack.c.b16 %v894, %v893
        %v970 = vpack.c.b16 %v896, %v895
        %v971 = vpack.c.b16 %v898, %v897
        %v972 = vpack.c.b16 %v900, %v899
        %v973 = vpack.c.b16 %v902, %v901
        %v974 = vpack.c.b16 %v904, %v903
        %v975 = vpack.c.b16 %v906, %v905
        %v976 = vpack.c.b16 %v908, %v907
        %v977 = vpack.c.b16 %v910, %v909
        %v978 = vpack.c.b16 %v912, %v911
        %v979 = vpack.c.b16 %v914, %v913
        %v980 = vpack.c.b16 %v916, %v915
        %1045 = vmatprep.subr.bf16.mxu0 0
        %1046 = vmatpush1.bf16.msra.mxu0 %v917
        %1047 = vmatprep.subr.bf16.mxu0 0
        %1048 = vmatpush1.bf16.msra.mxu0 %v918
        %1049 = vmatprep.subr.bf16.mxu0 0
        %1050 = vmatpush1.bf16.msra.mxu0 %v919
        %1051 = vmatprep.subr.bf16.mxu0 0
        %1052 = vmatpush1.bf16.msra.mxu0 %v920
        %1053 = vmatprep.subr.bf16.mxu0 0
        %1054 = vmatpush1.bf16.msra.mxu0 %v921
        %1055 = vmatprep.subr.bf16.mxu0 0
        %1056 = vmatpush1.bf16.msra.mxu0 %v922
        %1057 = vmatprep.subr.bf16.mxu0 0
        %1058 = vmatpush1.bf16.msra.mxu0 %v923
        %1059 = vmatprep.subr.bf16.mxu0 0
        %1060 = vmatpush1.bf16.msra.mxu0 %v924
        %1061 = vmatprep.subr.bf16.mxu0 0
        %1062 = vmatpush1.bf16.msra.mxu0 %v925
        %1063 = vmatprep.subr.bf16.mxu0 0
        %1064 = vmatpush1.bf16.msra.mxu0 %v926
        %1065 = vmatprep.subr.bf16.mxu0 0
        %1066 = vmatpush1.bf16.msra.mxu0 %v927
        %1067 = vmatprep.subr.bf16.mxu0 0
        %1068 = vmatpush1.bf16.msra.mxu0 %v928
        %1069 = vmatprep.subr.bf16.mxu0 0
        %1070 = vmatpush1.bf16.msra.mxu0 %v929
        %1071 = vmatprep.subr.bf16.mxu0 0
        %1072 = vmatpush1.bf16.msra.mxu0 %v930
        %1073 = vmatprep.subr.bf16.mxu0 0
        %1074 = vmatpush1.bf16.msra.mxu0 %v931
        %1075 = vmatprep.subr.bf16.mxu0 0
        %1076 = vmatpush1.bf16.msra.mxu0 %v932
        %1077 = vmatprep.mubr.bf16.mxu0 %v646
        %1078 = vmatmul.mubr.bf16.gmra.mrb[0].mxu0 %v645
        %v1079 = vpop.f32.mrb[0].mxu0
        %v1080 = vadd.f32 %v619, %v1079
        %v1081 = vpop.f32.mrb[0].mxu0
        %v1082 = vpop.f32.mrb[0].mxu0
        %v1083 = vadd.f32 %v619, %v1082
        %v1084 = vpop.f32.mrb[0].mxu0
        %1085 = vdwg.mxu0
        %1086 = vmatprep.subr.bf16.mxu0 0
        %1087 = vmatpush1.bf16.msra.mxu0 %v933
        %1088 = vmatprep.subr.bf16.mxu0 0
        %1089 = vmatpush1.bf16.msra.mxu0 %v934
        %1090 = vmatprep.subr.bf16.mxu0 0
        %1091 = vmatpush1.bf16.msra.mxu0 %v935
        %1092 = vmatprep.subr.bf16.mxu0 0
        %1093 = vmatpush1.bf16.msra.mxu0 %v936
        %1094 = vmatprep.subr.bf16.mxu0 0
        %1095 = vmatpush1.bf16.msra.mxu0 %v937
        %1096 = vmatprep.subr.bf16.mxu0 0
        %1097 = vmatpush1.bf16.msra.mxu0 %v938
        %1098 = vmatprep.subr.bf16.mxu0 0
        %1099 = vmatpush1.bf16.msra.mxu0 %v939
        %1100 = vmatprep.subr.bf16.mxu0 0
        %1101 = vmatpush1.bf16.msra.mxu0 %v940
        %1102 = vmatprep.subr.bf16.mxu0 0
        %1103 = vmatpush1.bf16.msra.mxu0 %v941
        %1104 = vmatprep.subr.bf16.mxu0 0
        %1105 = vmatpush1.bf16.msra.mxu0 %v942
        %1106 = vmatprep.subr.bf16.mxu0 0
        %1107 = vmatpush1.bf16.msra.mxu0 %v943
        %1108 = vmatprep.subr.bf16.mxu0 0
        %1109 = vmatpush1.bf16.msra.mxu0 %v944
        %1110 = vmatprep.subr.bf16.mxu0 0
        %1111 = vmatpush1.bf16.msra.mxu0 %v945
        %1112 = vmatprep.subr.bf16.mxu0 0
        %1113 = vmatpush1.bf16.msra.mxu0 %v946
        %1114 = vmatprep.subr.bf16.mxu0 0
        %1115 = vmatpush1.bf16.msra.mxu0 %v947
        %1116 = vmatprep.subr.bf16.mxu0 0
        %1117 = vmatpush1.bf16.msra.mxu0 %v948
        %1118 = vmatprep.mubr.bf16.mxu0 %v648
        %1119 = vmatmul.mubr.bf16.gmra.mrb[0].mxu0 %v647
        %v1120 = vpop.f32.mrb[0].mxu0
        %v1121 = vadd.f32 %v1080, %v1120
        %v1122 = vpop.f32.mrb[0].mxu0
        %v1123 = vpop.f32.mrb[0].mxu0
        %v1124 = vadd.f32 %v1083, %v1123
        %v1125 = vpop.f32.mrb[0].mxu0
        %1126 = vdwg.mxu0
        %1127 = vmatprep.subr.bf16.mxu0 0
        %1128 = vmatpush1.bf16.msra.mxu0 %v949
        %1129 = vmatprep.subr.bf16.mxu0 0
        %1130 = vmatpush1.bf16.msra.mxu0 %v950
        %1131 = vmatprep.subr.bf16.mxu0 0
        %1132 = vmatpush1.bf16.msra.mxu0 %v951
        %1133 = vmatprep.subr.bf16.mxu0 0
        %1134 = vmatpush1.bf16.msra.mxu0 %v952
        %1135 = vmatprep.subr.bf16.mxu0 0
        %1136 = vmatpush1.bf16.msra.mxu0 %v953
        %1137 = vmatprep.subr.bf16.mxu0 0
        %1138 = vmatpush1.bf16.msra.mxu0 %v954
        %1139 = vmatprep.subr.bf16.mxu0 0
        %1140 = vmatpush1.bf16.msra.mxu0 %v955
        %1141 = vmatprep.subr.bf16.mxu0 0
        %1142 = vmatpush1.bf16.msra.mxu0 %v956
        %1143 = vmatprep.subr.bf16.mxu0 0
        %1144 = vmatpush1.bf16.msra.mxu0 %v957
        %1145 = vmatprep.subr.bf16.mxu0 0
        %1146 = vmatpush1.bf16.msra.mxu0 %v958
        %1147 = vmatprep.subr.bf16.mxu0 0
        %1148 = vmatpush1.bf16.msra.mxu0 %v959
        %1149 = vmatprep.subr.bf16.mxu0 0
        %1150 = vmatpush1.bf16.msra.mxu0 %v960
        %1151 = vmatprep.subr.bf16.mxu0 0
        %1152 = vmatpush1.bf16.msra.mxu0 %v961
        %1153 = vmatprep.subr.bf16.mxu0 0
        %1154 = vmatpush1.bf16.msra.mxu0 %v962
        %1155 = vmatprep.subr.bf16.mxu0 0
        %1156 = vmatpush1.bf16.msra.mxu0 %v963
        %1157 = vmatprep.subr.bf16.mxu0 0
        %1158 = vmatpush1.bf16.msra.mxu0 %v964
        %1159 = vmatprep.mubr.bf16.mxu0 %v650
        %1160 = vmatmul.mubr.bf16.gmra.mrb[0].mxu0 %v649
        %v1161 = vpop.f32.mrb[0].mxu0
        %v1162 = vadd.f32 %v1121, %v1161
        %v1163 = vpop.f32.mrb[0].mxu0
        %v1164 = vpop.f32.mrb[0].mxu0
        %v1165 = vadd.f32 %v1124, %v1164
        %v1166 = vpop.f32.mrb[0].mxu0
        %1167 = vdwg.mxu0
        %1168 = vmatprep.subr.bf16.mxu0 0
        %1169 = vmatpush1.bf16.msra.mxu0 %v965
        %1170 = vmatprep.subr.bf16.mxu0 0
        %1171 = vmatpush1.bf16.msra.mxu0 %v966
        %1172 = vmatprep.subr.bf16.mxu0 0
        %1173 = vmatpush1.bf16.msra.mxu0 %v967
        %1174 = vmatprep.subr.bf16.mxu0 0
        %1175 = vmatpush1.bf16.msra.mxu0 %v968
        %1176 = vmatprep.subr.bf16.mxu0 0
        %1177 = vmatpush1.bf16.msra.mxu0 %v969
        %1178 = vmatprep.subr.bf16.mxu0 0
        %1179 = vmatpush1.bf16.msra.mxu0 %v970
        %1180 = vmatprep.subr.bf16.mxu0 0
        %1181 = vmatpush1.bf16.msra.mxu0 %v971
        %1182 = vmatprep.subr.bf16.mxu0 0
        %1183 = vmatpush1.bf16.msra.mxu0 %v972
        %1184 = vmatprep.subr.bf16.mxu0 0
        %1185 = vmatpush1.bf16.msra.mxu0 %v973
        %1186 = vmatprep.subr.bf16.mxu0 0
        %1187 = vmatpush1.bf16.msra.mxu0 %v974
        %1188 = vmatprep.subr.bf16.mxu0 0
        %1189 = vmatpush1.bf16.msra.mxu0 %v975
        %1190 = vmatprep.subr.bf16.mxu0 0
        %1191 = vmatpush1.bf16.msra.mxu0 %v976
        %1192 = vmatprep.subr.bf16.mxu0 0
        %1193 = vmatpush1.bf16.msra.mxu0 %v977
        %1194 = vmatprep.subr.bf16.mxu0 0
        %1195 = vmatpush1.bf16.msra.mxu0 %v978
        %1196 = vmatprep.subr.bf16.mxu0 0
        %1197 = vmatpush1.bf16.msra.mxu0 %v979
        %1198 = vmatprep.subr.bf16.mxu0 0
        %1199 = vmatpush1.bf16.msra.mxu0 %v980
        %1200 = vmatprep.mubr.bf16.mxu0 %v652
        %1201 = vmatmul.mubr.bf16.gmra.mrb[0].mxu0 %v651
        %v1202 = vpop.f32.mrb[0].mxu0
        %v1203 = vadd.f32 %v1162, %v1202
        %v1204 = vpop.f32.mrb[0].mxu0
        %v1205 = vpop.f32.mrb[0].mxu0
        %v1206 = vadd.f32 %v1165, %v1205
        %v1207 = vpop.f32.mrb[0].mxu0
        %1208 = vdwg.mxu0
        %vm1209 = vcmask 523264
        %v1210 = vsel %vm1209, %v1203, 0.0
        %1211 = vadd.xlane.f32.xlu0 %v1210
        %v1212 = vpop.xlane.xlu0 %1211
        %v1213 = vsel %vm1209, %v1206, 0.0
        %1214 = vadd.xlane.f32.xlu0 %v1213
        %v1215 = vpop.xlane.xlu0 %1214
        %v1216 = vrcp.pop 64.0
        %v1217 = vmul.f32 %v1212, %v1216
        %v1218 = vmul.f32 %v1215, %v1216
        %v1219 = vsub.f32 %v1203, %v1217
        %v1220 = vsub.f32 %v1206, %v1218
        %v1221 = vmul.f32 %v1219, %v1219
        %v1222 = vmul.f32 %v1220, %v1220
        %v1223 = vsel %vm1209, %v1221, 0.0
        %1224 = vadd.xlane.f32.xlu0 %v1223
        %v1225 = vpop.xlane.xlu0 %1224
        %v1226 = vsel %vm1209, %v1222, 0.0
        %1227 = vadd.xlane.f32.xlu0 %v1226
        %v1228 = vpop.xlane.xlu0 %1227
        %v1229 = vmul.f32 %v1225, %v1216
        %v1230 = vmul.f32 %v1228, %v1216
        %v1231 = vadd.f32 %v1229, 1e-05
        %v1232 = vadd.f32 %v1230, 1e-05
        %v1233 = vrsqrt.pop %v1231
        %v1234 = vrsqrt.pop %v1232
        %v1235 = vmul.f32 %v1219, %v1233
        %v1236 = vmul.f32 %v1220, %v1234
        %v1237 = vld [vmem:[%s4] sm:$0x1]
        %v1239 = vlaneseq
        %v1240 = vshrl.u32 %v1239, 7
        %v1241 = vsub.s32 0, %v1240
        %v1242 = vrot.slane %v1237, %v1241
        %v1244 = vmul.f32 %v1235, %v1242
        %v1245 = vmul.f32 %v1236, %v1242
        %v1246 = vld [vmem:[%s5] sm:$0x1]
        %v1248 = vlaneseq
        %v1249 = vshrl.u32 %v1248, 7
        %v1250 = vsub.s32 0, %v1249
        %v1251 = vrot.slane %v1246, %v1250
        %v1253 = vadd.f32 %v1244, %v1251
        %v1254 = vadd.f32 %v1245, %v1251
        %v1255 = vpack.c.bf16 %v1254, %v1253
        %v1256 = vld [vmem:[%s8] sm:$0xf]
        %v1257 = vld [vmem:[%s8 + $0x4] sm:$0xf]
        %v1258 = vld [vmem:[%s8 + $0x8] sm:$0xf]
        %v1259 = vld [vmem:[%s8 + $0xc] sm:$0xf]
        %v1260 = vld [vmem:[%s8 + $0x10] sm:$0xf]
        %v1261 = vld [vmem:[%s8 + $0x14] sm:$0xf]
        %v1262 = vld [vmem:[%s8 + $0x18] sm:$0xf]
        %v1263 = vld [vmem:[%s8 + $0x1c] sm:$0xf]
        %v1264 = vld [vmem:[%s9] sm:$0x1]
        %v1266 = vlaneseq
        %v1267 = vshrl.u32 %v1266, 7
        %v1268 = vsub.s32 0, %v1267
        %v1269 = vrot.slane %v1264, %v1268
        %v1279 = vunpack.c.l.b16 %v1256
        %v1280 = vunpack.c.l.b16 %v1257
        %v1281 = vunpack.c.l.b16 %v1258
        %v1282 = vunpack.c.l.b16 %v1259
        %v1283 = vunpack.c.l.b16 %v1260
        %v1284 = vunpack.c.l.b16 %v1261
        %v1285 = vunpack.c.l.b16 %v1262
        %v1286 = vunpack.c.l.b16 %v1263
        %v1287 = vpack.c.b16 %v1280, %v1279
        %v1288 = vpack.c.b16 %v1282, %v1281
        %v1289 = vpack.c.b16 %v1284, %v1283
        %v1290 = vpack.c.b16 %v1286, %v1285
        %v1296 = vsel %vm1209, %v1255, 0
        %1298 = vmatprep.subr.bf16.mxu0 0
        %1299 = vmatpush1.bf16.msra.mxu0 %v1287
        %1300 = vmatprep.subr.bf16.mxu0 0
        %1301 = vmatpush1.bf16.msra.mxu0 %v1288
        %1302 = vmatprep.subr.bf16.mxu0 0
        %1303 = vmatpush1.bf16.msra.mxu0 %v1289
        %1304 = vmatprep.subr.bf16.mxu0 0
        %1305 = vmatpush1.bf16.msra.mxu0 %v1290
        %1306 = vmatprep.subr.bf16.mxu0 0
        %1307 = vmatpush1.bf16.msra.mxu0 0
        %1308 = vmatprep.subr.bf16.mxu0 0
        %1309 = vmatpush1.bf16.msra.mxu0 0
        %1310 = vmatprep.subr.bf16.mxu0 0
        %1311 = vmatpush1.bf16.msra.mxu0 0
        %1312 = vmatprep.subr.bf16.mxu0 0
        %1313 = vmatpush1.bf16.msra.mxu0 0
        %1314 = vmatprep.subr.bf16.mxu0 0
        %1315 = vmatpush1.bf16.msra.mxu0 0
        %1316 = vmatprep.subr.bf16.mxu0 0
        %1317 = vmatpush1.bf16.msra.mxu0 0
        %1318 = vmatprep.subr.bf16.mxu0 0
        %1319 = vmatpush1.bf16.msra.mxu0 0
        %1320 = vmatprep.subr.bf16.mxu0 0
        %1321 = vmatpush1.bf16.msra.mxu0 0
        %1322 = vmatprep.subr.bf16.mxu0 0
        %1323 = vmatpush1.bf16.msra.mxu0 0
        %1324 = vmatprep.subr.bf16.mxu0 0
        %1325 = vmatpush1.bf16.msra.mxu0 0
        %1326 = vmatprep.subr.bf16.mxu0 0
        %1327 = vmatpush1.bf16.msra.mxu0 0
        %1328 = vmatprep.subr.bf16.mxu0 0
        %1329 = vmatpush1.bf16.msra.mxu0 0
        %1330 = vmatprep.mubr.bf16.mxu0 0
        %1331 = vmatmul.mubr.bf16.gmra.mrb[0].mxu0 %v1296
        %v1332 = vpop.f32.mrb[0].mxu0
        %v1333 = vadd.f32 %v1269, %v1332
        %v1334 = vpop.f32.mrb[0].mxu0
        %v1335 = vpop.f32.mrb[0].mxu0
        %v1336 = vadd.f32 %v1269, %v1335
        %v1337 = vpop.f32.mrb[0].mxu0
        %1338 = vdwg.mxu0
        %v1339 = vld [vmem:[%s10] sm:$0xf]
        %v1340 = vld [vmem:[%s10 + $0x4] sm:$0xf]
        %v1341 = vld [vmem:[%s10 + $0x8] sm:$0xf]
        %v1342 = vld [vmem:[%s10 + $0xc] sm:$0xf]
        %v1343 = vld [vmem:[%s10 + $0x10] sm:$0xf]
        %v1344 = vld [vmem:[%s10 + $0x14] sm:$0xf]
        %v1345 = vld [vmem:[%s10 + $0x18] sm:$0xf]
        %v1346 = vld [vmem:[%s10 + $0x1c] sm:$0xf]
        %v1347 = vld [vmem:[%s11] sm:$0x1]
        %v1349 = vlaneseq
        %v1350 = vshrl.u32 %v1349, 7
        %v1351 = vsub.s32 0, %v1350
        %v1352 = vrot.slane %v1347, %v1351
        %v1362 = vunpack.c.l.b16 %v1339
        %v1363 = vunpack.c.l.b16 %v1340
        %v1364 = vunpack.c.l.b16 %v1341
        %v1365 = vunpack.c.l.b16 %v1342
        %v1366 = vunpack.c.l.b16 %v1343
        %v1367 = vunpack.c.l.b16 %v1344
        %v1368 = vunpack.c.l.b16 %v1345
        %v1369 = vunpack.c.l.b16 %v1346
        %v1370 = vpack.c.b16 %v1363, %v1362
        %v1371 = vpack.c.b16 %v1365, %v1364
        %v1372 = vpack.c.b16 %v1367, %v1366
        %v1373 = vpack.c.b16 %v1369, %v1368
        %1378 = vmatprep.subr.bf16.mxu0 0
        %1379 = vmatpush1.bf16.msra.mxu0 %v1370
        %1380 = vmatprep.subr.bf16.mxu0 0
        %1381 = vmatpush1.bf16.msra.mxu0 %v1371
        %1382 = vmatprep.subr.bf16.mxu0 0
        %1383 = vmatpush1.bf16.msra.mxu0 %v1372
        %1384 = vmatprep.subr.bf16.mxu0 0
        %1385 = vmatpush1.bf16.msra.mxu0 %v1373
        %1386 = vmatprep.subr.bf16.mxu0 0
        %1387 = vmatpush1.bf16.msra.mxu0 0
        %1388 = vmatprep.subr.bf16.mxu0 0
        %1389 = vmatpush1.bf16.msra.mxu0 0
        %1390 = vmatprep.subr.bf16.mxu0 0
        %1391 = vmatpush1.bf16.msra.mxu0 0
        %1392 = vmatprep.subr.bf16.mxu0 0
        %1393 = vmatpush1.bf16.msra.mxu0 0
        %1394 = vmatprep.subr.bf16.mxu0 0
        %1395 = vmatpush1.bf16.msra.mxu0 0
        %1396 = vmatprep.subr.bf16.mxu0 0
        %1397 = vmatpush1.bf16.msra.mxu0 0
        %1398 = vmatprep.subr.bf16.mxu0 0
        %1399 = vmatpush1.bf16.msra.mxu0 0
        %1400 = vmatprep.subr.bf16.mxu0 0
        %1401 = vmatpush1.bf16.msra.mxu0 0
        %1402 = vmatprep.subr.bf16.mxu0 0
        %1403 = vmatpush1.bf16.msra.mxu0 0
        %1404 = vmatprep.subr.bf16.mxu0 0
        %1405 = vmatpush1.bf16.msra.mxu0 0
        %1406 = vmatprep.subr.bf16.mxu0 0
        %1407 = vmatpush1.bf16.msra.mxu0 0
        %1408 = vmatprep.subr.bf16.mxu0 0
        %1409 = vmatpush1.bf16.msra.mxu0 0
        %1410 = vmatprep.mubr.bf16.mxu0 0
        %1411 = vmatmul.mubr.bf16.gmra.mrb[0].mxu0 %v1296
        %v1412 = vpop.f32.mrb[0].mxu0
        %v1413 = vadd.f32 %v1352, %v1412
        %v1414 = vpop.f32.mrb[0].mxu0
        %v1415 = vpop.f32.mrb[0].mxu0
        %v1416 = vadd.f32 %v1352, %v1415
        %v1417 = vpop.f32.mrb[0].mxu0
        %1418 = vdwg.mxu0
        %v1419 = vpack.c.bf16 %v1336, %v1333
        %vm1420 = vcmask 261120
        %1421 = vst.msk [vmem:[#allocation2] sm:$0xff] %vm1420, %v1419
        %v1422 = vpack.c.bf16 %v1416, %v1413
        %1423 = vst.msk [vmem:[#allocation3] sm:$0xff] %vm1420, %v1422
        %s1424 = scalar_lea.vmem %s8, 32
        %v1425 = vld [vmem:[%s1424] sm:$0xf]
        %v1426 = vld [vmem:[%s1424 + $0x4] sm:$0xf]
        %v1427 = vld [vmem:[%s1424 + $0x8] sm:$0xf]
        %v1428 = vld [vmem:[%s1424 + $0xc] sm:$0xf]
        %v1429 = vld [vmem:[%s1424 + $0x10] sm:$0xf]
        %v1430 = vld [vmem:[%s1424 + $0x14] sm:$0xf]
        %v1431 = vld [vmem:[%s1424 + $0x18] sm:$0xf]
        %v1432 = vld [vmem:[%s1424 + $0x1c] sm:$0xf]
        %s1433 = scalar_lea.vmem %s9, 1
        %v1434 = vld [vmem:[%s1433] sm:$0x1]
        %v1436 = vlaneseq
        %v1437 = vshrl.u32 %v1436, 7
        %v1438 = vsub.s32 0, %v1437
        %v1439 = vrot.slane %v1434, %v1438
        %v1449 = vunpack.c.l.b16 %v1425
        %v1450 = vunpack.c.l.b16 %v1426
        %v1451 = vunpack.c.l.b16 %v1427
        %v1452 = vunpack.c.l.b16 %v1428
        %v1453 = vunpack.c.l.b16 %v1429
        %v1454 = vunpack.c.l.b16 %v1430
        %v1455 = vunpack.c.l.b16 %v1431
        %v1456 = vunpack.c.l.b16 %v1432
        %v1457 = vpack.c.b16 %v1450, %v1449
        %v1458 = vpack.c.b16 %v1452, %v1451
        %v1459 = vpack.c.b16 %v1454, %v1453
        %v1460 = vpack.c.b16 %v1456, %v1455
        %1465 = vmatprep.subr.bf16.mxu0 0
        %1466 = vmatpush1.bf16.msra.mxu0 %v1457
        %1467 = vmatprep.subr.bf16.mxu0 0
        %1468 = vmatpush1.bf16.msra.mxu0 %v1458
        %1469 = vmatprep.subr.bf16.mxu0 0
        %1470 = vmatpush1.bf16.msra.mxu0 %v1459
        %1471 = vmatprep.subr.bf16.mxu0 0
        %1472 = vmatpush1.bf16.msra.mxu0 %v1460
        %1473 = vmatprep.subr.bf16.mxu0 0
        %1474 = vmatpush1.bf16.msra.mxu0 0
        %1475 = vmatprep.subr.bf16.mxu0 0
        %1476 = vmatpush1.bf16.msra.mxu0 0
        %1477 = vmatprep.subr.bf16.mxu0 0
        %1478 = vmatpush1.bf16.msra.mxu0 0
        %1479 = vmatprep.subr.bf16.mxu0 0
        %1480 = vmatpush1.bf16.msra.mxu0 0
        %1481 = vmatprep.subr.bf16.mxu0 0
        %1482 = vmatpush1.bf16.msra.mxu0 0
        %1483 = vmatprep.subr.bf16.mxu0 0
        %1484 = vmatpush1.bf16.msra.mxu0 0
        %1485 = vmatprep.subr.bf16.mxu0 0
        %1486 = vmatpush1.bf16.msra.mxu0 0
        %1487 = vmatprep.subr.bf16.mxu0 0
        %1488 = vmatpush1.bf16.msra.mxu0 0
        %1489 = vmatprep.subr.bf16.mxu0 0
        %1490 = vmatpush1.bf16.msra.mxu0 0
        %1491 = vmatprep.subr.bf16.mxu0 0
        %1492 = vmatpush1.bf16.msra.mxu0 0
        %1493 = vmatprep.subr.bf16.mxu0 0
        %1494 = vmatpush1.bf16.msra.mxu0 0
        %1495 = vmatprep.subr.bf16.mxu0 0
        %1496 = vmatpush1.bf16.msra.mxu0 0
        %1497 = vmatprep.mubr.bf16.mxu0 0
        %1498 = vmatmul.mubr.bf16.gmra.mrb[0].mxu0 %v1296
        %v1499 = vpop.f32.mrb[0].mxu0
        %v1500 = vadd.f32 %v1439, %v1499
        %v1501 = vpop.f32.mrb[0].mxu0
        %v1502 = vpop.f32.mrb[0].mxu0
        %v1503 = vadd.f32 %v1439, %v1502
        %v1504 = vpop.f32.mrb[0].mxu0
        %1505 = vdwg.mxu0
        %s1506 = scalar_lea.vmem %s10, 32
        %v1507 = vld [vmem:[%s1506] sm:$0xf]
        %v1508 = vld [vmem:[%s1506 + $0x4] sm:$0xf]
        %v1509 = vld [vmem:[%s1506 + $0x8] sm:$0xf]
        %v1510 = vld [vmem:[%s1506 + $0xc] sm:$0xf]
        %v1511 = vld [vmem:[%s1506 + $0x10] sm:$0xf]
        %v1512 = vld [vmem:[%s1506 + $0x14] sm:$0xf]
        %v1513 = vld [vmem:[%s1506 + $0x18] sm:$0xf]
        %v1514 = vld [vmem:[%s1506 + $0x1c] sm:$0xf]
        %s1515 = scalar_lea.vmem %s11, 1
        %v1516 = vld [vmem:[%s1515] sm:$0x1]
        %v1518 = vlaneseq
        %v1519 = vshrl.u32 %v1518, 7
        %v1520 = vsub.s32 0, %v1519
        %v1521 = vrot.slane %v1516, %v1520
        %v1531 = vunpack.c.l.b16 %v1507
        %v1532 = vunpack.c.l.b16 %v1508
        %v1533 = vunpack.c.l.b16 %v1509
        %v1534 = vunpack.c.l.b16 %v1510
        %v1535 = vunpack.c.l.b16 %v1511
        %v1536 = vunpack.c.l.b16 %v1512
        %v1537 = vunpack.c.l.b16 %v1513
        %v1538 = vunpack.c.l.b16 %v1514
        %v1539 = vpack.c.b16 %v1532, %v1531
        %v1540 = vpack.c.b16 %v1534, %v1533
        %v1541 = vpack.c.b16 %v1536, %v1535
        %v1542 = vpack.c.b16 %v1538, %v1537
        %1547 = vmatprep.subr.bf16.mxu0 0
        %1548 = vmatpush1.bf16.msra.mxu0 %v1539
        %1549 = vmatprep.subr.bf16.mxu0 0
        %1550 = vmatpush1.bf16.msra.mxu0 %v1540
        %1551 = vmatprep.subr.bf16.mxu0 0
        %1552 = vmatpush1.bf16.msra.mxu0 %v1541
        %1553 = vmatprep.subr.bf16.mxu0 0
        %1554 = vmatpush1.bf16.msra.mxu0 %v1542
        %1555 = vmatprep.subr.bf16.mxu0 0
        %1556 = vmatpush1.bf16.msra.mxu0 0
        %1557 = vmatprep.subr.bf16.mxu0 0
        %1558 = vmatpush1.bf16.msra.mxu0 0
        %1559 = vmatprep.subr.bf16.mxu0 0
        %1560 = vmatpush1.bf16.msra.mxu0 0
        %1561 = vmatprep.subr.bf16.mxu0 0
        %1562 = vmatpush1.bf16.msra.mxu0 0
        %1563 = vmatprep.subr.bf16.mxu0 0
        %1564 = vmatpush1.bf16.msra.mxu0 0
        %1565 = vmatprep.subr.bf16.mxu0 0
        %1566 = vmatpush1.bf16.msra.mxu0 0
        %1567 = vmatprep.subr.bf16.mxu0 0
        %1568 = vmatpush1.bf16.msra.mxu0 0
        %1569 = vmatprep.subr.bf16.mxu0 0
        %1570 = vmatpush1.bf16.msra.mxu0 0
        %1571 = vmatprep.subr.bf16.mxu0 0
        %1572 = vmatpush1.bf16.msra.mxu0 0
        %1573 = vmatprep.subr.bf16.mxu0 0
        %1574 = vmatpush1.bf16.msra.mxu0 0
        %1575 = vmatprep.subr.bf16.mxu0 0
        %1576 = vmatpush1.bf16.msra.mxu0 0
        %1577 = vmatprep.subr.bf16.mxu0 0
        %1578 = vmatpush1.bf16.msra.mxu0 0
        %1579 = vmatprep.mubr.bf16.mxu0 0
        %1580 = vmatmul.mubr.bf16.gmra.mrb[0].mxu0 %v1296
        %v1581 = vpop.f32.mrb[0].mxu0
        %v1582 = vadd.f32 %v1521, %v1581
        %v1583 = vpop.f32.mrb[0].mxu0
        %v1584 = vpop.f32.mrb[0].mxu0
        %v1585 = vadd.f32 %v1521, %v1584
        %v1586 = vpop.f32.mrb[0].mxu0
        %1587 = vdwg.mxu0
        %v1588 = vpack.c.bf16 %v1503, %v1500
        %s1589 = scalar_lea.vmem [#allocation2], 8
        %1590 = vst.msk [vmem:[%s1589] sm:$0xff] %vm1420, %v1588
        %v1591 = vpack.c.bf16 %v1585, %v1582
        %s1592 = scalar_lea.vmem [#allocation3], 8
        %1593 = vst.msk [vmem:[%s1592] sm:$0xff] %vm1420, %v1591
      $region72: #{tpu_custom_call.1} parent=67 // pred_fallthru
        _
      %v1594 = vld [vmem:[%s456] sm:$0xf]
      %v1595 = vld [vmem:[%s456 + $0x4] sm:$0xf]
      %v1596 = vld [vmem:[%s456 + $0x8] sm:$0xf]
      %v1597 = vld [vmem:[%s456 + $0xc] sm:$0xf]
      %v1598 = vld [vmem:[%s456 + $0x10] sm:$0xf]
      %v1599 = vld [vmem:[%s456 + $0x14] sm:$0xf]
      %v1600 = vld [vmem:[%s456 + $0x18] sm:$0xf]
      %v1601 = vld [vmem:[%s456 + $0x1c] sm:$0xf]
      %v1602 = vld [vmem:[%s456 + $0x20] sm:$0xf]
      %v1603 = vld [vmem:[%s456 + $0x24] sm:$0xf]
      %v1604 = vld [vmem:[%s456 + $0x28] sm:$0xf]
      %v1605 = vld [vmem:[%s456 + $0x2c] sm:$0xf]
      %v1606 = vld [vmem:[%s456 + $0x30] sm:$0xf]
      %v1607 = vld [vmem:[%s456 + $0x34] sm:$0xf]
      %v1608 = vld [vmem:[%s456 + $0x38] sm:$0xf]
      %v1609 = vld [vmem:[%s456 + $0x3c] sm:$0xf]
      %v1610 = vld [vmem:[%s6] sm:$0xf]
      %v1611 = vld [vmem:[%s6 + $0x4] sm:$0xf]
      %v1612 = vld [vmem:[%s6 + $0x8] sm:$0xf]
      %v1613 = vld [vmem:[%s6 + $0xc] sm:$0xf]
      %v1614 = vld [vmem:[%s6 + $0x10] sm:$0xf]
      %v1615 = vld [vmem:[%s6 + $0x14] sm:$0xf]
      %v1616 = vld [vmem:[%s6 + $0x18] sm:$0xf]
      %v1617 = vld [vmem:[%s6 + $0x1c] sm:$0xf]
      %v1618 = vld [vmem:[%s7] sm:$0x1]
      %v1620 = vlaneseq
      %v1621 = vshrl.u32 %v1620, 7
      %v1622 = vsub.s32 0, %v1621
      %v1623 = vrot.slane %v1618, %v1622
      %v1641 = vunpack.c.l.b16 %v1594
      %v1642 = vunpack.c.l.b16 %v1595
      %v1643 = vunpack.c.l.b16 %v1596
      %v1644 = vunpack.c.l.b16 %v1597
      %v1645 = vunpack.c.l.b16 %v1598
      %v1646 = vunpack.c.l.b16 %v1599
      %v1647 = vunpack.c.l.b16 %v1600
      %v1648 = vunpack.c.l.b16 %v1601
      %v1649 = vunpack.c.l.b16 %v1602
      %v1650 = vunpack.c.l.b16 %v1603
      %v1651 = vunpack.c.l.b16 %v1604
      %v1652 = vunpack.c.l.b16 %v1605
      %v1653 = vunpack.c.l.b16 %v1606
      %v1654 = vunpack.c.l.b16 %v1607
      %v1655 = vunpack.c.l.b16 %v1608
      %v1656 = vunpack.c.l.b16 %v1609
      %v1657 = vpack.c.b16 %v1642, %v1641
      %v1658 = vpack.c.b16 %v1644, %v1643
      %v1659 = vpack.c.b16 %v1646, %v1645
      %v1660 = vpack.c.b16 %v1648, %v1647
      %v1661 = vpack.c.b16 %v1650, %v1649
      %v1662 = vpack.c.b16 %v1652, %v1651
      %v1663 = vpack.c.b16 %v1654, %v1653
      %v1664 = vpack.c.b16 %v1656, %v1655
      %v1673 = vunpack.c.l.b16 %v1610
      %v1674 = vunpack.c.l.b16 %v1611
      %v1675 = vunpack.c.l.b16 %v1612
      %v1676 = vunpack.c.l.b16 %v1613
      %v1677 = vunpack.c.l.b16 %v1614
      %v1678 = vunpack.c.l.b16 %v1615
      %v1679 = vunpack.c.l.b16 %v1616
      %v1680 = vunpack.c.l.b16 %v1617
      %v1681 = vpack.c.b16 %v1674, %v1673
      %v1682 = vpack.c.b16 %v1676, %v1675
      %v1683 = vpack.c.b16 %v1678, %v1677
      %v1684 = vpack.c.b16 %v1680, %v1679
      %vm1689 = vcmask 523264
      %v1691 = vsel %vm1689, %v1657, 0
      %v1694 = vsel %vm1689, %v1658, 0
      %v1697 = vsel %vm1689, %v1659, 0
      %v1700 = vsel %vm1689, %v1660, 0
      %v1703 = vsel %vm1689, %v1661, 0
      %v1706 = vsel %vm1689, %v1662, 0
      %v1709 = vsel %vm1689, %v1663, 0
      %v1712 = vsel %vm1689, %v1664, 0
      %1714 = vmatprep.subr.bf16.mxu0 0
      %1715 = vmatpush1.bf16.msra.mxu0 %v1681
      %1716 = vmatprep.subr.bf16.mxu0 0
      %1717 = vmatpush1.bf16.msra.mxu0 %v1682
      %1718 = vmatprep.subr.bf16.mxu0 0
      %1719 = vmatpush1.bf16.msra.mxu0 %v1683
      %1720 = vmatprep.subr.bf16.mxu0 0
      %1721 = vmatpush1.bf16.msra.mxu0 %v1684
      %1722 = vmatprep.subr.bf16.mxu0 0
      %1723 = vmatpush1.bf16.msra.mxu0 0
      %1724 = vmatprep.subr.bf16.mxu0 0
      %1725 = vmatpush1.bf16.msra.mxu0 0
      %1726 = vmatprep.subr.bf16.mxu0 0
      %1727 = vmatpush1.bf16.msra.mxu0 0
      %1728 = vmatprep.subr.bf16.mxu0 0
      %1729 = vmatpush1.bf16.msra.mxu0 0
      %1730 = vmatprep.subr.bf16.mxu0 0
      %1731 = vmatpush1.bf16.msra.mxu0 0
      %1732 = vmatprep.subr.bf16.mxu0 0
      %1733 = vmatpush1.bf16.msra.mxu0 0
      %1734 = vmatprep.subr.bf16.mxu0 0
      %1735 = vmatpush1.bf16.msra.mxu0 0
      %1736 = vmatprep.subr.bf16.mxu0 0
      %1737 = vmatpush1.bf16.msra.mxu0 0
      %1738 = vmatprep.subr.bf16.mxu0 0
      %1739 = vmatpush1.bf16.msra.mxu0 0
      %1740 = vmatprep.subr.bf16.mxu0 0
      %1741 = vmatpush1.bf16.msra.mxu0 0
      %1742 = vmatprep.subr.bf16.mxu0 0
      %1743 = vmatpush1.bf16.msra.mxu0 0
      %1744 = vmatprep.subr.bf16.mxu0 0
      %1745 = vmatpush1.bf16.msra.mxu0 0
      %1746 = vmatprep.mubr.bf16.mxu0 0
      %1747 = vmatmul.mubr.bf16.gmra.mrb[0].mxu0 %v1691
      %v1748 = vpop.f32.mrb[0].mxu0
      %v1749 = vadd.f32 %v1623, %v1748
      %v1750 = vpop.f32.mrb[0].mxu0
      %v1751 = vpop.f32.mrb[0].mxu0
      %v1752 = vadd.f32 %v1623, %v1751
      %v1753 = vpop.f32.mrb[0].mxu0
      %1754 = vmatprep.mubr.bf16.mxu0 0
      %1755 = vmatmul.mubr.bf16.gmra.mrb[0].mxu0 %v1694
      %v1756 = vpop.f32.mrb[0].mxu0
      %v1757 = vadd.f32 %v1623, %v1756
      %v1758 = vpop.f32.mrb[0].mxu0
      %v1759 = vpop.f32.mrb[0].mxu0
      %v1760 = vadd.f32 %v1623, %v1759
      %v1761 = vpop.f32.mrb[0].mxu0
      %1762 = vmatprep.mubr.bf16.mxu0 0
      %1763 = vmatmul.mubr.bf16.gmra.mrb[0].mxu0 %v1697
      %v1764 = vpop.f32.mrb[0].mxu0
      %v1765 = vadd.f32 %v1623, %v1764
      %v1766 = vpop.f32.mrb[0].mxu0
      %v1767 = vpop.f32.mrb[0].mxu0
      %v1768 = vadd.f32 %v1623, %v1767
      %v1769 = vpop.f32.mrb[0].mxu0
      %1770 = vmatprep.mubr.bf16.mxu0 0
      %1771 = vmatmul.mubr.bf16.gmra.mrb[0].mxu0 %v1700
      %v1772 = vpop.f32.mrb[0].mxu0
      %v1773 = vadd.f32 %v1623, %v1772
      %v1774 = vpop.f32.mrb[0].mxu0
      %v1775 = vpop.f32.mrb[0].mxu0
      %v1776 = vadd.f32 %v1623, %v1775
      %v1777 = vpop.f32.mrb[0].mxu0
      %1778 = vmatprep.mubr.bf16.mxu0 0
      %1779 = vmatmul.mubr.bf16.gmra.mrb[0].mxu0 %v1703
      %v1780 = vpop.f32.mrb[0].mxu0
      %v1781 = vadd.f32 %v1623, %v1780
      %v1782 = vpop.f32.mrb[0].mxu0
      %v1783 = vpop.f32.mrb[0].mxu0
      %v1784 = vadd.f32 %v1623, %v1783
      %v1785 = vpop.f32.mrb[0].mxu0
      %1786 = vmatprep.mubr.bf16.mxu0 0
      %1787 = vmatmul.mubr.bf16.gmra.mrb[0].mxu0 %v1706
      %v1788 = vpop.f32.mrb[0].mxu0
      %v1789 = vadd.f32 %v1623, %v1788
      %v1790 = vpop.f32.mrb[0].mxu0
      %v1791 = vpop.f32.mrb[0].mxu0
      %v1792 = vadd.f32 %v1623, %v1791
      %v1793 = vpop.f32.mrb[0].mxu0
      %1794 = vmatprep.mubr.bf16.mxu0 0
      %1795 = vmatmul.mubr.bf16.gmra.mrb[0].mxu0 %v1709
      %v1796 = vpop.f32.mrb[0].mxu0
      %v1797 = vadd.f32 %v1623, %v1796
      %v1798 = vpop.f32.mrb[0].mxu0
      %v1799 = vpop.f32.mrb[0].mxu0
      %v1800 = vadd.f32 %v1623, %v1799
      %v1801 = vpop.f32.mrb[0].mxu0
      %1802 = vmatprep.mubr.bf16.mxu0 0
      %1803 = vmatmul.mubr.bf16.gmra.mrb[0].mxu0 %v1712
      %v1804 = vpop.f32.mrb[0].mxu0
      %v1805 = vadd.f32 %v1623, %v1804
      %v1806 = vpop.f32.mrb[0].mxu0
      %v1807 = vpop.f32.mrb[0].mxu0
      %v1808 = vadd.f32 %v1623, %v1807
      %v1809 = vpop.f32.mrb[0].mxu0
      %1810 = vdwg.mxu0
      %v1811 = vpack.c.bf16 %v1752, %v1749
      %v1812 = vpack.c.bf16 %v1760, %v1757
      %v1813 = vpack.c.bf16 %v1768, %v1765
      %v1814 = vpack.c.bf16 %v1776, %v1773
      %v1815 = vpack.c.bf16 %v1784, %v1781
      %v1816 = vpack.c.bf16 %v1792, %v1789
      %v1817 = vpack.c.bf16 %v1800, %v1797
      %v1818 = vpack.c.bf16 %v1808, %v1805
      %v1819 = vld [vmem:[#allocation2] sm:$0xff]
      %vm1820 = vcmask 261120
      %v1822 = vsel %vm1820, %v1811, 0
      %v1825 = vsel %vm1820, %v1812, 0
      %v1828 = vsel %vm1820, %v1813, 0
      %v1831 = vsel %vm1820, %v1814, 0
      %v1834 = vsel %vm1820, %v1815, 0
      %v1837 = vsel %vm1820, %v1816, 0
      %v1840 = vsel %vm1820, %v1817, 0
      %v1843 = vsel %vm1820, %v1818, 0
      %v1846 = vsel %vm1820, %v1819, 0
      %1848 = vmatprep.subr.bf16.mxu0 0
      %1849 = vmatpush1.bf16.xpose.msra.mxu0 %v1846
      %1850 = vmatprep.subr.bf16.mxu0 0
      %1851 = vmatpush1.bf16.xpose.msra.mxu0 0
      %1852 = vmatprep.subr.bf16.mxu0 0
      %1853 = vmatpush1.bf16.xpose.msra.mxu0 0
      %1854 = vmatprep.subr.bf16.mxu0 0
      %1855 = vmatpush1.bf16.xpose.msra.mxu0 0
      %1856 = vmatprep.subr.bf16.mxu0 0
      %1857 = vmatpush1.bf16.xpose.msra.mxu0 0
      %1858 = vmatprep.subr.bf16.mxu0 0
      %1859 = vmatpush1.bf16.xpose.msra.mxu0 0
      %1860 = vmatprep.subr.bf16.mxu0 0
      %1861 = vmatpush1.bf16.xpose.msra.mxu0 0
      %1862 = vmatprep.subr.bf16.mxu0 0
      %1863 = vmatpush1.bf16.xpose.msra.mxu0 0
      %1864 = vmatprep.subr.bf16.mxu0 0
      %1865 = vmatpush1.bf16.xpose.msra.mxu0 0
      %1866 = vmatprep.subr.bf16.mxu0 0
      %1867 = vmatpush1.bf16.xpose.msra.mxu0 0
      %1868 = vmatprep.subr.bf16.mxu0 0
      %1869 = vmatpush1.bf16.xpose.msra.mxu0 0
      %1870 = vmatprep.subr.bf16.mxu0 0
      %1871 = vmatpush1.bf16.xpose.msra.mxu0 0
      %1872 = vmatprep.subr.bf16.mxu0 0
      %1873 = vmatpush1.bf16.xpose.msra.mxu0 0
      %1874 = vmatprep.subr.bf16.mxu0 0
      %1875 = vmatpush1.bf16.xpose.msra.mxu0 0
      %1876 = vmatprep.subr.bf16.mxu0 0
      %1877 = vmatpush1.bf16.xpose.msra.mxu0 0
      %1878 = vmatprep.subr.bf16.mxu0 0
      %1879 = vmatpush1.bf16.xpose.msra.mxu0 0
      %1880 = vmatprep.mubr.bf16.mxu0 0
      %1881 = vmatmul.mubr.bf16.gmra.mrb[0].mxu0 %v1822
      %v1882 = vpop.f32.mrb[0].mxu0
      %v1883 = vadd.f32 0.0, %v1882
      %v1884 = vpop.f32.mrb[0].mxu0
      %v1885 = vpop.f32.mrb[0].mxu0
      %v1886 = vadd.f32 0.0, %v1885
      %v1887 = vpop.f32.mrb[0].mxu0
      %1888 = vmatprep.mubr.bf16.mxu0 0
      %1889 = vmatmul.mubr.bf16.gmra.mrb[0].mxu0 %v1825
      %v1890 = vpop.f32.mrb[0].mxu0
      %v1891 = vadd.f32 0.0, %v1890
      %v1892 = vpop.f32.mrb[0].mxu0
      %v1893 = vpop.f32.mrb[0].mxu0
      %v1894 = vadd.f32 0.0, %v1893
      %v1895 = vpop.f32.mrb[0].mxu0
      %1896 = vmatprep.mubr.bf16.mxu0 0
      %1897 = vmatmul.mubr.bf16.gmra.mrb[0].mxu0 %v1828
      %v1898 = vpop.f32.mrb[0].mxu0
      %v1899 = vadd.f32 0.0, %v1898
      %v1900 = vpop.f32.mrb[0].mxu0
      %v1901 = vpop.f32.mrb[0].mxu0
      %v1902 = vadd.f32 0.0, %v1901
      %v1903 = vpop.f32.mrb[0].mxu0
      %1904 = vmatprep.mubr.bf16.mxu0 0
      %1905 = vmatmul.mubr.bf16.gmra.mrb[0].mxu0 %v1831
      %v1906 = vpop.f32.mrb[0].mxu0
      %v1907 = vadd.f32 0.0, %v1906
      %v1908 = vpop.f32.mrb[0].mxu0
      %v1909 = vpop.f32.mrb[0].mxu0
      %v1910 = vadd.f32 0.0, %v1909
      %v1911 = vpop.f32.mrb[0].mxu0
      %1912 = vmatprep.mubr.bf16.mxu0 0
      %1913 = vmatmul.mubr.bf16.gmra.mrb[0].mxu0 %v1834
      %v1914 = vpop.f32.mrb[0].mxu0
      %v1915 = vadd.f32 0.0, %v1914
      %v1916 = vpop.f32.mrb[0].mxu0
      %v1917 = vpop.f32.mrb[0].mxu0
      %v1918 = vadd.f32 0.0, %v1917
      %v1919 = vpop.f32.mrb[0].mxu0
      %1920 = vmatprep.mubr.bf16.mxu0 0
      %1921 = vmatmul.mubr.bf16.gmra.mrb[0].mxu0 %v1837
      %v1922 = vpop.f32.mrb[0].mxu0
      %v1923 = vadd.f32 0.0, %v1922
      %v1924 = vpop.f32.mrb[0].mxu0
      %v1925 = vpop.f32.mrb[0].mxu0
      %v1926 = vadd.f32 0.0, %v1925
      %v1927 = vpop.f32.mrb[0].mxu0
      %1928 = vmatprep.mubr.bf16.mxu0 0
      %1929 = vmatmul.mubr.bf16.gmra.mrb[0].mxu0 %v1840
      %v1930 = vpop.f32.mrb[0].mxu0
      %v1931 = vadd.f32 0.0, %v1930
      %v1932 = vpop.f32.mrb[0].mxu0
      %v1933 = vpop.f32.mrb[0].mxu0
      %v1934 = vadd.f32 0.0, %v1933
      %v1935 = vpop.f32.mrb[0].mxu0
      %1936 = vmatprep.mubr.bf16.mxu0 0
      %1937 = vmatmul.mubr.bf16.gmra.mrb[0].mxu0 %v1843
      %v1938 = vpop.f32.mrb[0].mxu0
      %v1939 = vadd.f32 0.0, %v1938
      %v1940 = vpop.f32.mrb[0].mxu0
      %v1941 = vpop.f32.mrb[0].mxu0
      %v1942 = vadd.f32 0.0, %v1941
      %v1943 = vpop.f32.mrb[0].mxu0
      %1944 = vdwg.mxu0
      %v1945 = vmul.f32 %v1883, 0.17677669
      %v1946 = vmul.f32 %v1886, 0.17677669
      %v1947 = vmul.f32 %v1891, 0.17677669
      %v1948 = vmul.f32 %v1894, 0.17677669
      %v1949 = vmul.f32 %v1899, 0.17677669
      %v1950 = vmul.f32 %v1902, 0.17677669
      %v1951 = vmul.f32 %v1907, 0.17677669
      %v1952 = vmul.f32 %v1910, 0.17677669
      %v1953 = vmul.f32 %v1915, 0.17677669
      %v1954 = vmul.f32 %v1918, 0.17677669
      %v1955 = vmul.f32 %v1923, 0.17677669
      %v1956 = vmul.f32 %v1926, 0.17677669
      %v1957 = vmul.f32 %v1931, 0.17677669
      %v1958 = vmul.f32 %v1934, 0.17677669
      %v1959 = vmul.f32 %v1939, 0.17677669
      %v1960 = vmul.f32 %v1942, 0.17677669
      %vm1961 = vcmask 130048
      %v1962 = vsel %vm1961, %v1945, -inf
      %1963 = vmax.xlane.f32.xlu0 %v1962
      %v1964 = vpop.xlane.xlu0 %1963
      %v1965 = vsel %vm1961, %v1946, -inf
      %1966 = vmax.xlane.f32.xlu0 %v1965
      %v1967 = vpop.xlane.xlu0 %1966
      %v1968 = vsel %vm1961, %v1947, -inf
      %1969 = vmax.xlane.f32.xlu0 %v1968
      %v1970 = vpop.xlane.xlu0 %1969
      %v1971 = vsel %vm1961, %v1948, -inf
      %1972 = vmax.xlane.f32.xlu0 %v1971
      %v1973 = vpop.xlane.xlu0 %1972
      %v1974 = vsel %vm1961, %v1949, -inf
      %1975 = vmax.xlane.f32.xlu0 %v1974
      %v1976 = vpop.xlane.xlu0 %1975
      %v1977 = vsel %vm1961, %v1950, -inf
      %1978 = vmax.xlane.f32.xlu0 %v1977
      %v1979 = vpop.xlane.xlu0 %1978
      %v1980 = vsel %vm1961, %v1951, -inf
      %1981 = vmax.xlane.f32.xlu0 %v1980
      %v1982 = vpop.xlane.xlu0 %1981
      %v1983 = vsel %vm1961, %v1952, -inf
      %1984 = vmax.xlane.f32.xlu0 %v1983
      %v1985 = vpop.xlane.xlu0 %1984
      %v1986 = vsel %vm1961, %v1953, -inf
      %1987 = vmax.xlane.f32.xlu0 %v1986
      %v1988 = vpop.xlane.xlu0 %1987
      %v1989 = vsel %vm1961, %v1954, -inf
      %1990 = vmax.xlane.f32.xlu0 %v1989
      %v1991 = vpop.xlane.xlu0 %1990
      %v1992 = vsel %vm1961, %v1955, -inf
      %1993 = vmax.xlane.f32.xlu0 %v1992
      %v1994 = vpop.xlane.xlu0 %1993
      %v1995 = vsel %vm1961, %v1956, -inf
      %1996 = vmax.xlane.f32.xlu0 %v1995
      %v1997 = vpop.xlane.xlu0 %1996
      %v1998 = vsel %vm1961, %v1957, -inf
      %1999 = vmax.xlane.f32.xlu0 %v1998
      %v2000 = vpop.xlane.xlu0 %1999
      %v2001 = vsel %vm1961, %v1958, -inf
      %2002 = vmax.xlane.f32.xlu0 %v2001
      %v2003 = vpop.xlane.xlu0 %2002
      %v2004 = vsel %vm1961, %v1959, -inf
      %2005 = vmax.xlane.f32.xlu0 %v2004
      %v2006 = vpop.xlane.xlu0 %2005
      %v2007 = vsel %vm1961, %v1960, -inf
      %2008 = vmax.xlane.f32.xlu0 %v2007
      %v2009 = vpop.xlane.xlu0 %2008
      %v2010 = vsub.f32 %v1945, %v1964
      %v2011 = vsub.f32 %v1946, %v1967
      %v2012 = vsub.f32 %v1947, %v1970
      %v2013 = vsub.f32 %v1948, %v1973
      %v2014 = vsub.f32 %v1949, %v1976
      %v2015 = vsub.f32 %v1950, %v1979
      %v2016 = vsub.f32 %v1951, %v1982
      %v2017 = vsub.f32 %v1952, %v1985
      %v2018 = vsub.f32 %v1953, %v1988
      %v2019 = vsub.f32 %v1954, %v1991
      %v2020 = vsub.f32 %v1955, %v1994
      %v2021 = vsub.f32 %v1956, %v1997
      %v2022 = vsub.f32 %v1957, %v2000
      %v2023 = vsub.f32 %v1958, %v2003
      %v2024 = vsub.f32 %v1959, %v2006
      %v2025 = vsub.f32 %v1960, %v2009
      %v2026 = vmul.f32 %v2010, 1.442695
      %v2027 = vpow.pop %v2026
      %v2028 = vmul.f32 %v2011, 1.442695
      %v2029 = vpow.pop %v2028
      %v2030 = vmul.f32 %v2012, 1.442695
      %v2031 = vpow.pop %v2030
      %v2032 = vmul.f32 %v2013, 1.442695
      %v2033 = vpow.pop %v2032
      %v2034 = vmul.f32 %v2014, 1.442695
      %v2035 = vpow.pop %v2034
      %v2036 = vmul.f32 %v2015, 1.442695
      %v2037 = vpow.pop %v2036
      %v2038 = vmul.f32 %v2016, 1.442695
      %v2039 = vpow.pop %v2038
      %v2040 = vmul.f32 %v2017, 1.442695
      %v2041 = vpow.pop %v2040
      %v2042 = vmul.f32 %v2018, 1.442695
      %v2043 = vpow.pop %v2042
      %v2044 = vmul.f32 %v2019, 1.442695
      %v2045 = vpow.pop %v2044
      %v2046 = vmul.f32 %v2020, 1.442695
      %v2047 = vpow.pop %v2046
      %v2048 = vmul.f32 %v2021, 1.442695
      %v2049 = vpow.pop %v2048
      %v2050 = vmul.f32 %v2022, 1.442695
      %v2051 = vpow.pop %v2050
      %v2052 = vmul.f32 %v2023, 1.442695
      %v2053 = vpow.pop %v2052
      %v2054 = vmul.f32 %v2024, 1.442695
      %v2055 = vpow.pop %v2054
      %v2056 = vmul.f32 %v2025, 1.442695
      %v2057 = vpow.pop %v2056
      %v2058 = vsel %vm1961, %v2027, 0.0
      %2059 = vadd.xlane.f32.xlu0 %v2058
      %v2060 = vpop.xlane.xlu0 %2059
      %v2061 = vsel %vm1961, %v2029, 0.0
      %2062 = vadd.xlane.f32.xlu0 %v2061
      %v2063 = vpop.xlane.xlu0 %2062
      %v2064 = vsel %vm1961, %v2031, 0.0
      %2065 = vadd.xlane.f32.xlu0 %v2064
      %v2066 = vpop.xlane.xlu0 %2065
      %v2067 = vsel %vm1961, %v2033, 0.0
      %2068 = vadd.xlane.f32.xlu0 %v2067
      %v2069 = vpop.xlane.xlu0 %2068
      %v2070 = vsel %vm1961, %v2035, 0.0
      %2071 = vadd.xlane.f32.xlu0 %v2070
      %v2072 = vpop.xlane.xlu0 %2071
      %v2073 = vsel %vm1961, %v2037, 0.0
      %2074 = vadd.xlane.f32.xlu0 %v2073
      %v2075 = vpop.xlane.xlu0 %2074
      %v2076 = vsel %vm1961, %v2039, 0.0
      %2077 = vadd.xlane.f32.xlu0 %v2076
      %v2078 = vpop.xlane.xlu0 %2077
      %v2079 = vsel %vm1961, %v2041, 0.0
      %2080 = vadd.xlane.f32.xlu0 %v2079
      %v2081 = vpop.xlane.xlu0 %2080
      %v2082 = vsel %vm1961, %v2043, 0.0
      %2083 = vadd.xlane.f32.xlu0 %v2082
      %v2084 = vpop.xlane.xlu0 %2083
      %v2085 = vsel %vm1961, %v2045, 0.0
      %2086 = vadd.xlane.f32.xlu0 %v2085
      %v2087 = vpop.xlane.xlu0 %2086
      %v2088 = vsel %vm1961, %v2047, 0.0
      %2089 = vadd.xlane.f32.xlu0 %v2088
      %v2090 = vpop.xlane.xlu0 %2089
      %v2091 = vsel %vm1961, %v2049, 0.0
      %2092 = vadd.xlane.f32.xlu0 %v2091
      %v2093 = vpop.xlane.xlu0 %2092
      %v2094 = vsel %vm1961, %v2051, 0.0
      %2095 = vadd.xlane.f32.xlu0 %v2094
      %v2096 = vpop.xlane.xlu0 %2095
      %v2097 = vsel %vm1961, %v2053, 0.0
      %2098 = vadd.xlane.f32.xlu0 %v2097
      %v2099 = vpop.xlane.xlu0 %2098
      %v2100 = vsel %vm1961, %v2055, 0.0
      %2101 = vadd.xlane.f32.xlu0 %v2100
      %v2102 = vpop.xlane.xlu0 %2101
      %v2103 = vsel %vm1961, %v2057, 0.0
      %2104 = vadd.xlane.f32.xlu0 %v2103
      %v2105 = vpop.xlane.xlu0 %2104
      %v2106 = vrcp.pop %v2060
      %v2107 = vrcp.pop %v2063
      %v2108 = vrcp.pop %v2066
      %v2109 = vrcp.pop %v2069
      %v2110 = vrcp.pop %v2072
      %v2111 = vrcp.pop %v2075
      %v2112 = vrcp.pop %v2078
      %v2113 = vrcp.pop %v2081
      %v2114 = vrcp.pop %v2084
      %v2115 = vrcp.pop %v2087
      %v2116 = vrcp.pop %v2090
      %v2117 = vrcp.pop %v2093
      %v2118 = vrcp.pop %v2096
      %v2119 = vrcp.pop %v2099
      %v2120 = vrcp.pop %v2102
      %v2121 = vrcp.pop %v2105
      %v2122 = vmul.f32 %v2027, %v2106
      %v2123 = vmul.f32 %v2029, %v2107
      %v2124 = vmul.f32 %v2031, %v2108
      %v2125 = vmul.f32 %v2033, %v2109
      %v2126 = vmul.f32 %v2035, %v2110
      %v2127 = vmul.f32 %v2037, %v2111
      %v2128 = vmul.f32 %v2039, %v2112
      %v2129 = vmul.f32 %v2041, %v2113
      %v2130 = vmul.f32 %v2043, %v2114
      %v2131 = vmul.f32 %v2045, %v2115
      %v2132 = vmul.f32 %v2047, %v2116
      %v2133 = vmul.f32 %v2049, %v2117
      %v2134 = vmul.f32 %v2051, %v2118
      %v2135 = vmul.f32 %v2053, %v2119
      %v2136 = vmul.f32 %v2055, %v2120
      %v2137 = vmul.f32 %v2057, %v2121
      %v2138 = vpack.c.bf16 %v2123, %v2122
      %v2139 = vpack.c.bf16 %v2125, %v2124
      %v2140 = vpack.c.bf16 %v2127, %v2126
      %v2141 = vpack.c.bf16 %v2129, %v2128
      %v2142 = vpack.c.bf16 %v2131, %v2130
      %v2143 = vpack.c.bf16 %v2133, %v2132
      %v2144 = vpack.c.bf16 %v2135, %v2134
      %v2145 = vpack.c.bf16 %v2137, %v2136
      %v2146 = vld [vmem:[#allocation3] sm:$0xff]
      %v2148 = vsel %vm1961, %v2138, 0
      %v2151 = vsel %vm1961, %v2139, 0
      %v2154 = vsel %vm1961, %v2140, 0
      %v2157 = vsel %vm1961, %v2141, 0
      %v2160 = vsel %vm1961, %v2142, 0
      %v2163 = vsel %vm1961, %v2143, 0
      %v2166 = vsel %vm1961, %v2144, 0
      %v2169 = vsel %vm1961, %v2145, 0
      %2171 = vmatprep.subr.bf16.mxu0 0
      %2172 = vmatpush1.bf16.msra.mxu0 %v2146
      %2173 = vmatprep.subr.bf16.mxu0 0
      %2174 = vmatpush1.bf16.msra.mxu0 0
      %2175 = vmatprep.subr.bf16.mxu0 0
      %2176 = vmatpush1.bf16.msra.mxu0 0
      %2177 = vmatprep.subr.bf16.mxu0 0
      %2178 = vmatpush1.bf16.msra.mxu0 0
      %2179 = vmatprep.subr.bf16.mxu0 0
      %2180 = vmatpush1.bf16.msra.mxu0 0
      %2181 = vmatprep.subr.bf16.mxu0 0
      %2182 = vmatpush1.bf16.msra.mxu0 0
      %2183 = vmatprep.subr.bf16.mxu0 0
      %2184 = vmatpush1.bf16.msra.mxu0 0
      %2185 = vmatprep.subr.bf16.mxu0 0
      %2186 = vmatpush1.bf16.msra.mxu0 0
      %2187 = vmatprep.subr.bf16.mxu0 0
      %2188 = vmatpush1.bf16.msra.mxu0 0
      %2189 = vmatprep.subr.bf16.mxu0 0
      %2190 = vmatpush1.bf16.msra.mxu0 0
      %2191 = vmatprep.subr.bf16.mxu0 0
      %2192 = vmatpush1.bf16.msra.mxu0 0
      %2193 = vmatprep.subr.bf16.mxu0 0
      %2194 = vmatpush1.bf16.msra.mxu0 0
      %2195 = vmatprep.subr.bf16.mxu0 0
      %2196 = vmatpush1.bf16.msra.mxu0 0
      %2197 = vmatprep.subr.bf16.mxu0 0
      %2198 = vmatpush1.bf16.msra.mxu0 0
      %2199 = vmatprep.subr.bf16.mxu0 0
      %2200 = vmatpush1.bf16.msra.mxu0 0
      %2201 = vmatprep.subr.bf16.mxu0 0
      %2202 = vmatpush1.bf16.msra.mxu0 0
      %2203 = vmatprep.mubr.bf16.mxu0 0
      %2204 = vmatmul.mubr.bf16.gmra.mrb[0].mxu0 %v2148
      %v2205 = vpop.f32.mrb[0].mxu0
      %v2206 = vadd.f32 0.0, %v2205
      %v2207 = vpop.f32.mrb[0].mxu0
      %v2208 = vpop.f32.mrb[0].mxu0
      %v2209 = vadd.f32 0.0, %v2208
      %v2210 = vpop.f32.mrb[0].mxu0
      %2211 = vmatprep.mubr.bf16.mxu0 0
      %2212 = vmatmul.mubr.bf16.gmra.mrb[0].mxu0 %v2151
      %v2213 = vpop.f32.mrb[0].mxu0
      %v2214 = vadd.f32 0.0, %v2213
      %v2215 = vpop.f32.mrb[0].mxu0
      %v2216 = vpop.f32.mrb[0].mxu0
      %v2217 = vadd.f32 0.0, %v2216
      %v2218 = vpop.f32.mrb[0].mxu0
      %2219 = vmatprep.mubr.bf16.mxu0 0
      %2220 = vmatmul.mubr.bf16.gmra.mrb[0].mxu0 %v2154
      %v2221 = vpop.f32.mrb[0].mxu0
      %v2222 = vadd.f32 0.0, %v2221
      %v2223 = vpop.f32.mrb[0].mxu0
      %v2224 = vpop.f32.mrb[0].mxu0
      %v2225 = vadd.f32 0.0, %v2224
      %v2226 = vpop.f32.mrb[0].mxu0
      %2227 = vmatprep.mubr.bf16.mxu0 0
      %2228 = vmatmul.mubr.bf16.gmra.mrb[0].mxu0 %v2157
      %v2229 = vpop.f32.mrb[0].mxu0
      %v2230 = vadd.f32 0.0, %v2229
      %v2231 = vpop.f32.mrb[0].mxu0
      %v2232 = vpop.f32.mrb[0].mxu0
      %v2233 = vadd.f32 0.0, %v2232
      %v2234 = vpop.f32.mrb[0].mxu0
      %2235 = vmatprep.mubr.bf16.mxu0 0
      %2236 = vmatmul.mubr.bf16.gmra.mrb[0].mxu0 %v2160
      %v2237 = vpop.f32.mrb[0].mxu0
      %v2238 = vadd.f32 0.0, %v2237
      %v2239 = vpop.f32.mrb[0].mxu0
      %v2240 = vpop.f32.mrb[0].mxu0
      %v2241 = vadd.f32 0.0, %v2240
      %v2242 = vpop.f32.mrb[0].mxu0
      %2243 = vmatprep.mubr.bf16.mxu0 0
      %2244 = vmatmul.mubr.bf16.gmra.mrb[0].mxu0 %v2163
      %v2245 = vpop.f32.mrb[0].mxu0
      %v2246 = vadd.f32 0.0, %v2245
      %v2247 = vpop.f32.mrb[0].mxu0
      %v2248 = vpop.f32.mrb[0].mxu0
      %v2249 = vadd.f32 0.0, %v2248
      %v2250 = vpop.f32.mrb[0].mxu0
      %2251 = vmatprep.mubr.bf16.mxu0 0
      %2252 = vmatmul.mubr.bf16.gmra.mrb[0].mxu0 %v2166
      %v2253 = vpop.f32.mrb[0].mxu0
      %v2254 = vadd.f32 0.0, %v2253
      %v2255 = vpop.f32.mrb[0].mxu0
      %v2256 = vpop.f32.mrb[0].mxu0
      %v2257 = vadd.f32 0.0, %v2256
      %v2258 = vpop.f32.mrb[0].mxu0
      %2259 = vmatprep.mubr.bf16.mxu0 0
      %2260 = vmatmul.mubr.bf16.gmra.mrb[0].mxu0 %v2169
      %v2261 = vpop.f32.mrb[0].mxu0
      %v2262 = vadd.f32 0.0, %v2261
      %v2263 = vpop.f32.mrb[0].mxu0
      %v2264 = vpop.f32.mrb[0].mxu0
      %v2265 = vadd.f32 0.0, %v2264
      %v2266 = vpop.f32.mrb[0].mxu0
      %2267 = vdwg.mxu0
      %2268 = vst.msk [vmem:[#allocation4] sm:$0xff] %vm1820, %v2206
      %2269 = vst.msk [vmem:[#allocation4 + $0x8] sm:$0xff] %vm1820, %v2209
      %2270 = vst.msk [vmem:[#allocation4 + $0x10] sm:$0xff] %vm1820, %v2214
      %2271 = vst.msk [vmem:[#allocation4 + $0x18] sm:$0xff] %vm1820, %v2217
      %2272 = vst.msk [vmem:[#allocation4 + $0x20] sm:$0xff] %vm1820, %v2222
      %2273 = vst.msk [vmem:[#allocation4 + $0x28] sm:$0xff] %vm1820, %v2225
      %2274 = vst.msk [vmem:[#allocation4 + $0x30] sm:$0xff] %vm1820, %v2230
      %2275 = vst.msk [vmem:[#allocation4 + $0x38] sm:$0xff] %vm1820, %v2233
      %2276 = vst.msk [vmem:[#allocation4 + $0x40] sm:$0xff] %vm1820, %v2238
      %2277 = vst.msk [vmem:[#allocation4 + $0x48] sm:$0xff] %vm1820, %v2241
      %2278 = vst.msk [vmem:[#allocation4 + $0x50] sm:$0xff] %vm1820, %v2246
      %2279 = vst.msk [vmem:[#allocation4 + $0x58] sm:$0xff] %vm1820, %v2249
      %2280 = vst.msk [vmem:[#allocation4 + $0x60] sm:$0xff] %vm1820, %v2254
      %2281 = vst.msk [vmem:[#allocation4 + $0x68] sm:$0xff] %vm1820, %v2257
      %2282 = vst.msk [vmem:[#allocation4 + $0x70] sm:$0xff] %vm1820, %v2262
      %2283 = vst.msk [vmem:[#allocation4 + $0x78] sm:$0xff] %vm1820, %v2265
      %s2284 = scalar_lea.vmem %s6, 32
      %v2285 = vld [vmem:[%s2284] sm:$0xf]
      %v2286 = vld [vmem:[%s2284 + $0x4] sm:$0xf]
      %v2287 = vld [vmem:[%s2284 + $0x8] sm:$0xf]
      %v2288 = vld [vmem:[%s2284 + $0xc] sm:$0xf]
      %v2289 = vld [vmem:[%s2284 + $0x10] sm:$0xf]
      %v2290 = vld [vmem:[%s2284 + $0x14] sm:$0xf]
      %v2291 = vld [vmem:[%s2284 + $0x18] sm:$0xf]
      %v2292 = vld [vmem:[%s2284 + $0x1c] sm:$0xf]
      %s2293 = scalar_lea.vmem %s7, 1
      %v2294 = vld [vmem:[%s2293] sm:$0x1]
      %v2296 = vlaneseq
      %v2297 = vshrl.u32 %v2296, 7
      %v2298 = vsub.s32 0, %v2297
      %v2299 = vrot.slane %v2294, %v2298
      %v2309 = vunpack.c.l.b16 %v2285
      %v2310 = vunpack.c.l.b16 %v2286
      %v2311 = vunpack.c.l.b16 %v2287
      %v2312 = vunpack.c.l.b16 %v2288
      %v2313 = vunpack.c.l.b16 %v2289
      %v2314 = vunpack.c.l.b16 %v2290
      %v2315 = vunpack.c.l.b16 %v2291
      %v2316 = vunpack.c.l.b16 %v2292
      %v2317 = vpack.c.b16 %v2310, %v2309
      %v2318 = vpack.c.b16 %v2312, %v2311
      %v2319 = vpack.c.b16 %v2314, %v2313
      %v2320 = vpack.c.b16 %v2316, %v2315
      %2325 = vmatprep.subr.bf16.mxu0 0
      %2326 = vmatpush1.bf16.msra.mxu0 %v2317
      %2327 = vmatprep.subr.bf16.mxu0 0
      %2328 = vmatpush1.bf16.msra.mxu0 %v2318
      %2329 = vmatprep.subr.bf16.mxu0 0
      %2330 = vmatpush1.bf16.msra.mxu0 %v2319
      %2331 = vmatprep.subr.bf16.mxu0 0
      %2332 = vmatpush1.bf16.msra.mxu0 %v2320
      %2333 = vmatprep.subr.bf16.mxu0 0
      %2334 = vmatpush1.bf16.msra.mxu0 0
      %2335 = vmatprep.subr.bf16.mxu0 0
      %2336 = vmatpush1.bf16.msra.mxu0 0
      %2337 = vmatprep.subr.bf16.mxu0 0
      %2338 = vmatpush1.bf16.msra.mxu0 0
      %2339 = vmatprep.subr.bf16.mxu0 0
      %2340 = vmatpush1.bf16.msra.mxu0 0
      %2341 = vmatprep.subr.bf16.mxu0 0
      %2342 = vmatpush1.bf16.msra.mxu0 0
      %2343 = vmatprep.subr.bf16.mxu0 0
      %2344 = vmatpush1.bf16.msra.mxu0 0
      %2345 = vmatprep.subr.bf16.mxu0 0
      %2346 = vmatpush1.bf16.msra.mxu0 0
      %2347 = vmatprep.subr.bf16.mxu0 0
      %2348 = vmatpush1.bf16.msra.mxu0 0
      %2349 = vmatprep.subr.bf16.mxu0 0
      %2350 = vmatpush1.bf16.msra.mxu0 0
      %2351 = vmatprep.subr.bf16.mxu0 0
      %2352 = vmatpush1.bf16.msra.mxu0 0
      %2353 = vmatprep.subr.bf16.mxu0 0
      %2354 = vmatpush1.bf16.msra.mxu0 0
      %2355 = vmatprep.subr.bf16.mxu0 0
      %2356 = vmatpush1.bf16.msra.mxu0 0
      %2357 = vmatprep.mubr.bf16.mxu0 0
      %2358 = vmatmul.mubr.bf16.gmra.mrb[0].mxu0 %v1691
      %v2359 = vpop.f32.mrb[0].mxu0
      %v2360 = vadd.f32 %v2299, %v2359
      %v2361 = vpop.f32.mrb[0].mxu0
      %v2362 = vpop.f32.mrb[0].mxu0
      %v2363 = vadd.f32 %v2299, %v2362
      %v2364 = vpop.f32.mrb[0].mxu0
      %2365 = vmatprep.mubr.bf16.mxu0 0
      %2366 = vmatmul.mubr.bf16.gmra.mrb[0].mxu0 %v1694
      %v2367 = vpop.f32.mrb[0].mxu0
      %v2368 = vadd.f32 %v2299, %v2367
      %v2369 = vpop.f32.mrb[0].mxu0
      %v2370 = vpop.f32.mrb[0].mxu0
      %v2371 = vadd.f32 %v2299, %v2370
      %v2372 = vpop.f32.mrb[0].mxu0
      %2373 = vmatprep.mubr.bf16.mxu0 0
      %2374 = vmatmul.mubr.bf16.gmra.mrb[0].mxu0 %v1697
      %v2375 = vpop.f32.mrb[0].mxu0
      %v2376 = vadd.f32 %v2299, %v2375
      %v2377 = vpop.f32.mrb[0].mxu0
      %v2378 = vpop.f32.mrb[0].mxu0
      %v2379 = vadd.f32 %v2299, %v2378
      %v2380 = vpop.f32.mrb[0].mxu0
      %2381 = vmatprep.mubr.bf16.mxu0 0
      %2382 = vmatmul.mubr.bf16.gmra.mrb[0].mxu0 %v1700
      %v2383 = vpop.f32.mrb[0].mxu0
      %v2384 = vadd.f32 %v2299, %v2383
      %v2385 = vpop.f32.mrb[0].mxu0
      %v2386 = vpop.f32.mrb[0].mxu0
      %v2387 = vadd.f32 %v2299, %v2386
      %v2388 = vpop.f32.mrb[0].mxu0
      %2389 = vmatprep.mubr.bf16.mxu0 0
      %2390 = vmatmul.mubr.bf16.gmra.mrb[0].mxu0 %v1703
      %v2391 = vpop.f32.mrb[0].mxu0
      %v2392 = vadd.f32 %v2299, %v2391
      %v2393 = vpop.f32.mrb[0].mxu0
      %v2394 = vpop.f32.mrb[0].mxu0
      %v2395 = vadd.f32 %v2299, %v2394
      %v2396 = vpop.f32.mrb[0].mxu0
      %2397 = vmatprep.mubr.bf16.mxu0 0
      %2398 = vmatmul.mubr.bf16.gmra.mrb[0].mxu0 %v1706
      %v2399 = vpop.f32.mrb[0].mxu0
      %v2400 = vadd.f32 %v2299, %v2399
      %v2401 = vpop.f32.mrb[0].mxu0
      %v2402 = vpop.f32.mrb[0].mxu0
      %v2403 = vadd.f32 %v2299, %v2402
      %v2404 = vpop.f32.mrb[0].mxu0
      %2405 = vmatprep.mubr.bf16.mxu0 0
      %2406 = vmatmul.mubr.bf16.gmra.mrb[0].mxu0 %v1709
      %v2407 = vpop.f32.mrb[0].mxu0
      %v2408 = vadd.f32 %v2299, %v2407
      %v2409 = vpop.f32.mrb[0].mxu0
      %v2410 = vpop.f32.mrb[0].mxu0
      %v2411 = vadd.f32 %v2299, %v2410
      %v2412 = vpop.f32.mrb[0].mxu0
      %2413 = vmatprep.mubr.bf16.mxu0 0
      %2414 = vmatmul.mubr.bf16.gmra.mrb[0].mxu0 %v1712
      %v2415 = vpop.f32.mrb[0].mxu0
      %v2416 = vadd.f32 %v2299, %v2415
      %v2417 = vpop.f32.mrb[0].mxu0
      %v2418 = vpop.f32.mrb[0].mxu0
      %v2419 = vadd.f32 %v2299, %v2418
      %v2420 = vpop.f32.mrb[0].mxu0
      %2421 = vdwg.mxu0
      %v2422 = vpack.c.bf16 %v2363, %v2360
      %v2423 = vpack.c.bf16 %v2371, %v2368
      %v2424 = vpack.c.bf16 %v2379, %v2376
      %v2425 = vpack.c.bf16 %v2387, %v2384
      %v2426 = vpack.c.bf16 %v2395, %v2392
      %v2427 = vpack.c.bf16 %v2403, %v2400
      %v2428 = vpack.c.bf16 %v2411, %v2408
      %v2429 = vpack.c.bf16 %v2419, %v2416
      %s2430 = scalar_lea.vmem [#allocation2], 8
      %v2431 = vld [vmem:[%s2430] sm:$0xff]
      %v2433 = vsel %vm1820, %v2422, 0
      %v2436 = vsel %vm1820, %v2423, 0
      %v2439 = vsel %vm1820, %v2424, 0
      %v2442 = vsel %vm1820, %v2425, 0
      %v2445 = vsel %vm1820, %v2426, 0
      %v2448 = vsel %vm1820, %v2427, 0
      %v2451 = vsel %vm1820, %v2428, 0
      %v2454 = vsel %vm1820, %v2429, 0
      %v2457 = vsel %vm1820, %v2431, 0
      %2459 = vmatprep.subr.bf16.mxu0 0
      %2460 = vmatpush1.bf16.xpose.msra.mxu0 %v2457
      %2461 = vmatprep.subr.bf16.mxu0 0
      %2462 = vmatpush1.bf16.xpose.msra.mxu0 0
      %2463 = vmatprep.subr.bf16.mxu0 0
      %2464 = vmatpush1.bf16.xpose.msra.mxu0 0
      %2465 = vmatprep.subr.bf16.mxu0 0
      %2466 = vmatpush1.bf16.xpose.msra.mxu0 0
      %2467 = vmatprep.subr.bf16.mxu0 0
      %2468 = vmatpush1.bf16.xpose.msra.mxu0 0
      %2469 = vmatprep.subr.bf16.mxu0 0
      %2470 = vmatpush1.bf16.xpose.msra.mxu0 0
      %2471 = vmatprep.subr.bf16.mxu0 0
      %2472 = vmatpush1.bf16.xpose.msra.mxu0 0
      %2473 = vmatprep.subr.bf16.mxu0 0
      %2474 = vmatpush1.bf16.xpose.msra.mxu0 0
      %2475 = vmatprep.subr.bf16.mxu0 0
      %2476 = vmatpush1.bf16.xpose.msra.mxu0 0
      %2477 = vmatprep.subr.bf16.mxu0 0
      %2478 = vmatpush1.bf16.xpose.msra.mxu0 0
      %2479 = vmatprep.subr.bf16.mxu0 0
      %2480 = vmatpush1.bf16.xpose.msra.mxu0 0
      %2481 = vmatprep.subr.bf16.mxu0 0
      %2482 = vmatpush1.bf16.xpose.msra.mxu0 0
      %2483 = vmatprep.subr.bf16.mxu0 0
      %2484 = vmatpush1.bf16.xpose.msra.mxu0 0
      %2485 = vmatprep.subr.bf16.mxu0 0
      %2486 = vmatpush1.bf16.xpose.msra.mxu0 0
      %2487 = vmatprep.subr.bf16.mxu0 0
      %2488 = vmatpush1.bf16.xpose.msra.mxu0 0
      %2489 = vmatprep.subr.bf16.mxu0 0
      %2490 = vmatpush1.bf16.xpose.msra.mxu0 0
      %2491 = vmatprep.mubr.bf16.mxu0 0
      %2492 = vmatmul.mubr.bf16.gmra.mrb[0].mxu0 %v2433
      %v2493 = vpop.f32.mrb[0].mxu0
      %v2494 = vadd.f32 0.0, %v2493
      %v2495 = vpop.f32.mrb[0].mxu0
      %v2496 = vpop.f32.mrb[0].mxu0
      %v2497 = vadd.f32 0.0, %v2496
      %v2498 = vpop.f32.mrb[0].mxu0
      %2499 = vmatprep.mubr.bf16.mxu0 0
      %2500 = vmatmul.mubr.bf16.gmra.mrb[0].mxu0 %v2436
      %v2501 = vpop.f32.mrb[0].mxu0
      %v2502 = vadd.f32 0.0, %v2501
      %v2503 = vpop.f32.mrb[0].mxu0
      %v2504 = vpop.f32.mrb[0].mxu0
      %v2505 = vadd.f32 0.0, %v2504
      %v2506 = vpop.f32.mrb[0].mxu0
      %2507 = vmatprep.mubr.bf16.mxu0 0
      %2508 = vmatmul.mubr.bf16.gmra.mrb[0].mxu0 %v2439
      %v2509 = vpop.f32.mrb[0].mxu0
      %v2510 = vadd.f32 0.0, %v2509
      %v2511 = vpop.f32.mrb[0].mxu0
      %v2512 = vpop.f32.mrb[0].mxu0
      %v2513 = vadd.f32 0.0, %v2512
      %v2514 = vpop.f32.mrb[0].mxu0
      %2515 = vmatprep.mubr.bf16.mxu0 0
      %2516 = vmatmul.mubr.bf16.gmra.mrb[0].mxu0 %v2442
      %v2517 = vpop.f32.mrb[0].mxu0
      %v2518 = vadd.f32 0.0, %v2517
      %v2519 = vpop.f32.mrb[0].mxu0
      %v2520 = vpop.f32.mrb[0].mxu0
      %v2521 = vadd.f32 0.0, %v2520
      %v2522 = vpop.f32.mrb[0].mxu0
      %2523 = vmatprep.mubr.bf16.mxu0 0
      %2524 = vmatmul.mubr.bf16.gmra.mrb[0].mxu0 %v2445
      %v2525 = vpop.f32.mrb[0].mxu0
      %v2526 = vadd.f32 0.0, %v2525
      %v2527 = vpop.f32.mrb[0].mxu0
      %v2528 = vpop.f32.mrb[0].mxu0
      %v2529 = vadd.f32 0.0, %v2528
      %v2530 = vpop.f32.mrb[0].mxu0
      %2531 = vmatprep.mubr.bf16.mxu0 0
      %2532 = vmatmul.mubr.bf16.gmra.mrb[0].mxu0 %v2448
      %v2533 = vpop.f32.mrb[0].mxu0
      %v2534 = vadd.f32 0.0, %v2533
      %v2535 = vpop.f32.mrb[0].mxu0
      %v2536 = vpop.f32.mrb[0].mxu0
      %v2537 = vadd.f32 0.0, %v2536
      %v2538 = vpop.f32.mrb[0].mxu0
      %2539 = vmatprep.mubr.bf16.mxu0 0
      %2540 = vmatmul.mubr.bf16.gmra.mrb[0].mxu0 %v2451
      %v2541 = vpop.f32.mrb[0].mxu0
      %v2542 = vadd.f32 0.0, %v2541
      %v2543 = vpop.f32.mrb[0].mxu0
      %v2544 = vpop.f32.mrb[0].mxu0
      %v2545 = vadd.f32 0.0, %v2544
      %v2546 = vpop.f32.mrb[0].mxu0
      %2547 = vmatprep.mubr.bf16.mxu0 0
      %2548 = vmatmul.mubr.bf16.gmra.mrb[0].mxu0 %v2454
      %v2549 = vpop.f32.mrb[0].mxu0
      %v2550 = vadd.f32 0.0, %v2549
      %v2551 = vpop.f32.mrb[0].mxu0
      %v2552 = vpop.f32.mrb[0].mxu0
      %v2553 = vadd.f32 0.0, %v2552
      %v2554 = vpop.f32.mrb[0].mxu0
      %2555 = vdwg.mxu0
      %v2556 = vmul.f32 %v2494, 0.17677669
      %v2557 = vmul.f32 %v2497, 0.17677669
      %v2558 = vmul.f32 %v2502, 0.17677669
      %v2559 = vmul.f32 %v2505, 0.17677669
      %v2560 = vmul.f32 %v2510, 0.17677669
      %v2561 = vmul.f32 %v2513, 0.17677669
      %v2562 = vmul.f32 %v2518, 0.17677669
      %v2563 = vmul.f32 %v2521, 0.17677669
      %v2564 = vmul.f32 %v2526, 0.17677669
      %v2565 = vmul.f32 %v2529, 0.17677669
      %v2566 = vmul.f32 %v2534, 0.17677669
      %v2567 = vmul.f32 %v2537, 0.17677669
      %v2568 = vmul.f32 %v2542, 0.17677669
      %v2569 = vmul.f32 %v2545, 0.17677669
      %v2570 = vmul.f32 %v2550, 0.17677669
      %v2571 = vmul.f32 %v2553, 0.17677669
      %v2572 = vsel %vm1961, %v2556, -inf
      %2573 = vmax.xlane.f32.xlu0 %v2572
      %v2574 = vpop.xlane.xlu0 %2573
      %v2575 = vsel %vm1961, %v2557, -inf
      %2576 = vmax.xlane.f32.xlu0 %v2575
      %v2577 = vpop.xlane.xlu0 %2576
      %v2578 = vsel %vm1961, %v2558, -inf
      %2579 = vmax.xlane.f32.xlu0 %v2578
      %v2580 = vpop.xlane.xlu0 %2579
      %v2581 = vsel %vm1961, %v2559, -inf
      %2582 = vmax.xlane.f32.xlu0 %v2581
      %v2583 = vpop.xlane.xlu0 %2582
      %v2584 = vsel %vm1961, %v2560, -inf
      %2585 = vmax.xlane.f32.xlu0 %v2584
      %v2586 = vpop.xlane.xlu0 %2585
      %v2587 = vsel %vm1961, %v2561, -inf
      %2588 = vmax.xlane.f32.xlu0 %v2587
      %v2589 = vpop.xlane.xlu0 %2588
      %v2590 = vsel %vm1961, %v2562, -inf
      %2591 = vmax.xlane.f32.xlu0 %v2590
      %v2592 = vpop.xlane.xlu0 %2591
      %v2593 = vsel %vm1961, %v2563, -inf
      %2594 = vmax.xlane.f32.xlu0 %v2593
      %v2595 = vpop.xlane.xlu0 %2594
      %v2596 = vsel %vm1961, %v2564, -inf
      %2597 = vmax.xlane.f32.xlu0 %v2596
      %v2598 = vpop.xlane.xlu0 %2597
      %v2599 = vsel %vm1961, %v2565, -inf
      %2600 = vmax.xlane.f32.xlu0 %v2599
      %v2601 = vpop.xlane.xlu0 %2600
      %v2602 = vsel %vm1961, %v2566, -inf
      %2603 = vmax.xlane.f32.xlu0 %v2602
      %v2604 = vpop.xlane.xlu0 %2603
      %v2605 = vsel %vm1961, %v2567, -inf
      %2606 = vmax.xlane.f32.xlu0 %v2605
      %v2607 = vpop.xlane.xlu0 %2606
      %v2608 = vsel %vm1961, %v2568, -inf
      %2609 = vmax.xlane.f32.xlu0 %v2608
      %v2610 = vpop.xlane.xlu0 %2609
      %v2611 = vsel %vm1961, %v2569, -inf
      %2612 = vmax.xlane.f32.xlu0 %v2611
      %v2613 = vpop.xlane.xlu0 %2612
      %v2614 = vsel %vm1961, %v2570, -inf
      %2615 = vmax.xlane.f32.xlu0 %v2614
      %v2616 = vpop.xlane.xlu0 %2615
      %v2617 = vsel %vm1961, %v2571, -inf
      %2618 = vmax.xlane.f32.xlu0 %v2617
      %v2619 = vpop.xlane.xlu0 %2618
      %v2620 = vsub.f32 %v2556, %v2574
      %v2621 = vsub.f32 %v2557, %v2577
      %v2622 = vsub.f32 %v2558, %v2580
      %v2623 = vsub.f32 %v2559, %v2583
      %v2624 = vsub.f32 %v2560, %v2586
      %v2625 = vsub.f32 %v2561, %v2589
      %v2626 = vsub.f32 %v2562, %v2592
      %v2627 = vsub.f32 %v2563, %v2595
      %v2628 = vsub.f32 %v2564, %v2598
      %v2629 = vsub.f32 %v2565, %v2601
      %v2630 = vsub.f32 %v2566, %v2604
      %v2631 = vsub.f32 %v2567, %v2607
      %v2632 = vsub.f32 %v2568, %v2610
      %v2633 = vsub.f32 %v2569, %v2613
      %v2634 = vsub.f32 %v2570, %v2616
      %v2635 = vsub.f32 %v2571, %v2619
      %v2636 = vmul.f32 %v2620, 1.442695
      %v2637 = vpow.pop %v2636
      %v2638 = vmul.f32 %v2621, 1.442695
      %v2639 = vpow.pop %v2638
      %v2640 = vmul.f32 %v2622, 1.442695
      %v2641 = vpow.pop %v2640
      %v2642 = vmul.f32 %v2623, 1.442695
      %v2643 = vpow.pop %v2642
      %v2644 = vmul.f32 %v2624, 1.442695
      %v2645 = vpow.pop %v2644
      %v2646 = vmul.f32 %v2625, 1.442695
      %v2647 = vpow.pop %v2646
      %v2648 = vmul.f32 %v2626, 1.442695
      %v2649 = vpow.pop %v2648
      %v2650 = vmul.f32 %v2627, 1.442695
      %v2651 = vpow.pop %v2650
      %v2652 = vmul.f32 %v2628, 1.442695
      %v2653 = vpow.pop %v2652
      %v2654 = vmul.f32 %v2629, 1.442695
      %v2655 = vpow.pop %v2654
      %v2656 = vmul.f32 %v2630, 1.442695
      %v2657 = vpow.pop %v2656
      %v2658 = vmul.f32 %v2631, 1.442695
      %v2659 = vpow.pop %v2658
      %v2660 = vmul.f32 %v2632, 1.442695
      %v2661 = vpow.pop %v2660
      %v2662 = vmul.f32 %v2633, 1.442695
      %v2663 = vpow.pop %v2662
      %v2664 = vmul.f32 %v2634, 1.442695
      %v2665 = vpow.pop %v2664
      %v2666 = vmul.f32 %v2635, 1.442695
      %v2667 = vpow.pop %v2666
      %v2668 = vsel %vm1961, %v2637, 0.0
      %2669 = vadd.xlane.f32.xlu0 %v2668
      %v2670 = vpop.xlane.xlu0 %2669
      %v2671 = vsel %vm1961, %v2639, 0.0
      %2672 = vadd.xlane.f32.xlu0 %v2671
      %v2673 = vpop.xlane.xlu0 %2672
      %v2674 = vsel %vm1961, %v2641, 0.0
      %2675 = vadd.xlane.f32.xlu0 %v2674
      %v2676 = vpop.xlane.xlu0 %2675
      %v2677 = vsel %vm1961, %v2643, 0.0
      %2678 = vadd.xlane.f32.xlu0 %v2677
      %v2679 = vpop.xlane.xlu0 %2678
      %v2680 = vsel %vm1961, %v2645, 0.0
      %2681 = vadd.xlane.f32.xlu0 %v2680
      %v2682 = vpop.xlane.xlu0 %2681
      %v2683 = vsel %vm1961, %v2647, 0.0
      %2684 = vadd.xlane.f32.xlu0 %v2683
      %v2685 = vpop.xlane.xlu0 %2684
      %v2686 = vsel %vm1961, %v2649, 0.0
      %2687 = vadd.xlane.f32.xlu0 %v2686
      %v2688 = vpop.xlane.xlu0 %2687
      %v2689 = vsel %vm1961, %v2651, 0.0
      %2690 = vadd.xlane.f32.xlu0 %v2689
      %v2691 = vpop.xlane.xlu0 %2690
      %v2692 = vsel %vm1961, %v2653, 0.0
      %2693 = vadd.xlane.f32.xlu0 %v2692
      %v2694 = vpop.xlane.xlu0 %2693
      %v2695 = vsel %vm1961, %v2655, 0.0
      %2696 = vadd.xlane.f32.xlu0 %v2695
      %v2697 = vpop.xlane.xlu0 %2696
      %v2698 = vsel %vm1961, %v2657, 0.0
      %2699 = vadd.xlane.f32.xlu0 %v2698
      %v2700 = vpop.xlane.xlu0 %2699
      %v2701 = vsel %vm1961, %v2659, 0.0
      %2702 = vadd.xlane.f32.xlu0 %v2701
      %v2703 = vpop.xlane.xlu0 %2702
      %v2704 = vsel %vm1961, %v2661, 0.0
      %2705 = vadd.xlane.f32.xlu0 %v2704
      %v2706 = vpop.xlane.xlu0 %2705
      %v2707 = vsel %vm1961, %v2663, 0.0
      %2708 = vadd.xlane.f32.xlu0 %v2707
      %v2709 = vpop.xlane.xlu0 %2708
      %v2710 = vsel %vm1961, %v2665, 0.0
      %2711 = vadd.xlane.f32.xlu0 %v2710
      %v2712 = vpop.xlane.xlu0 %2711
      %v2713 = vsel %vm1961, %v2667, 0.0
      %2714 = vadd.xlane.f32.xlu0 %v2713
      %v2715 = vpop.xlane.xlu0 %2714
      %v2716 = vrcp.pop %v2670
      %v2717 = vrcp.pop %v2673
      %v2718 = vrcp.pop %v2676
      %v2719 = vrcp.pop %v2679
      %v2720 = vrcp.pop %v2682
      %v2721 = vrcp.pop %v2685
      %v2722 = vrcp.pop %v2688
      %v2723 = vrcp.pop %v2691
      %v2724 = vrcp.pop %v2694
      %v2725 = vrcp.pop %v2697
      %v2726 = vrcp.pop %v2700
      %v2727 = vrcp.pop %v2703
      %v2728 = vrcp.pop %v2706
      %v2729 = vrcp.pop %v2709
      %v2730 = vrcp.pop %v2712
      %v2731 = vrcp.pop %v2715
      %v2732 = vmul.f32 %v2637, %v2716
      %v2733 = vmul.f32 %v2639, %v2717
      %v2734 = vmul.f32 %v2641, %v2718
      %v2735 = vmul.f32 %v2643, %v2719
      %v2736 = vmul.f32 %v2645, %v2720
      %v2737 = vmul.f32 %v2647, %v2721
      %v2738 = vmul.f32 %v2649, %v2722
      %v2739 = vmul.f32 %v2651, %v2723
      %v2740 = vmul.f32 %v2653, %v2724
      %v2741 = vmul.f32 %v2655, %v2725
      %v2742 = vmul.f32 %v2657, %v2726
      %v2743 = vmul.f32 %v2659, %v2727
      %v2744 = vmul.f32 %v2661, %v2728
      %v2745 = vmul.f32 %v2663, %v2729
      %v2746 = vmul.f32 %v2665, %v2730
      %v2747 = vmul.f32 %v2667, %v2731
      %v2748 = vpack.c.bf16 %v2733, %v2732
      %v2749 = vpack.c.bf16 %v2735, %v2734
      %v2750 = vpack.c.bf16 %v2737, %v2736
      %v2751 = vpack.c.bf16 %v2739, %v2738
      %v2752 = vpack.c.bf16 %v2741, %v2740
      %v2753 = vpack.c.bf16 %v2743, %v2742
      %v2754 = vpack.c.bf16 %v2745, %v2744
      %v2755 = vpack.c.bf16 %v2747, %v2746
      %s2756 = scalar_lea.vmem [#allocation3], 8
      %v2757 = vld [vmem:[%s2756] sm:$0xff]
      %v2759 = vsel %vm1961, %v2748, 0
      %v2762 = vsel %vm1961, %v2749, 0
      %v2765 = vsel %vm1961, %v2750, 0
      %v2768 = vsel %vm1961, %v2751, 0
      %v2771 = vsel %vm1961, %v2752, 0
      %v2774 = vsel %vm1961, %v2753, 0
      %v2777 = vsel %vm1961, %v2754, 0
      %v2780 = vsel %vm1961, %v2755, 0
      %2782 = vmatprep.subr.bf16.mxu0 0
      %2783 = vmatpush1.bf16.msra.mxu0 %v2757
      %2784 = vmatprep.subr.bf16.mxu0 0
      %2785 = vmatpush1.bf16.msra.mxu0 0
      %2786 = vmatprep.subr.bf16.mxu0 0
      %2787 = vmatpush1.bf16.msra.mxu0 0
      %2788 = vmatprep.subr.bf16.mxu0 0
      %2789 = vmatpush1.bf16.msra.mxu0 0
      %2790 = vmatprep.subr.bf16.mxu0 0
      %2791 = vmatpush1.bf16.msra.mxu0 0
      %2792 = vmatprep.subr.bf16.mxu0 0
      %2793 = vmatpush1.bf16.msra.mxu0 0
      %2794 = vmatprep.subr.bf16.mxu0 0
      %2795 = vmatpush1.bf16.msra.mxu0 0
      %2796 = vmatprep.subr.bf16.mxu0 0
      %2797 = vmatpush1.bf16.msra.mxu0 0
      %2798 = vmatprep.subr.bf16.mxu0 0
      %2799 = vmatpush1.bf16.msra.mxu0 0
      %2800 = vmatprep.subr.bf16.mxu0 0
      %2801 = vmatpush1.bf16.msra.mxu0 0
      %2802 = vmatprep.subr.bf16.mxu0 0
      %2803 = vmatpush1.bf16.msra.mxu0 0
      %2804 = vmatprep.subr.bf16.mxu0 0
      %2805 = vmatpush1.bf16.msra.mxu0 0
      %2806 = vmatprep.subr.bf16.mxu0 0
      %2807 = vmatpush1.bf16.msra.mxu0 0
      %2808 = vmatprep.subr.bf16.mxu0 0
      %2809 = vmatpush1.bf16.msra.mxu0 0
      %2810 = vmatprep.subr.bf16.mxu0 0
      %2811 = vmatpush1.bf16.msra.mxu0 0
      %2812 = vmatprep.subr.bf16.mxu0 0
      %2813 = vmatpush1.bf16.msra.mxu0 0
      %2814 = vmatprep.mubr.bf16.mxu0 0
      %2815 = vmatmul.mubr.bf16.gmra.mrb[0].mxu0 %v2759
      %v2816 = vpop.f32.mrb[0].mxu0
      %v2817 = vadd.f32 0.0, %v2816
      %v2818 = vpop.f32.mrb[0].mxu0
      %v2819 = vpop.f32.mrb[0].mxu0
      %v2820 = vadd.f32 0.0, %v2819
      %v2821 = vpop.f32.mrb[0].mxu0
      %2822 = vmatprep.mubr.bf16.mxu0 0
      %2823 = vmatmul.mubr.bf16.gmra.mrb[0].mxu0 %v2762
      %v2824 = vpop.f32.mrb[0].mxu0
      %v2825 = vadd.f32 0.0, %v2824
      %v2826 = vpop.f32.mrb[0].mxu0
      %v2827 = vpop.f32.mrb[0].mxu0
      %v2828 = vadd.f32 0.0, %v2827
      %v2829 = vpop.f32.mrb[0].mxu0
      %2830 = vmatprep.mubr.bf16.mxu0 0
      %2831 = vmatmul.mubr.bf16.gmra.mrb[0].mxu0 %v2765
      %v2832 = vpop.f32.mrb[0].mxu0
      %v2833 = vadd.f32 0.0, %v2832
      %v2834 = vpop.f32.mrb[0].mxu0
      %v2835 = vpop.f32.mrb[0].mxu0
      %v2836 = vadd.f32 0.0, %v2835
      %v2837 = vpop.f32.mrb[0].mxu0
      %2838 = vmatprep.mubr.bf16.mxu0 0
      %2839 = vmatmul.mubr.bf16.gmra.mrb[0].mxu0 %v2768
      %v2840 = vpop.f32.mrb[0].mxu0
      %v2841 = vadd.f32 0.0, %v2840
      %v2842 = vpop.f32.mrb[0].mxu0
      %v2843 = vpop.f32.mrb[0].mxu0
      %v2844 = vadd.f32 0.0, %v2843
      %v2845 = vpop.f32.mrb[0].mxu0
      %2846 = vmatprep.mubr.bf16.mxu0 0
      %2847 = vmatmul.mubr.bf16.gmra.mrb[0].mxu0 %v2771
      %v2848 = vpop.f32.mrb[0].mxu0
      %v2849 = vadd.f32 0.0, %v2848
      %v2850 = vpop.f32.mrb[0].mxu0
      %v2851 = vpop.f32.mrb[0].mxu0
      %v2852 = vadd.f32 0.0, %v2851
      %v2853 = vpop.f32.mrb[0].mxu0
      %2854 = vmatprep.mubr.bf16.mxu0 0
      %2855 = vmatmul.mubr.bf16.gmra.mrb[0].mxu0 %v2774
      %v2856 = vpop.f32.mrb[0].mxu0
      %v2857 = vadd.f32 0.0, %v2856
      %v2858 = vpop.f32.mrb[0].mxu0
      %v2859 = vpop.f32.mrb[0].mxu0
      %v2860 = vadd.f32 0.0, %v2859
      %v2861 = vpop.f32.mrb[0].mxu0
      %2862 = vmatprep.mubr.bf16.mxu0 0
      %2863 = vmatmul.mubr.bf16.gmra.mrb[0].mxu0 %v2777
      %v2864 = vpop.f32.mrb[0].mxu0
      %v2865 = vadd.f32 0.0, %v2864
      %v2866 = vpop.f32.mrb[0].mxu0
      %v2867 = vpop.f32.mrb[0].mxu0
      %v2868 = vadd.f32 0.0, %v2867
      %v2869 = vpop.f32.mrb[0].mxu0
      %2870 = vmatprep.mubr.bf16.mxu0 0
      %2871 = vmatmul.mubr.bf16.gmra.mrb[0].mxu0 %v2780
      %v2872 = vpop.f32.mrb[0].mxu0
      %v2873 = vadd.f32 0.0, %v2872
      %v2874 = vpop.f32.mrb[0].mxu0
      %v2875 = vpop.f32.mrb[0].mxu0
      %v2876 = vadd.f32 0.0, %v2875
      %v2877 = vpop.f32.mrb[0].mxu0
      %2878 = vdwg.mxu0
      %2895 = vrot.lane.b32.xlu0 %v2817, 32
      %v2896 = vpop.permute.xlu0 %2895
      %2897 = vrot.lane.b32.xlu0 %v2820, 32
      %v2898 = vpop.permute.xlu0 %2897
      %2899 = vrot.lane.b32.xlu0 %v2825, 32
      %v2900 = vpop.permute.xlu0 %2899
      %2901 = vrot.lane.b32.xlu0 %v2828, 32
      %v2902 = vpop.permute.xlu0 %2901
      %2903 = vrot.lane.b32.xlu0 %v2833, 32
      %v2904 = vpop.permute.xlu0 %2903
      %2905 = vrot.lane.b32.xlu0 %v2836, 32
      %v2906 = vpop.permute.xlu0 %2905
      %2907 = vrot.lane.b32.xlu0 %v2841, 32
      %v2908 = vpop.permute.xlu0 %2907
      %2909 = vrot.lane.b32.xlu0 %v2844, 32
      %v2910 = vpop.permute.xlu0 %2909
      %2911 = vrot.lane.b32.xlu0 %v2849, 32
      %v2912 = vpop.permute.xlu0 %2911
      %2913 = vrot.lane.b32.xlu0 %v2852, 32
      %v2914 = vpop.permute.xlu0 %2913
      %2915 = vrot.lane.b32.xlu0 %v2857, 32
      %v2916 = vpop.permute.xlu0 %2915
      %2917 = vrot.lane.b32.xlu0 %v2860, 32
      %v2918 = vpop.permute.xlu0 %2917
      %2919 = vrot.lane.b32.xlu0 %v2865, 32
      %v2920 = vpop.permute.xlu0 %2919
      %2921 = vrot.lane.b32.xlu0 %v2868, 32
      %v2922 = vpop.permute.xlu0 %2921
      %2923 = vrot.lane.b32.xlu0 %v2873, 32
      %v2924 = vpop.permute.xlu0 %2923
      %2925 = vrot.lane.b32.xlu0 %v2876, 32
      %v2926 = vpop.permute.xlu0 %2925
      %vm2943 = vcmask 523520
      %2944 = vst.msk [vmem:[#allocation4] sm:$0xff] %vm2943, %v2896
      %2945 = vst.msk [vmem:[#allocation4 + $0x8] sm:$0xff] %vm2943, %v2898
      %2946 = vst.msk [vmem:[#allocation4 + $0x10] sm:$0xff] %vm2943, %v2900
      %2947 = vst.msk [vmem:[#allocation4 + $0x18] sm:$0xff] %vm2943, %v2902
      %2948 = vst.msk [vmem:[#allocation4 + $0x20] sm:$0xff] %vm2943, %v2904
      %2949 = vst.msk [vmem:[#allocation4 + $0x28] sm:$0xff] %vm2943, %v2906
      %2950 = vst.msk [vmem:[#allocation4 + $0x30] sm:$0xff] %vm2943, %v2908
      %2951 = vst.msk [vmem:[#allocation4 + $0x38] sm:$0xff] %vm2943, %v2910
      %2952 = vst.msk [vmem:[#allocation4 + $0x40] sm:$0xff] %vm2943, %v2912
      %2953 = vst.msk [vmem:[#allocation4 + $0x48] sm:$0xff] %vm2943, %v2914
      %2954 = vst.msk [vmem:[#allocation4 + $0x50] sm:$0xff] %vm2943, %v2916
      %2955 = vst.msk [vmem:[#allocation4 + $0x58] sm:$0xff] %vm2943, %v2918
      %2956 = vst.msk [vmem:[#allocation4 + $0x60] sm:$0xff] %vm2943, %v2920
      %2957 = vst.msk [vmem:[#allocation4 + $0x68] sm:$0xff] %vm2943, %v2922
      %2958 = vst.msk [vmem:[#allocation4 + $0x70] sm:$0xff] %vm2943, %v2924
      %2959 = vst.msk [vmem:[#allocation4 + $0x78] sm:$0xff] %vm2943, %v2926
      %v2960 = vld [vmem:[#allocation4] sm:$0xff]
      %v2961 = vld [vmem:[#allocation4 + $0x8] sm:$0xff]
      %v2962 = vld [vmem:[#allocation4 + $0x10] sm:$0xff]
      %v2963 = vld [vmem:[#allocation4 + $0x18] sm:$0xff]
      %v2964 = vld [vmem:[#allocation4 + $0x20] sm:$0xff]
      %v2965 = vld [vmem:[#allocation4 + $0x28] sm:$0xff]
      %v2966 = vld [vmem:[#allocation4 + $0x30] sm:$0xff]
      %v2967 = vld [vmem:[#allocation4 + $0x38] sm:$0xff]
      %v2968 = vld [vmem:[#allocation4 + $0x40] sm:$0xff]
      %v2969 = vld [vmem:[#allocation4 + $0x48] sm:$0xff]
      %v2970 = vld [vmem:[#allocation4 + $0x50] sm:$0xff]
      %v2971 = vld [vmem:[#allocation4 + $0x58] sm:$0xff]
      %v2972 = vld [vmem:[#allocation4 + $0x60] sm:$0xff]
      %v2973 = vld [vmem:[#allocation4 + $0x68] sm:$0xff]
      %v2974 = vld [vmem:[#allocation4 + $0x70] sm:$0xff]
      %v2975 = vld [vmem:[#allocation4 + $0x78] sm:$0xff]
      %2976 = vst.msk [vmem:[%s471] sm:$0xff] %vm1689, %v2960
      %2977 = vst.msk [vmem:[%s471 + $0x8] sm:$0xff] %vm1689, %v2961
      %2978 = vst.msk [vmem:[%s471 + $0x10] sm:$0xff] %vm1689, %v2962
      %2979 = vst.msk [vmem:[%s471 + $0x18] sm:$0xff] %vm1689, %v2963
      %2980 = vst.msk [vmem:[%s471 + $0x20] sm:$0xff] %vm1689, %v2964
      %2981 = vst.msk [vmem:[%s471 + $0x28] sm:$0xff] %vm1689, %v2965
      %2982 = vst.msk [vmem:[%s471 + $0x30] sm:$0xff] %vm1689, %v2966
      %2983 = vst.msk [vmem:[%s471 + $0x38] sm:$0xff] %vm1689, %v2967
      %2984 = vst.msk [vmem:[%s471 + $0x40] sm:$0xff] %vm1689, %v2968
      %2985 = vst.msk [vmem:[%s471 + $0x48] sm:$0xff] %vm1689, %v2969
      %2986 = vst.msk [vmem:[%s471 + $0x50] sm:$0xff] %vm1689, %v2970
      %2987 = vst.msk [vmem:[%s471 + $0x58] sm:$0xff] %vm1689, %v2971
      %2988 = vst.msk [vmem:[%s471 + $0x60] sm:$0xff] %vm1689, %v2972
      %2989 = vst.msk [vmem:[%s471 + $0x68] sm:$0xff] %vm1689, %v2973
      %2990 = vst.msk [vmem:[%s471 + $0x70] sm:$0xff] %vm1689, %v2974
      %2991 = vst.msk [vmem:[%s471 + $0x78] sm:$0xff] %vm1689, %v2975
      %s2992 = smul.u32 16, %s28
      %p2993 = scmp.lt.s32.totalorder %s27, 1
      %s2994 = scalar_select %p2993, %s27, 1
      %p2995 = scmp.lt.s32.totalorder %s2992, 31
      %s2996 = scalar_select %p2995, %s2992, 31
      %s2997 = smul.addr %s2994, 32
      %s2998 = sadd.s32 %s2996, %s2997
      %s2999 = smul.addr %s2998, 8
      %s3000 = scalar_lea.vmem %s12, %s2999
      // Predicated region
      $region73: #{tpu_custom_call.1} parent=67 // pred_check
        %p3001 = pneg %p319
      $region74: #{tpu_custom_call.1} parent=67 // pred_check_branch
        %3003 = sbr.rel (%p3001) target = $region76
      $region75: #{tpu_custom_call.1} parent=67 // pred_region
        %s3004 = smul.u32 16, %s28
      $region76: #{tpu_custom_call.1} parent=67 // pred_fallthru
        _
    $region68: #{tpu_custom_call.1} parent=5 // pred_fallthru
      _
    %p3005 = scmp.le.s32.totalorder 2, %s18
    // Predicated region
    $region77: #{tpu_custom_call.1} parent=5 // pred_check
      %p3006 = pneg %p3005
    $region78: #{tpu_custom_call.1} parent=5 // pred_check_branch
      %3008 = sbr.rel (%p3006) target = $region80
    $region79: #{tpu_custom_call.1} parent=5 // pred_region
      %s3009 = ssub.s32 %s18, 2
      // Predicated region
      $region81: #{tpu_custom_call.1} parent=79 // pred_check
        %p3010 = pneg %p325
      $region82: #{tpu_custom_call.1} parent=79 // pred_check_branch
        %3012 = sbr.rel (%p3010) target = $region84
      $region83: #{tpu_custom_call.1} parent=79 // pred_region
        %s3013 = smul.u32 16, %s30
        %p3014 = scmp.lt.s32.totalorder %s29, 1
        %s3015 = scalar_select %p3014, %s29, 1
        %p3016 = scmp.lt.s32.totalorder %s3013, 31
        %s3017 = scalar_select %p3016, %s3013, 31
        %s3018 = smul.addr %s3015, 32
        %s3019 = sadd.s32 %s3017, %s3018
        %s3020 = smul.addr %s3019, 8
        %s3021 = scalar_lea.vmem %s12, %s3020
      $region84: #{tpu_custom_call.1} parent=79 // pred_fallthru
        _
    $region80: #{tpu_custom_call.1} parent=5 // pred_fallthru
      _
  $region6: #{tpu_custom_call.1} parent=0 // loop_footer
    %s22 = sadd.s32 1, %s18
  $region7: #{tpu_custom_call.1} parent=0 // loop_footer_branch
    %17 = sbr.rel target = $region3
  $region8: #{tpu_custom_call.1} parent=0 // loop_exit
    _

</llo_original>
